<compile_context>
chip_gen: v6e
topology: v6e:2x2x1
jax: 0.10.0
libtpu: 0.0.40
codegen_flags: <defaults>
</compile_context>

<pallas_src>
import numpy as np

import jax
import jax.numpy as jnp
from jax.experimental import pallas as pl
from jax.experimental.pallas import tpu as pltpu


# ----------------------------- geometry helpers -----------------------------

def _conv_out(size, k, s, p):
    return (size + 2 * p - k) // s + 1


def _round_up(x, m):
    return ((x + m - 1) // m) * m


def _build_selection(h, w, kh, kw, stride, pad, m_in_rows):
    """Per-image constant 0/1 gather matrix for conv-as-GEMM.

    Returns S of shape (KH*KW*m_pad, m_in_rows) such that, for an activation
    matrix A of shape (m_in_rows, C) whose first h*w rows are the flattened
    HWC activation of ONE image (row = ih*w + iw), the slab
    S[k*m_pad:(k+1)*m_pad] @ A gives the im2col rows of kernel tap k
    (all-zero rows for padding taps and for output-row padding).
    m_pad = roundup(oh*ow, 16) keeps every slab bf16 sublane-tile aligned.
    """
    oh = _conv_out(h, kh, stride, pad)
    ow = _conv_out(w, kw, stride, pad)
    m_out = oh * ow
    m_pad = _round_up(m_out, 16)
    S = np.zeros((kh * kw * m_pad, m_in_rows), np.float32)
    for ki in range(kh):
        for kj in range(kw):
            k = ki * kw + kj
            for r in range(oh):
                ih = stride * r + ki - pad
                if ih < 0 or ih >= h:
                    continue
                for c in range(ow):
                    iw = stride * c + kj - pad
                    if iw < 0 or iw >= w:
                        continue
                    S[k * m_pad + r * ow + c, ih * w + iw] = 1.0
    return S, oh, ow, m_out, m_pad


# ------------------------------ Pallas kernel ------------------------------

def _encoder_kernel(p1_ref, w1_ref, w2_ref, w3_ref, w4_ref,
                    s2_ref, b2_ref, s3_ref, b3_ref,
                    sel2_ref, sel3_ref, sel4_ref,
                    out_ref,
                    p2_scr, p3_scr, p4_scr):
    f32, bf16 = jnp.float32, jnp.bfloat16

    def leaky(v):
        return jnp.where(v >= 0, v, 0.2 * v)

    def conv_block(act_bf16, sel_ref, p_scr, w_ref):
        """One conv layer: merged selection GEMM -> patch matrix -> one GEMM."""
        m_pad = p_scr.shape[0]
        taps = sel_ref.shape[0] // m_pad
        cin = p_scr.shape[1] // taps
        # (taps*m_pad, Cin) in one MXU pass; cast to bf16 once.
        rows = jnp.dot(sel_ref[...], act_bf16,
                       preferred_element_type=f32).astype(bf16)
        # Static slab copies into the (m_pad, taps*Cin) patch matrix.
        for k in range(taps):
            p_scr[:, k * cin:(k + 1) * cin] = rows[k * m_pad:(k + 1) * m_pad, :]
        # Single stacked-tap weight GEMM: (m_pad, taps*Cin) @ (taps*Cin, Cout).
        return jnp.dot(p_scr[...], w_ref[...], preferred_element_type=f32)

    # layer 1: Conv(3->64, k4 s2 p1) + LeakyReLU   (im2col done in wrapper)
    y1 = jnp.dot(p1_ref[0], w1_ref[...], preferred_element_type=f32)
    y1 = leaky(y1).astype(bf16)                                   # (64, 64)

    # layer 2: Conv(64->128, k4 s2 p1) + BN + LeakyReLU  (Dropout2d = id)
    a2 = conv_block(y1, sel2_ref, p2_scr, w2_ref)                 # (16, 128)
    y2 = leaky(a2 * s2_ref[...] + b2_ref[...]).astype(bf16)

    # layer 3: Conv(128->128, k3 s1 p1) + BN + LeakyReLU (Dropout2d = id)
    a3 = conv_block(y2, sel3_ref, p3_scr, w3_ref)                 # (16, 128)
    y3 = leaky(a3 * s3_ref[...] + b3_ref[...]).astype(bf16)

    # layer 4: Conv(128->256, k4 s1 p0) + Tanh
    a4 = conv_block(y3, sel4_ref, p4_scr, w4_ref)                 # (16, 256)
    out_ref[...] = jnp.tanh(a4)[None]


# ------------------------------ JAX-side glue -------------------------------

def im2col(x, kh, kw, stride, pad):
    """x: NHWC -> patches [N*OH*OW, kh*kw*C] (tap-major, then channel)."""
    n, h, w, c = x.shape
    xp = jnp.pad(x, ((0, 0), (pad, pad), (pad, pad), (0, 0)))
    oh = (h + 2 * pad - kh) // stride + 1
    ow = (w + 2 * pad - kw) // stride + 1
    cols = []
    for i in range(kh):
        for j in range(kw):
            cols.append(
                xp[:, i:i + stride * oh:stride, j:j + stride * ow:stride, :])
    patches = jnp.stack(cols, axis=3)        # (N, OH, OW, kh*kw, C)
    return patches.reshape(n * oh * ow, kh * kw * c), (n, oh, ow)


def _stack_conv_weight(w_oihw):
    """OIHW -> stacked (KH*KW*Cin, Cout), row = tap*Cin + cin."""
    co, ci, kh, kw = w_oihw.shape
    return jnp.transpose(w_oihw, (2, 3, 1, 0)).reshape(kh * kw * ci, co)


def bn_scale_bias(gamma, beta, mean, var, eps=1e-5):
    scale = gamma * jax.lax.rsqrt(var + eps)
    return scale, beta - mean * scale


def init_params(key, in_ch=3, out_ch=256):
    ks = jax.random.split(key, 4)

    def conv_w(k, shape):  # deterministic He-style init (OIHW)
        fan_in = shape[1] * shape[2] * shape[3]
        return jax.random.normal(k, shape, jnp.float32) * (2.0 / fan_in) ** 0.5

    ones128 = jnp.ones((128,), jnp.float32)
    zeros128 = jnp.zeros((128,), jnp.float32)
    return {
        "w1": conv_w(ks[0], (64, in_ch, 4, 4)),
        "w2": conv_w(ks[1], (128, 64, 4, 4)),
        "w3": conv_w(ks[2], (128, 128, 3, 3)),
        "w4": conv_w(ks[3], (out_ch, 128, 4, 4)),
        # BatchNorm2d fresh-init params / running stats (eval mode)
        "bn2": (ones128, zeros128, zeros128, ones128),
        "bn3": (ones128, zeros128, zeros128, ones128),
    }


def _resident_spec(shape):
    nd = len(shape)
    return pl.BlockSpec(shape, lambda i, _nd=nd: (0,) * _nd)


def E_forward(params, x_nchw):
    N, cin, H, W = x_nchw.shape
    x = jnp.transpose(x_nchw, (0, 2, 3, 1)).astype(jnp.float32)    # NHWC

    # Layer-1 im2col in the wrapper (input must be staged from HBM anyway).
    patches1, (_, oh1, ow1) = im2col(x, 4, 4, 2, 1)                # (N*64, 16*cin)
    m1 = oh1 * ow1
    patches1 = patches1.reshape(N, m1, 16 * cin)

    c1 = params["w1"].shape[0]                                     # 64
    c2 = params["w2"].shape[0]                                     # 128
    c3 = params["w3"].shape[0]                                     # 128
    c4 = params["w4"].shape[0]                                     # 256

    # Per-image constant 0/1 selection matrices (trace-time numpy constants).
    sel2_np, oh2, ow2, m2, m2p = _build_selection(oh1, ow1, 4, 4, 2, 1, m1)
    sel3_np, oh3, ow3, m3, m3p = _build_selection(oh2, ow2, 3, 3, 1, 1, m2p)
    sel4_np, oh4, ow4, m4, m4p = _build_selection(oh3, ow3, 4, 4, 1, 0, m3p)

    # Stacked-tap weights: (taps*Cin, Cout).  No channel padding (y1 stays 64-wide).
    w1_st = _stack_conv_weight(params["w1"])                       # (16*cin, 64)
    w2_st = _stack_conv_weight(params["w2"])                       # (1024, 128)
    w3_st = _stack_conv_weight(params["w3"])                       # (1152, 128)
    w4_st = _stack_conv_weight(params["w4"])                       # (2048, 256)

    s2, b2 = bn_scale_bias(*params["bn2"])
    s3, b3 = bn_scale_bias(*params["bn3"])

    bf16 = jnp.bfloat16
    args = (
        patches1.astype(bf16),                                     # (N, 64, 48)
        w1_st.astype(bf16),
        w2_st.astype(bf16),
        w3_st.astype(bf16),
        w4_st.astype(bf16),
        s2.reshape(1, c2).astype(jnp.float32),
        b2.reshape(1, c2).astype(jnp.float32),
        s3.reshape(1, c3).astype(jnp.float32),
        b3.reshape(1, c3).astype(jnp.float32),
        jnp.asarray(sel2_np, bf16),                                # (256, 64)
        jnp.asarray(sel3_np, bf16),                                # (144, 16)
        jnp.asarray(sel4_np, bf16),                                # (256, 16)
    )

    in_specs = [
        pl.BlockSpec((1, m1, 16 * cin), lambda i: (i, 0, 0)),      # per-image block
        _resident_spec(w1_st.shape),
        _resident_spec(w2_st.shape),
        _resident_spec(w3_st.shape),
        _resident_spec(w4_st.shape),
        _resident_spec((1, c2)),
        _resident_spec((1, c2)),
        _resident_spec((1, c3)),
        _resident_spec((1, c3)),
        _resident_spec(sel2_np.shape),
        _resident_spec(sel3_np.shape),
        _resident_spec(sel4_np.shape),
    ]

    out_pad = pl.pallas_call(
        _encoder_kernel,
        out_shape=jax.ShapeDtypeStruct((N, m4p, c4), jnp.float32),
        grid=(N,),
        in_specs=in_specs,
        out_specs=pl.BlockSpec((1, m4p, c4), lambda i: (i, 0, 0)),
        scratch_shapes=[
            pltpu.VMEM((m2p, 16 * c1), bf16),                      # P2 (16, 1024)
            pltpu.VMEM((m3p, 9 * c2), bf16),                       # P3 (16, 1152)
            pltpu.VMEM((m4p, 16 * c3), bf16),                      # P4 (16, 2048)
        ],
        compiler_params=pltpu.CompilerParams(
            dimension_semantics=("parallel",)),
    )(*args)

    # rows per image are ordered (oh4, ow4); drop padding rows, back to NCHW.
    out = out_pad[:, :m4, :].reshape(N, oh4, ow4, c4)
    return jnp.transpose(out, (0, 3, 1, 2))


# --------------------------- pure-JAX reference ------------------------------

def E_reference(params, x_nchw):
    def conv(x, w, s, p):
        return jax.lax.conv_general_dilated(
            x, w, (s, s), [(p, p), (p, p)],
            dimension_numbers=("NCHW", "OIHW", "NCHW"),
            precision=jax.lax.Precision.HIGHEST)

    def bn(x, bn_params):
        sc, bi = bn_scale_bias(*bn_params)
        return x * sc[None, :, None, None] + bi[None, :, None, None]

    def leaky(v):
        return jnp.where(v >= 0, v, 0.2 * v)

    y = leaky(conv(x_nchw, params["w1"], 2, 1))
    y = leaky(bn(conv(y, params["w2"], 2, 1), params["bn2"]))      # Dropout2d = id
    y = leaky(bn(conv(y, params["w3"], 1, 1), params["bn3"]))      # Dropout2d = id
    return jnp.tanh(conv(y, params["w4"], 1, 0))


# ----------------------------------- main -----------------------------------

if __name__ == "__main__":
    key = jax.random.PRNGKey(0)
    k_param, k_x = jax.random.split(key)

    params = init_params(k_param, in_ch=3, out_ch=256)
    x = jax.random.normal(k_x, (2, 3, 16, 16), jnp.float32)  # NCHW, like PyTorch

    out = jax.jit(E_forward)(params, x)
    out = jax.block_until_ready(out)

    ref = E_reference(params, x)

    assert out.shape == (2, 256, 1, 1), out.shape
    assert bool(jnp.all(jnp.isfinite(out)))
    assert bool(jnp.all(jnp.abs(out) <= 1.0))  # tanh range
    max_err = float(jnp.max(jnp.abs(out - ref)))
    assert max_err < 1e-1, f"max abs err vs f32 reference: {max_err}"
    print("KERNEL_OK")
</pallas_src>

<mosaic_0001>
module attributes {stable_mosaic.version = 11 : i64} {
  func.func @_encoder_kernel(%arg0: i32, %arg1: memref<1x64x48xbf16, #tpu.memory_space<vmem>>, %arg2: memref<48x64xbf16, #tpu.memory_space<vmem>>, %arg3: memref<1024x128xbf16, #tpu.memory_space<vmem>>, %arg4: memref<1152x128xbf16, #tpu.memory_space<vmem>>, %arg5: memref<2048x256xbf16, #tpu.memory_space<vmem>>, %arg6: memref<1x128xf32, #tpu.memory_space<vmem>>, %arg7: memref<1x128xf32, #tpu.memory_space<vmem>>, %arg8: memref<1x128xf32, #tpu.memory_space<vmem>>, %arg9: memref<1x128xf32, #tpu.memory_space<vmem>>, %arg10: memref<256x64xbf16, #tpu.memory_space<vmem>>, %arg11: memref<144x16xbf16, #tpu.memory_space<vmem>>, %arg12: memref<256x16xbf16, #tpu.memory_space<vmem>>, %arg13: memref<1x16x256xf32, #tpu.memory_space<vmem>>, %arg14: memref<16x1024xbf16, #tpu.memory_space<vmem>>, %arg15: memref<16x1152xbf16, #tpu.memory_space<vmem>>, %arg16: memref<16x2048xbf16, #tpu.memory_space<vmem>>) attributes {dimension_semantics = [#tpu.dimension_semantics<parallel>], iteration_bounds = array<i64: 2>, scalar_prefetch = 0 : i64, scratch_operands = 3 : i64, tpu.core_type = #tpu.core_type<tc>, window_params = [{transform_indices = @transform_0, window_bounds = array<i64: 1, 64, 48>}, {pipeline_mode = #tpu.pipeline_mode<synchronous>, transform_indices = @transform_1, window_bounds = array<i64: 48, 64>}, {pipeline_mode = #tpu.pipeline_mode<synchronous>, transform_indices = @transform_2, window_bounds = array<i64: 1024, 128>}, {pipeline_mode = #tpu.pipeline_mode<synchronous>, transform_indices = @transform_3, window_bounds = array<i64: 1152, 128>}, {pipeline_mode = #tpu.pipeline_mode<synchronous>, transform_indices = @transform_4, window_bounds = array<i64: 2048, 256>}, {pipeline_mode = #tpu.pipeline_mode<synchronous>, transform_indices = @transform_5, window_bounds = array<i64: 1, 128>}, {pipeline_mode = #tpu.pipeline_mode<synchronous>, transform_indices = @transform_6, window_bounds = array<i64: 1, 128>}, {pipeline_mode = #tpu.pipeline_mode<synchronous>, transform_indices = @transform_7, window_bounds = array<i64: 1, 128>}, {pipeline_mode = #tpu.pipeline_mode<synchronous>, transform_indices = @transform_8, window_bounds = array<i64: 1, 128>}, {pipeline_mode = #tpu.pipeline_mode<synchronous>, transform_indices = @transform_9, window_bounds = array<i64: 256, 64>}, {pipeline_mode = #tpu.pipeline_mode<synchronous>, transform_indices = @transform_10, window_bounds = array<i64: 144, 16>}, {pipeline_mode = #tpu.pipeline_mode<synchronous>, transform_indices = @transform_11, window_bounds = array<i64: 256, 16>}, {transform_indices = @transform_12, window_bounds = array<i64: 1, 16, 256>}]} {
    %c0 = arith.constant 0 : index
    %c0_0 = arith.constant 0 : index
    %c0_1 = arith.constant 0 : index
    %0 = vector.load %arg1[%c0, %c0_0, %c0_1] : memref<1x64x48xbf16, #tpu.memory_space<vmem>>, vector<1x64x48xbf16>
    %1 = vector.shape_cast %0 : vector<1x64x48xbf16> to vector<64x48xbf16>
    %c0_2 = arith.constant 0 : index
    %c0_3 = arith.constant 0 : index
    %2 = vector.load %arg2[%c0_2, %c0_3] : memref<48x64xbf16, #tpu.memory_space<vmem>>, vector<48x64xbf16>
    %cst = arith.constant dense<0.000000e+00> : vector<64x64xf32>
    %3 = tpu.matmul %1, %2, %cst {dimension_numbers = #tpu.dot_dimension_numbers<[1], [0], [0], [1], [0, 0, 1, 1], [], []>} : vector<64x48xbf16>, vector<48x64xbf16>, vector<64x64xf32> -> vector<64x64xf32>
    %cst_4 = arith.constant 0.000000e+00 : f32
    %4 = vector.broadcast %cst_4 : f32 to vector<64x64xf32>
    %5 = arith.cmpf oge, %3, %4 : vector<64x64xf32>
    %cst_5 = arith.constant 2.000000e-01 : f32
    %6 = vector.broadcast %cst_5 : f32 to vector<64x64xf32>
    %7 = arith.mulf %6, %3 : vector<64x64xf32>
    %8 = arith.select %5, %3, %7 : vector<64x64xi1>, vector<64x64xf32>
    %9 = arith.truncf %8 : vector<64x64xf32> to vector<64x64xbf16>
    %c0_6 = arith.constant 0 : index
    %c0_7 = arith.constant 0 : index
    %10 = vector.load %arg10[%c0_6, %c0_7] : memref<256x64xbf16, #tpu.memory_space<vmem>>, vector<256x64xbf16>
    %cst_8 = arith.constant dense<0.000000e+00> : vector<256x64xf32>
    %11 = tpu.matmul %10, %9, %cst_8 {dimension_numbers = #tpu.dot_dimension_numbers<[1], [0], [0], [1], [0, 0, 1, 1], [], []>} : vector<256x64xbf16>, vector<64x64xbf16>, vector<256x64xf32> -> vector<256x64xf32>
    %12 = arith.truncf %11 : vector<256x64xf32> to vector<256x64xbf16>
    %13 = vector.extract_strided_slice %12 {offsets = [0, 0], sizes = [16, 64], strides = [1, 1]} : vector<256x64xbf16> to vector<16x64xbf16>
    %c0_9 = arith.constant 0 : index
    %c0_10 = arith.constant 0 : index
    %14 = vector.load %arg14[%c0_9, %c0_10] : memref<16x1024xbf16, #tpu.memory_space<vmem>>, vector<16x64xbf16>
    tpu.vector_store %arg14[%c0_9, %c0_10], %13 {strides = array<i32>} : memref<16x1024xbf16, #tpu.memory_space<vmem>>, vector<16x64xbf16>,
    %15 = vector.extract_strided_slice %12 {offsets = [16, 0], sizes = [16, 64], strides = [1, 1]} : vector<256x64xbf16> to vector<16x64xbf16>
    %c0_11 = arith.constant 0 : index
    %c64 = arith.constant 64 : index
    %16 = vector.load %arg14[%c0_11, %c64] : memref<16x1024xbf16, #tpu.memory_space<vmem>>, vector<16x64xbf16>
    tpu.vector_store %arg14[%c0_11, %c64], %15 {strides = array<i32>} : memref<16x1024xbf16, #tpu.memory_space<vmem>>, vector<16x64xbf16>,
    %17 = vector.extract_strided_slice %12 {offsets = [32, 0], sizes = [16, 64], strides = [1, 1]} : vector<256x64xbf16> to vector<16x64xbf16>
    %c0_12 = arith.constant 0 : index
    %c128 = arith.constant 128 : index
    %18 = vector.load %arg14[%c0_12, %c128] : memref<16x1024xbf16, #tpu.memory_space<vmem>>, vector<16x64xbf16>
    tpu.vector_store %arg14[%c0_12, %c128], %17 {strides = array<i32>} : memref<16x1024xbf16, #tpu.memory_space<vmem>>, vector<16x64xbf16>,
    %19 = vector.extract_strided_slice %12 {offsets = [48, 0], sizes = [16, 64], strides = [1, 1]} : vector<256x64xbf16> to vector<16x64xbf16>
    %c0_13 = arith.constant 0 : index
    %c192 = arith.constant 192 : index
    %20 = vector.load %arg14[%c0_13, %c192] : memref<16x1024xbf16, #tpu.memory_space<vmem>>, vector<16x64xbf16>
    tpu.vector_store %arg14[%c0_13, %c192], %19 {strides = array<i32>} : memref<16x1024xbf16, #tpu.memory_space<vmem>>, vector<16x64xbf16>,
    %21 = vector.extract_strided_slice %12 {offsets = [64, 0], sizes = [16, 64], strides = [1, 1]} : vector<256x64xbf16> to vector<16x64xbf16>
    %c0_14 = arith.constant 0 : index
    %c256 = arith.constant 256 : index
    %22 = vector.load %arg14[%c0_14, %c256] : memref<16x1024xbf16, #tpu.memory_space<vmem>>, vector<16x64xbf16>
    tpu.vector_store %arg14[%c0_14, %c256], %21 {strides = array<i32>} : memref<16x1024xbf16, #tpu.memory_space<vmem>>, vector<16x64xbf16>,
    %23 = vector.extract_strided_slice %12 {offsets = [80, 0], sizes = [16, 64], strides = [1, 1]} : vector<256x64xbf16> to vector<16x64xbf16>
    %c0_15 = arith.constant 0 : index
    %c320 = arith.constant 320 : index
    %24 = vector.load %arg14[%c0_15, %c320] : memref<16x1024xbf16, #tpu.memory_space<vmem>>, vector<16x64xbf16>
    tpu.vector_store %arg14[%c0_15, %c320], %23 {strides = array<i32>} : memref<16x1024xbf16, #tpu.memory_space<vmem>>, vector<16x64xbf16>,
    %25 = vector.extract_strided_slice %12 {offsets = [96, 0], sizes = [16, 64], strides = [1, 1]} : vector<256x64xbf16> to vector<16x64xbf16>
    %c0_16 = arith.constant 0 : index
    %c384 = arith.constant 384 : index
    %26 = vector.load %arg14[%c0_16, %c384] : memref<16x1024xbf16, #tpu.memory_space<vmem>>, vector<16x64xbf16>
    tpu.vector_store %arg14[%c0_16, %c384], %25 {strides = array<i32>} : memref<16x1024xbf16, #tpu.memory_space<vmem>>, vector<16x64xbf16>,
    %27 = vector.extract_strided_slice %12 {offsets = [112, 0], sizes = [16, 64], strides = [1, 1]} : vector<256x64xbf16> to vector<16x64xbf16>
    %c0_17 = arith.constant 0 : index
    %c448 = arith.constant 448 : index
    %28 = vector.load %arg14[%c0_17, %c448] : memref<16x1024xbf16, #tpu.memory_space<vmem>>, vector<16x64xbf16>
    tpu.vector_store %arg14[%c0_17, %c448], %27 {strides = array<i32>} : memref<16x1024xbf16, #tpu.memory_space<vmem>>, vector<16x64xbf16>,
    %29 = vector.extract_strided_slice %12 {offsets = [128, 0], sizes = [16, 64], strides = [1, 1]} : vector<256x64xbf16> to vector<16x64xbf16>
    %c0_18 = arith.constant 0 : index
    %c512 = arith.constant 512 : index
    %30 = vector.load %arg14[%c0_18, %c512] : memref<16x1024xbf16, #tpu.memory_space<vmem>>, vector<16x64xbf16>
    tpu.vector_store %arg14[%c0_18, %c512], %29 {strides = array<i32>} : memref<16x1024xbf16, #tpu.memory_space<vmem>>, vector<16x64xbf16>,
    %31 = vector.extract_strided_slice %12 {offsets = [144, 0], sizes = [16, 64], strides = [1, 1]} : vector<256x64xbf16> to vector<16x64xbf16>
    %c0_19 = arith.constant 0 : index
    %c576 = arith.constant 576 : index
    %32 = vector.load %arg14[%c0_19, %c576] : memref<16x1024xbf16, #tpu.memory_space<vmem>>, vector<16x64xbf16>
    tpu.vector_store %arg14[%c0_19, %c576], %31 {strides = array<i32>} : memref<16x1024xbf16, #tpu.memory_space<vmem>>, vector<16x64xbf16>,
    %33 = vector.extract_strided_slice %12 {offsets = [160, 0], sizes = [16, 64], strides = [1, 1]} : vector<256x64xbf16> to vector<16x64xbf16>
    %c0_20 = arith.constant 0 : index
    %c640 = arith.constant 640 : index
    %34 = vector.load %arg14[%c0_20, %c640] : memref<16x1024xbf16, #tpu.memory_space<vmem>>, vector<16x64xbf16>
    tpu.vector_store %arg14[%c0_20, %c640], %33 {strides = array<i32>} : memref<16x1024xbf16, #tpu.memory_space<vmem>>, vector<16x64xbf16>,
    %35 = vector.extract_strided_slice %12 {offsets = [176, 0], sizes = [16, 64], strides = [1, 1]} : vector<256x64xbf16> to vector<16x64xbf16>
    %c0_21 = arith.constant 0 : index
    %c704 = arith.constant 704 : index
    %36 = vector.load %arg14[%c0_21, %c704] : memref<16x1024xbf16, #tpu.memory_space<vmem>>, vector<16x64xbf16>
    tpu.vector_store %arg14[%c0_21, %c704], %35 {strides = array<i32>} : memref<16x1024xbf16, #tpu.memory_space<vmem>>, vector<16x64xbf16>,
    %37 = vector.extract_strided_slice %12 {offsets = [192, 0], sizes = [16, 64], strides = [1, 1]} : vector<256x64xbf16> to vector<16x64xbf16>
    %c0_22 = arith.constant 0 : index
    %c768 = arith.constant 768 : index
    %38 = vector.load %arg14[%c0_22, %c768] : memref<16x1024xbf16, #tpu.memory_space<vmem>>, vector<16x64xbf16>
    tpu.vector_store %arg14[%c0_22, %c768], %37 {strides = array<i32>} : memref<16x1024xbf16, #tpu.memory_space<vmem>>, vector<16x64xbf16>,
    %39 = vector.extract_strided_slice %12 {offsets = [208, 0], sizes = [16, 64], strides = [1, 1]} : vector<256x64xbf16> to vector<16x64xbf16>
    %c0_23 = arith.constant 0 : index
    %c832 = arith.constant 832 : index
    %40 = vector.load %arg14[%c0_23, %c832] : memref<16x1024xbf16, #tpu.memory_space<vmem>>, vector<16x64xbf16>
    tpu.vector_store %arg14[%c0_23, %c832], %39 {strides = array<i32>} : memref<16x1024xbf16, #tpu.memory_space<vmem>>, vector<16x64xbf16>,
    %41 = vector.extract_strided_slice %12 {offsets = [224, 0], sizes = [16, 64], strides = [1, 1]} : vector<256x64xbf16> to vector<16x64xbf16>
    %c0_24 = arith.constant 0 : index
    %c896 = arith.constant 896 : index
    %42 = vector.load %arg14[%c0_24, %c896] : memref<16x1024xbf16, #tpu.memory_space<vmem>>, vector<16x64xbf16>
    tpu.vector_store %arg14[%c0_24, %c896], %41 {strides = array<i32>} : memref<16x1024xbf16, #tpu.memory_space<vmem>>, vector<16x64xbf16>,
    %43 = vector.extract_strided_slice %12 {offsets = [240, 0], sizes = [16, 64], strides = [1, 1]} : vector<256x64xbf16> to vector<16x64xbf16>
    %c0_25 = arith.constant 0 : index
    %c960 = arith.constant 960 : index
    %44 = vector.load %arg14[%c0_25, %c960] : memref<16x1024xbf16, #tpu.memory_space<vmem>>, vector<16x64xbf16>
    tpu.vector_store %arg14[%c0_25, %c960], %43 {strides = array<i32>} : memref<16x1024xbf16, #tpu.memory_space<vmem>>, vector<16x64xbf16>,
    %c0_26 = arith.constant 0 : index
    %c0_27 = arith.constant 0 : index
    %45 = vector.load %arg14[%c0_26, %c0_27] : memref<16x1024xbf16, #tpu.memory_space<vmem>>, vector<16x1024xbf16>
    %c0_28 = arith.constant 0 : index
    %c0_29 = arith.constant 0 : index
    %46 = vector.load %arg3[%c0_28, %c0_29] : memref<1024x128xbf16, #tpu.memory_space<vmem>>, vector<1024x128xbf16>
    %cst_30 = arith.constant dense<0.000000e+00> : vector<16x128xf32>
    %47 = tpu.matmul %45, %46, %cst_30 {dimension_numbers = #tpu.dot_dimension_numbers<[1], [0], [0], [1], [0, 0, 1, 1], [], []>} : vector<16x1024xbf16>, vector<1024x128xbf16>, vector<16x128xf32> -> vector<16x128xf32>
    %c0_31 = arith.constant 0 : index
    %c0_32 = arith.constant 0 : index
    %48 = vector.load %arg6[%c0_31, %c0_32] : memref<1x128xf32, #tpu.memory_space<vmem>>, vector<1x128xf32>
    %49 = vector.broadcast %48 : vector<1x128xf32> to vector<16x128xf32>
    %50 = arith.mulf %47, %49 : vector<16x128xf32>
    %c0_33 = arith.constant 0 : index
    %c0_34 = arith.constant 0 : index
    %51 = vector.load %arg7[%c0_33, %c0_34] : memref<1x128xf32, #tpu.memory_space<vmem>>, vector<1x128xf32>
    %52 = vector.broadcast %51 : vector<1x128xf32> to vector<16x128xf32>
    %53 = arith.addf %50, %52 : vector<16x128xf32>
    %cst_35 = arith.constant 0.000000e+00 : f32
    %54 = vector.broadcast %cst_35 : f32 to vector<16x128xf32>
    %55 = arith.cmpf oge, %53, %54 : vector<16x128xf32>
    %cst_36 = arith.constant 2.000000e-01 : f32
    %56 = vector.broadcast %cst_36 : f32 to vector<16x128xf32>
    %57 = arith.mulf %56, %53 : vector<16x128xf32>
    %58 = arith.select %55, %53, %57 : vector<16x128xi1>, vector<16x128xf32>
    %59 = arith.truncf %58 : vector<16x128xf32> to vector<16x128xbf16>
    %c0_37 = arith.constant 0 : index
    %c0_38 = arith.constant 0 : index
    %60 = vector.load %arg11[%c0_37, %c0_38] : memref<144x16xbf16, #tpu.memory_space<vmem>>, vector<144x16xbf16>
    %cst_39 = arith.constant dense<0.000000e+00> : vector<144x128xf32>
    %61 = tpu.matmul %60, %59, %cst_39 {dimension_numbers = #tpu.dot_dimension_numbers<[1], [0], [0], [1], [0, 0, 1, 1], [], []>} : vector<144x16xbf16>, vector<16x128xbf16>, vector<144x128xf32> -> vector<144x128xf32>
    %62 = arith.truncf %61 : vector<144x128xf32> to vector<144x128xbf16>
    %63 = vector.extract_strided_slice %62 {offsets = [0, 0], sizes = [16, 128], strides = [1, 1]} : vector<144x128xbf16> to vector<16x128xbf16>
    %c0_40 = arith.constant 0 : index
    %c0_41 = arith.constant 0 : index
    %64 = vector.load %arg15[%c0_40, %c0_41] : memref<16x1152xbf16, #tpu.memory_space<vmem>>, vector<16x128xbf16>
    tpu.vector_store %arg15[%c0_40, %c0_41], %63 {strides = array<i32>} : memref<16x1152xbf16, #tpu.memory_space<vmem>>, vector<16x128xbf16>,
    %65 = vector.extract_strided_slice %62 {offsets = [16, 0], sizes = [16, 128], strides = [1, 1]} : vector<144x128xbf16> to vector<16x128xbf16>
    %c0_42 = arith.constant 0 : index
    %c128_43 = arith.constant 128 : index
    %66 = vector.load %arg15[%c0_42, %c128_43] : memref<16x1152xbf16, #tpu.memory_space<vmem>>, vector<16x128xbf16>
    tpu.vector_store %arg15[%c0_42, %c128_43], %65 {strides = array<i32>} : memref<16x1152xbf16, #tpu.memory_space<vmem>>, vector<16x128xbf16>,
    %67 = vector.extract_strided_slice %62 {offsets = [32, 0], sizes = [16, 128], strides = [1, 1]} : vector<144x128xbf16> to vector<16x128xbf16>
    %c0_44 = arith.constant 0 : index
    %c256_45 = arith.constant 256 : index
    %68 = vector.load %arg15[%c0_44, %c256_45] : memref<16x1152xbf16, #tpu.memory_space<vmem>>, vector<16x128xbf16>
    tpu.vector_store %arg15[%c0_44, %c256_45], %67 {strides = array<i32>} : memref<16x1152xbf16, #tpu.memory_space<vmem>>, vector<16x128xbf16>,
    %69 = vector.extract_strided_slice %62 {offsets = [48, 0], sizes = [16, 128], strides = [1, 1]} : vector<144x128xbf16> to vector<16x128xbf16>
    %c0_46 = arith.constant 0 : index
    %c384_47 = arith.constant 384 : index
    %70 = vector.load %arg15[%c0_46, %c384_47] : memref<16x1152xbf16, #tpu.memory_space<vmem>>, vector<16x128xbf16>
    tpu.vector_store %arg15[%c0_46, %c384_47], %69 {strides = array<i32>} : memref<16x1152xbf16, #tpu.memory_space<vmem>>, vector<16x128xbf16>,
    %71 = vector.extract_strided_slice %62 {offsets = [64, 0], sizes = [16, 128], strides = [1, 1]} : vector<144x128xbf16> to vector<16x128xbf16>
    %c0_48 = arith.constant 0 : index
    %c512_49 = arith.constant 512 : index
    %72 = vector.load %arg15[%c0_48, %c512_49] : memref<16x1152xbf16, #tpu.memory_space<vmem>>, vector<16x128xbf16>
    tpu.vector_store %arg15[%c0_48, %c512_49], %71 {strides = array<i32>} : memref<16x1152xbf16, #tpu.memory_space<vmem>>, vector<16x128xbf16>,
    %73 = vector.extract_strided_slice %62 {offsets = [80, 0], sizes = [16, 128], strides = [1, 1]} : vector<144x128xbf16> to vector<16x128xbf16>
    %c0_50 = arith.constant 0 : index
    %c640_51 = arith.constant 640 : index
    %74 = vector.load %arg15[%c0_50, %c640_51] : memref<16x1152xbf16, #tpu.memory_space<vmem>>, vector<16x128xbf16>
    tpu.vector_store %arg15[%c0_50, %c640_51], %73 {strides = array<i32>} : memref<16x1152xbf16, #tpu.memory_space<vmem>>, vector<16x128xbf16>,
    %75 = vector.extract_strided_slice %62 {offsets = [96, 0], sizes = [16, 128], strides = [1, 1]} : vector<144x128xbf16> to vector<16x128xbf16>
    %c0_52 = arith.constant 0 : index
    %c768_53 = arith.constant 768 : index
    %76 = vector.load %arg15[%c0_52, %c768_53] : memref<16x1152xbf16, #tpu.memory_space<vmem>>, vector<16x128xbf16>
    tpu.vector_store %arg15[%c0_52, %c768_53], %75 {strides = array<i32>} : memref<16x1152xbf16, #tpu.memory_space<vmem>>, vector<16x128xbf16>,
    %77 = vector.extract_strided_slice %62 {offsets = [112, 0], sizes = [16, 128], strides = [1, 1]} : vector<144x128xbf16> to vector<16x128xbf16>
    %c0_54 = arith.constant 0 : index
    %c896_55 = arith.constant 896 : index
    %78 = vector.load %arg15[%c0_54, %c896_55] : memref<16x1152xbf16, #tpu.memory_space<vmem>>, vector<16x128xbf16>
    tpu.vector_store %arg15[%c0_54, %c896_55], %77 {strides = array<i32>} : memref<16x1152xbf16, #tpu.memory_space<vmem>>, vector<16x128xbf16>,
    %79 = vector.extract_strided_slice %62 {offsets = [128, 0], sizes = [16, 128], strides = [1, 1]} : vector<144x128xbf16> to vector<16x128xbf16>
    %c0_56 = arith.constant 0 : index
    %c1024 = arith.constant 1024 : index
    %80 = vector.load %arg15[%c0_56, %c1024] : memref<16x1152xbf16, #tpu.memory_space<vmem>>, vector<16x128xbf16>
    tpu.vector_store %arg15[%c0_56, %c1024], %79 {strides = array<i32>} : memref<16x1152xbf16, #tpu.memory_space<vmem>>, vector<16x128xbf16>,
    %c0_57 = arith.constant 0 : index
    %c0_58 = arith.constant 0 : index
    %81 = vector.load %arg15[%c0_57, %c0_58] : memref<16x1152xbf16, #tpu.memory_space<vmem>>, vector<16x1152xbf16>
    %c0_59 = arith.constant 0 : index
    %c0_60 = arith.constant 0 : index
    %82 = vector.load %arg4[%c0_59, %c0_60] : memref<1152x128xbf16, #tpu.memory_space<vmem>>, vector<1152x128xbf16>
    %cst_61 = arith.constant dense<0.000000e+00> : vector<16x128xf32>
    %83 = tpu.matmul %81, %82, %cst_61 {dimension_numbers = #tpu.dot_dimension_numbers<[1], [0], [0], [1], [0, 0, 1, 1], [], []>} : vector<16x1152xbf16>, vector<1152x128xbf16>, vector<16x128xf32> -> vector<16x128xf32>
    %c0_62 = arith.constant 0 : index
    %c0_63 = arith.constant 0 : index
    %84 = vector.load %arg8[%c0_62, %c0_63] : memref<1x128xf32, #tpu.memory_space<vmem>>, vector<1x128xf32>
    %85 = vector.broadcast %84 : vector<1x128xf32> to vector<16x128xf32>
    %86 = arith.mulf %83, %85 : vector<16x128xf32>
    %c0_64 = arith.constant 0 : index
    %c0_65 = arith.constant 0 : index
    %87 = vector.load %arg9[%c0_64, %c0_65] : memref<1x128xf32, #tpu.memory_space<vmem>>, vector<1x128xf32>
    %88 = vector.broadcast %87 : vector<1x128xf32> to vector<16x128xf32>
    %89 = arith.addf %86, %88 : vector<16x128xf32>
    %cst_66 = arith.constant 0.000000e+00 : f32
    %90 = vector.broadcast %cst_66 : f32 to vector<16x128xf32>
    %91 = arith.cmpf oge, %89, %90 : vector<16x128xf32>
    %cst_67 = arith.constant 2.000000e-01 : f32
    %92 = vector.broadcast %cst_67 : f32 to vector<16x128xf32>
    %93 = arith.mulf %92, %89 : vector<16x128xf32>
    %94 = arith.select %91, %89, %93 : vector<16x128xi1>, vector<16x128xf32>
    %95 = arith.truncf %94 : vector<16x128xf32> to vector<16x128xbf16>
    %c0_68 = arith.constant 0 : index
    %c0_69 = arith.constant 0 : index
    %96 = vector.load %arg12[%c0_68, %c0_69] : memref<256x16xbf16, #tpu.memory_space<vmem>>, vector<256x16xbf16>
    %cst_70 = arith.constant dense<0.000000e+00> : vector<256x128xf32>
    %97 = tpu.matmul %96, %95, %cst_70 {dimension_numbers = #tpu.dot_dimension_numbers<[1], [0], [0], [1], [0, 0, 1, 1], [], []>} : vector<256x16xbf16>, vector<16x128xbf16>, vector<256x128xf32> -> vector<256x128xf32>
    %98 = arith.truncf %97 : vector<256x128xf32> to vector<256x128xbf16>
    %99 = vector.extract_strided_slice %98 {offsets = [0, 0], sizes = [16, 128], strides = [1, 1]} : vector<256x128xbf16> to vector<16x128xbf16>
    %c0_71 = arith.constant 0 : index
    %c0_72 = arith.constant 0 : index
    %100 = vector.load %arg16[%c0_71, %c0_72] : memref<16x2048xbf16, #tpu.memory_space<vmem>>, vector<16x128xbf16>
    tpu.vector_store %arg16[%c0_71, %c0_72], %99 {strides = array<i32>} : memref<16x2048xbf16, #tpu.memory_space<vmem>>, vector<16x128xbf16>,
    %101 = vector.extract_strided_slice %98 {offsets = [16, 0], sizes = [16, 128], strides = [1, 1]} : vector<256x128xbf16> to vector<16x128xbf16>
    %c0_73 = arith.constant 0 : index
    %c128_74 = arith.constant 128 : index
    %102 = vector.load %arg16[%c0_73, %c128_74] : memref<16x2048xbf16, #tpu.memory_space<vmem>>, vector<16x128xbf16>
    tpu.vector_store %arg16[%c0_73, %c128_74], %101 {strides = array<i32>} : memref<16x2048xbf16, #tpu.memory_space<vmem>>, vector<16x128xbf16>,
    %103 = vector.extract_strided_slice %98 {offsets = [32, 0], sizes = [16, 128], strides = [1, 1]} : vector<256x128xbf16> to vector<16x128xbf16>
    %c0_75 = arith.constant 0 : index
    %c256_76 = arith.constant 256 : index
    %104 = vector.load %arg16[%c0_75, %c256_76] : memref<16x2048xbf16, #tpu.memory_space<vmem>>, vector<16x128xbf16>
    tpu.vector_store %arg16[%c0_75, %c256_76], %103 {strides = array<i32>} : memref<16x2048xbf16, #tpu.memory_space<vmem>>, vector<16x128xbf16>,
    %105 = vector.extract_strided_slice %98 {offsets = [48, 0], sizes = [16, 128], strides = [1, 1]} : vector<256x128xbf16> to vector<16x128xbf16>
    %c0_77 = arith.constant 0 : index
    %c384_78 = arith.constant 384 : index
    %106 = vector.load %arg16[%c0_77, %c384_78] : memref<16x2048xbf16, #tpu.memory_space<vmem>>, vector<16x128xbf16>
    tpu.vector_store %arg16[%c0_77, %c384_78], %105 {strides = array<i32>} : memref<16x2048xbf16, #tpu.memory_space<vmem>>, vector<16x128xbf16>,
    %107 = vector.extract_strided_slice %98 {offsets = [64, 0], sizes = [16, 128], strides = [1, 1]} : vector<256x128xbf16> to vector<16x128xbf16>
    %c0_79 = arith.constant 0 : index
    %c512_80 = arith.constant 512 : index
    %108 = vector.load %arg16[%c0_79, %c512_80] : memref<16x2048xbf16, #tpu.memory_space<vmem>>, vector<16x128xbf16>
    tpu.vector_store %arg16[%c0_79, %c512_80], %107 {strides = array<i32>} : memref<16x2048xbf16, #tpu.memory_space<vmem>>, vector<16x128xbf16>,
    %109 = vector.extract_strided_slice %98 {offsets = [80, 0], sizes = [16, 128], strides = [1, 1]} : vector<256x128xbf16> to vector<16x128xbf16>
    %c0_81 = arith.constant 0 : index
    %c640_82 = arith.constant 640 : index
    %110 = vector.load %arg16[%c0_81, %c640_82] : memref<16x2048xbf16, #tpu.memory_space<vmem>>, vector<16x128xbf16>
    tpu.vector_store %arg16[%c0_81, %c640_82], %109 {strides = array<i32>} : memref<16x2048xbf16, #tpu.memory_space<vmem>>, vector<16x128xbf16>,
    %111 = vector.extract_strided_slice %98 {offsets = [96, 0], sizes = [16, 128], strides = [1, 1]} : vector<256x128xbf16> to vector<16x128xbf16>
    %c0_83 = arith.constant 0 : index
    %c768_84 = arith.constant 768 : index
    %112 = vector.load %arg16[%c0_83, %c768_84] : memref<16x2048xbf16, #tpu.memory_space<vmem>>, vector<16x128xbf16>
    tpu.vector_store %arg16[%c0_83, %c768_84], %111 {strides = array<i32>} : memref<16x2048xbf16, #tpu.memory_space<vmem>>, vector<16x128xbf16>,
    %113 = vector.extract_strided_slice %98 {offsets = [112, 0], sizes = [16, 128], strides = [1, 1]} : vector<256x128xbf16> to vector<16x128xbf16>
    %c0_85 = arith.constant 0 : index
    %c896_86 = arith.constant 896 : index
    %114 = vector.load %arg16[%c0_85, %c896_86] : memref<16x2048xbf16, #tpu.memory_space<vmem>>, vector<16x128xbf16>
    tpu.vector_store %arg16[%c0_85, %c896_86], %113 {strides = array<i32>} : memref<16x2048xbf16, #tpu.memory_space<vmem>>, vector<16x128xbf16>,
    %115 = vector.extract_strided_slice %98 {offsets = [128, 0], sizes = [16, 128], strides = [1, 1]} : vector<256x128xbf16> to vector<16x128xbf16>
    %c0_87 = arith.constant 0 : index
    %c1024_88 = arith.constant 1024 : index
    %116 = vector.load %arg16[%c0_87, %c1024_88] : memref<16x2048xbf16, #tpu.memory_space<vmem>>, vector<16x128xbf16>
    tpu.vector_store %arg16[%c0_87, %c1024_88], %115 {strides = array<i32>} : memref<16x2048xbf16, #tpu.memory_space<vmem>>, vector<16x128xbf16>,
    %117 = vector.extract_strided_slice %98 {offsets = [144, 0], sizes = [16, 128], strides = [1, 1]} : vector<256x128xbf16> to vector<16x128xbf16>
    %c0_89 = arith.constant 0 : index
    %c1152 = arith.constant 1152 : index
    %118 = vector.load %arg16[%c0_89, %c1152] : memref<16x2048xbf16, #tpu.memory_space<vmem>>, vector<16x128xbf16>
    tpu.vector_store %arg16[%c0_89, %c1152], %117 {strides = array<i32>} : memref<16x2048xbf16, #tpu.memory_space<vmem>>, vector<16x128xbf16>,
    %119 = vector.extract_strided_slice %98 {offsets = [160, 0], sizes = [16, 128], strides = [1, 1]} : vector<256x128xbf16> to vector<16x128xbf16>
    %c0_90 = arith.constant 0 : index
    %c1280 = arith.constant 1280 : index
    %120 = vector.load %arg16[%c0_90, %c1280] : memref<16x2048xbf16, #tpu.memory_space<vmem>>, vector<16x128xbf16>
    tpu.vector_store %arg16[%c0_90, %c1280], %119 {strides = array<i32>} : memref<16x2048xbf16, #tpu.memory_space<vmem>>, vector<16x128xbf16>,
    %121 = vector.extract_strided_slice %98 {offsets = [176, 0], sizes = [16, 128], strides = [1, 1]} : vector<256x128xbf16> to vector<16x128xbf16>
    %c0_91 = arith.constant 0 : index
    %c1408 = arith.constant 1408 : index
    %122 = vector.load %arg16[%c0_91, %c1408] : memref<16x2048xbf16, #tpu.memory_space<vmem>>, vector<16x128xbf16>
    tpu.vector_store %arg16[%c0_91, %c1408], %121 {strides = array<i32>} : memref<16x2048xbf16, #tpu.memory_space<vmem>>, vector<16x128xbf16>,
    %123 = vector.extract_strided_slice %98 {offsets = [192, 0], sizes = [16, 128], strides = [1, 1]} : vector<256x128xbf16> to vector<16x128xbf16>
    %c0_92 = arith.constant 0 : index
    %c1536 = arith.constant 1536 : index
    %124 = vector.load %arg16[%c0_92, %c1536] : memref<16x2048xbf16, #tpu.memory_space<vmem>>, vector<16x128xbf16>
    tpu.vector_store %arg16[%c0_92, %c1536], %123 {strides = array<i32>} : memref<16x2048xbf16, #tpu.memory_space<vmem>>, vector<16x128xbf16>,
    %125 = vector.extract_strided_slice %98 {offsets = [208, 0], sizes = [16, 128], strides = [1, 1]} : vector<256x128xbf16> to vector<16x128xbf16>
    %c0_93 = arith.constant 0 : index
    %c1664 = arith.constant 1664 : index
    %126 = vector.load %arg16[%c0_93, %c1664] : memref<16x2048xbf16, #tpu.memory_space<vmem>>, vector<16x128xbf16>
    tpu.vector_store %arg16[%c0_93, %c1664], %125 {strides = array<i32>} : memref<16x2048xbf16, #tpu.memory_space<vmem>>, vector<16x128xbf16>,
    %127 = vector.extract_strided_slice %98 {offsets = [224, 0], sizes = [16, 128], strides = [1, 1]} : vector<256x128xbf16> to vector<16x128xbf16>
    %c0_94 = arith.constant 0 : index
    %c1792 = arith.constant 1792 : index
    %128 = vector.load %arg16[%c0_94, %c1792] : memref<16x2048xbf16, #tpu.memory_space<vmem>>, vector<16x128xbf16>
    tpu.vector_store %arg16[%c0_94, %c1792], %127 {strides = array<i32>} : memref<16x2048xbf16, #tpu.memory_space<vmem>>, vector<16x128xbf16>,
    %129 = vector.extract_strided_slice %98 {offsets = [240, 0], sizes = [16, 128], strides = [1, 1]} : vector<256x128xbf16> to vector<16x128xbf16>
    %c0_95 = arith.constant 0 : index
    %c1920 = arith.constant 1920 : index
    %130 = vector.load %arg16[%c0_95, %c1920] : memref<16x2048xbf16, #tpu.memory_space<vmem>>, vector<16x128xbf16>
    tpu.vector_store %arg16[%c0_95, %c1920], %129 {strides = array<i32>} : memref<16x2048xbf16, #tpu.memory_space<vmem>>, vector<16x128xbf16>,
    %c0_96 = arith.constant 0 : index
    %c0_97 = arith.constant 0 : index
    %131 = vector.load %arg16[%c0_96, %c0_97] : memref<16x2048xbf16, #tpu.memory_space<vmem>>, vector<16x2048xbf16>
    %c0_98 = arith.constant 0 : index
    %c0_99 = arith.constant 0 : index
    %132 = vector.load %arg5[%c0_98, %c0_99] : memref<2048x256xbf16, #tpu.memory_space<vmem>>, vector<2048x256xbf16>
    %cst_100 = arith.constant dense<0.000000e+00> : vector<16x256xf32>
    %133 = tpu.matmul %131, %132, %cst_100 {dimension_numbers = #tpu.dot_dimension_numbers<[1], [0], [0], [1], [0, 0, 1, 1], [], []>} : vector<16x2048xbf16>, vector<2048x256xbf16>, vector<16x256xf32> -> vector<16x256xf32>
    %134 = math.tanh %133 : vector<16x256xf32>
    %135 = vector.shape_cast %134 : vector<16x256xf32> to vector<1x16x256xf32>
    %c0_101 = arith.constant 0 : index
    %c0_102 = arith.constant 0 : index
    %c0_103 = arith.constant 0 : index
    %136 = vector.load %arg13[%c0_101, %c0_102, %c0_103] : memref<1x16x256xf32, #tpu.memory_space<vmem>>, vector<1x16x256xf32>
    tpu.vector_store %arg13[%c0_101, %c0_102, %c0_103], %135 {strides = array<i32>} : memref<1x16x256xf32, #tpu.memory_space<vmem>>, vector<1x16x256xf32>,
    return
  }
  func.func @transform_0(%arg0: i32) -> (i32, i32, i32) {
    %c0_i32 = arith.constant 0 : i32
    %c0_i32_0 = arith.constant 0 : i32
    %c0_i32_1 = arith.constant 0 : i32
    return %arg0, %c0_i32, %c0_i32_0 : i32, i32, i32
  }
  func.func @transform_1(%arg0: i32) -> (i32, i32) {
    %c0_i32 = arith.constant 0 : i32
    %c0_i32_0 = arith.constant 0 : i32
    %c0_i32_1 = arith.constant 0 : i32
    return %c0_i32, %c0_i32_0 : i32, i32
  }
  func.func @transform_2(%arg0: i32) -> (i32, i32) {
    %c0_i32 = arith.constant 0 : i32
    %c0_i32_0 = arith.constant 0 : i32
    %c0_i32_1 = arith.constant 0 : i32
    return %c0_i32, %c0_i32_0 : i32, i32
  }
  func.func @transform_3(%arg0: i32) -> (i32, i32) {
    %c0_i32 = arith.constant 0 : i32
    %c0_i32_0 = arith.constant 0 : i32
    %c0_i32_1 = arith.constant 0 : i32
    return %c0_i32, %c0_i32_0 : i32, i32
  }
  func.func @transform_4(%arg0: i32) -> (i32, i32) {
    %c0_i32 = arith.constant 0 : i32
    %c0_i32_0 = arith.constant 0 : i32
    %c0_i32_1 = arith.constant 0 : i32
    return %c0_i32, %c0_i32_0 : i32, i32
  }
  func.func @transform_5(%arg0: i32) -> (i32, i32) {
    %c0_i32 = arith.constant 0 : i32
    %c0_i32_0 = arith.constant 0 : i32
    %c0_i32_1 = arith.constant 0 : i32
    return %c0_i32, %c0_i32_0 : i32, i32
  }
  func.func @transform_6(%arg0: i32) -> (i32, i32) {
    %c0_i32 = arith.constant 0 : i32
    %c0_i32_0 = arith.constant 0 : i32
    %c0_i32_1 = arith.constant 0 : i32
    return %c0_i32, %c0_i32_0 : i32, i32
  }
  func.func @transform_7(%arg0: i32) -> (i32, i32) {
    %c0_i32 = arith.constant 0 : i32
    %c0_i32_0 = arith.constant 0 : i32
    %c0_i32_1 = arith.constant 0 : i32
    return %c0_i32, %c0_i32_0 : i32, i32
  }
  func.func @transform_8(%arg0: i32) -> (i32, i32) {
    %c0_i32 = arith.constant 0 : i32
    %c0_i32_0 = arith.constant 0 : i32
    %c0_i32_1 = arith.constant 0 : i32
    return %c0_i32, %c0_i32_0 : i32, i32
  }
  func.func @transform_9(%arg0: i32) -> (i32, i32) {
    %c0_i32 = arith.constant 0 : i32
    %c0_i32_0 = arith.constant 0 : i32
    %c0_i32_1 = arith.constant 0 : i32
    return %c0_i32, %c0_i32_0 : i32, i32
  }
  func.func @transform_10(%arg0: i32) -> (i32, i32) {
    %c0_i32 = arith.constant 0 : i32
    %c0_i32_0 = arith.constant 0 : i32
    %c0_i32_1 = arith.constant 0 : i32
    return %c0_i32, %c0_i32_0 : i32, i32
  }
  func.func @transform_11(%arg0: i32) -> (i32, i32) {
    %c0_i32 = arith.constant 0 : i32
    %c0_i32_0 = arith.constant 0 : i32
    %c0_i32_1 = arith.constant 0 : i32
    return %c0_i32, %c0_i32_0 : i32, i32
  }
  func.func @transform_12(%arg0: i32) -> (i32, i32, i32) {
    %c0_i32 = arith.constant 0 : i32
    %c0_i32_0 = arith.constant 0 : i32
    %c0_i32_1 = arith.constant 0 : i32
    return %arg0, %c0_i32, %c0_i32_0 : i32, i32, i32
  }
}

</mosaic_0001>

<llo_original>
// kernel: E_forward.1
$region0: #{E_forward.1}
  #allocation0 [shape = 'u32[]', space=smem, size = 0x4, offset = 0x4, fixed_abs, tag = 'smem constant byte address 0x4 - core index']
  #allocation1 [shape = 'u32[144,128]{1,0:T(1,128)}', space=vmem, size = 0x12000, scoped, tag = 'internal scratch']
  #allocation2 [shape = 'bf16[16,1024]{1,0:T(8,128)(2,1)}', space=vmem, size = 0x8000, scoped, tag = 'scratch operand']
  #allocation3 [shape = 'bf16[16,1152]{1,0:T(8,128)(2,1)}', space=vmem, size = 0x9000, scoped, tag = 'scratch operand']
  #allocation4 [shape = 'bf16[16,2048]{1,0:T(8,128)(2,1)}', space=vmem, size = 0x10000, scoped, tag = 'scratch operand']
  %s0 = inlined_call_operand.vmem [shape: bf16[2,64,48], index: 0, kind: input, shape index: {}]
  %s1 = inlined_call_operand.vmem [shape: bf16[48,64], index: 1, kind: input, shape index: {}]
  %s2 = inlined_call_operand.vmem [shape: bf16[1024,128], index: 2, kind: input, shape index: {}]
  %s3 = inlined_call_operand.vmem [shape: bf16[1152,128], index: 3, kind: input, shape index: {}]
  %s4 = inlined_call_operand.vmem [shape: bf16[2048,256], index: 4, kind: input, shape index: {}]
  %s5 = inlined_call_operand.vmem [shape: f32[1,128], index: 5, kind: input, shape index: {}]
  %s6 = inlined_call_operand.vmem [shape: f32[1,128], index: 6, kind: input, shape index: {}]
  %s7 = inlined_call_operand.vmem [shape: f32[1,128], index: 7, kind: input, shape index: {}]
  %s8 = inlined_call_operand.vmem [shape: f32[1,128], index: 8, kind: input, shape index: {}]
  %s9 = inlined_call_operand.vmem [shape: bf16[256,64], index: 9, kind: input, shape index: {}]
  %s10 = inlined_call_operand.vmem [shape: bf16[144,16], index: 10, kind: input, shape index: {}]
  %s11 = inlined_call_operand.vmem [shape: bf16[256,16], index: 11, kind: input, shape index: {}]
  %s12 = inlined_call_operand.vmem [shape: f32[2,16,256], index: 12, kind: output, shape index: {}]
  %s13 = sld [smem:[#allocation0]]
  $region81: #{E_forward.1} parent=0
    _
  %s15 = ssub.s32 1, %s13
  %s16 = scalar_select 0, %s15, %s13
  loop: start=0, step=1, limit=4
  $region2: #{E_forward.1} parent=0 // loop_pre_header
    _
  $region3: #{E_forward.1} parent=0 // loop_header
    %s18 = sphi 0, %s22
    %p19 = scmp.ge.s32.totalorder %s18, 4
    %s28 = sphi 0, %s30
    %s31 = sphi 0, %s28
    %s32 = sphi 0, %s31
    %s48 = sphi 0, %s32
    %s52 = sphi 0, %s52
    %s54 = sphi 0, %s52
    %s55 = sphi 0, %s54
    %s69 = sphi 0, %s55
    %s73 = sphi 0, %s73
    %s75 = sphi 0, %s73
    %s76 = sphi 0, %s75
    %s90 = sphi 0, %s76
    %s94 = sphi 0, %s94
    %s96 = sphi 0, %s94
    %s97 = sphi 0, %s96
    %s111 = sphi 0, %s97
    %s115 = sphi 0, %s115
    %s117 = sphi 0, %s115
    %s118 = sphi 0, %s117
    %s132 = sphi 0, %s118
    %s136 = sphi 0, %s136
    %s138 = sphi 0, %s136
    %s139 = sphi 0, %s138
    %s153 = sphi 0, %s139
    %s157 = sphi 0, %s157
    %s159 = sphi 0, %s157
    %s160 = sphi 0, %s159
    %s174 = sphi 0, %s160
    %s178 = sphi 0, %s178
    %s180 = sphi 0, %s178
    %s181 = sphi 0, %s180
    %s195 = sphi 0, %s181
    %s199 = sphi 0, %s199
    %s201 = sphi 0, %s199
    %s202 = sphi 0, %s201
    %s216 = sphi 0, %s202
    %s220 = sphi 0, %s220
    %s222 = sphi 0, %s220
    %s223 = sphi 0, %s222
    %s237 = sphi 0, %s223
    %s241 = sphi 0, %s241
    %s243 = sphi 0, %s241
    %s244 = sphi 0, %s243
    %s258 = sphi 0, %s244
    %s262 = sphi 0, %s262
    %s264 = sphi 0, %s262
    %s265 = sphi 0, %s264
    %s279 = sphi 0, %s265
    %s285 = sphi 0, %s287
    %s288 = sphi 0, %s285
    %s289 = sphi 0, %s288
    %s305 = sphi 0, %s289
  $region4: #{E_forward.1} parent=0 // loop_header_branch
    %21 = sbr.rel (%p19) target = $region8
  $region5: #{E_forward.1} parent=0 // loop_body
    %s23 = ssub.s32 %s18, 1
    %s24 = ssub.s32 %s18, 2
    %s25 = sadd.s32 %s18, 1
    %s26 = ssub.s32 %s18, %s25
    %p27 = scmp.eq.s32.totalorder %s26, 0
    %s29 = sadd.s32 %s28, 1
    %s30 = scalar_select %p27, %s28, %s29
    %p33 = pneg %p27
    %p34 = scmp.eq.s32.totalorder %s18, 1
    %p35 = por %p33, %p34
    %p36 = scmp.ne.s32.totalorder %s28, %s31
    %p37 = scmp.eq.s32.totalorder %s18, 0
    %p38 = por %p36, %p37
    %p39 = scmp.ne.s32.totalorder %s28, %s31
    %p40 = scmp.eq.s32.totalorder %s23, 1
    %p41 = por %p39, %p40
    %p42 = scmp.ne.s32.totalorder %s31, %s32
    %p43 = scmp.eq.s32.totalorder %s23, 0
    %p44 = por %p42, %p43
    %p45 = scmp.ne.s32.totalorder %s31, %s32
    %p46 = scmp.eq.s32.totalorder %s24, 1
    %p47 = por %p45, %p46
    %p49 = scmp.ne.s32.totalorder %s32, %s48
    %p50 = scmp.eq.s32.totalorder %s24, 0
    %p51 = por %p49, %p50
    %s53 = sadd.s32 %s52, 1
    %p56 = scmp.eq.s32.totalorder %s18, 1
    %p57 = scmp.ne.s32.totalorder %s52, %s54
    %p58 = scmp.eq.s32.totalorder %s18, 0
    %p59 = por %p57, %p58
    %p60 = scmp.ne.s32.totalorder %s52, %s54
    %p61 = scmp.eq.s32.totalorder %s23, 1
    %p62 = por %p60, %p61
    %p63 = scmp.ne.s32.totalorder %s54, %s55
    %p64 = scmp.eq.s32.totalorder %s23, 0
    %p65 = por %p63, %p64
    %p66 = scmp.ne.s32.totalorder %s54, %s55
    %p67 = scmp.eq.s32.totalorder %s24, 1
    %p68 = por %p66, %p67
    %p70 = scmp.ne.s32.totalorder %s55, %s69
    %p71 = scmp.eq.s32.totalorder %s24, 0
    %p72 = por %p70, %p71
    %s74 = sadd.s32 %s73, 1
    %p77 = scmp.eq.s32.totalorder %s18, 1
    %p78 = scmp.ne.s32.totalorder %s73, %s75
    %p79 = scmp.eq.s32.totalorder %s18, 0
    %p80 = por %p78, %p79
    %p81 = scmp.ne.s32.totalorder %s73, %s75
    %p82 = scmp.eq.s32.totalorder %s23, 1
    %p83 = por %p81, %p82
    %p84 = scmp.ne.s32.totalorder %s75, %s76
    %p85 = scmp.eq.s32.totalorder %s23, 0
    %p86 = por %p84, %p85
    %p87 = scmp.ne.s32.totalorder %s75, %s76
    %p88 = scmp.eq.s32.totalorder %s24, 1
    %p89 = por %p87, %p88
    %p91 = scmp.ne.s32.totalorder %s76, %s90
    %p92 = scmp.eq.s32.totalorder %s24, 0
    %p93 = por %p91, %p92
    %s95 = sadd.s32 %s94, 1
    %p98 = scmp.eq.s32.totalorder %s18, 1
    %p99 = scmp.ne.s32.totalorder %s94, %s96
    %p100 = scmp.eq.s32.totalorder %s18, 0
    %p101 = por %p99, %p100
    %p102 = scmp.ne.s32.totalorder %s94, %s96
    %p103 = scmp.eq.s32.totalorder %s23, 1
    %p104 = por %p102, %p103
    %p105 = scmp.ne.s32.totalorder %s96, %s97
    %p106 = scmp.eq.s32.totalorder %s23, 0
    %p107 = por %p105, %p106
    %p108 = scmp.ne.s32.totalorder %s96, %s97
    %p109 = scmp.eq.s32.totalorder %s24, 1
    %p110 = por %p108, %p109
    %p112 = scmp.ne.s32.totalorder %s97, %s111
    %p113 = scmp.eq.s32.totalorder %s24, 0
    %p114 = por %p112, %p113
    %s116 = sadd.s32 %s115, 1
    %p119 = scmp.eq.s32.totalorder %s18, 1
    %p120 = scmp.ne.s32.totalorder %s115, %s117
    %p121 = scmp.eq.s32.totalorder %s18, 0
    %p122 = por %p120, %p121
    %p123 = scmp.ne.s32.totalorder %s115, %s117
    %p124 = scmp.eq.s32.totalorder %s23, 1
    %p125 = por %p123, %p124
    %p126 = scmp.ne.s32.totalorder %s117, %s118
    %p127 = scmp.eq.s32.totalorder %s23, 0
    %p128 = por %p126, %p127
    %p129 = scmp.ne.s32.totalorder %s117, %s118
    %p130 = scmp.eq.s32.totalorder %s24, 1
    %p131 = por %p129, %p130
    %p133 = scmp.ne.s32.totalorder %s118, %s132
    %p134 = scmp.eq.s32.totalorder %s24, 0
    %p135 = por %p133, %p134
    %s137 = sadd.s32 %s136, 1
    %p140 = scmp.eq.s32.totalorder %s18, 1
    %p141 = scmp.ne.s32.totalorder %s136, %s138
    %p142 = scmp.eq.s32.totalorder %s18, 0
    %p143 = por %p141, %p142
    %p144 = scmp.ne.s32.totalorder %s136, %s138
    %p145 = scmp.eq.s32.totalorder %s23, 1
    %p146 = por %p144, %p145
    %p147 = scmp.ne.s32.totalorder %s138, %s139
    %p148 = scmp.eq.s32.totalorder %s23, 0
    %p149 = por %p147, %p148
    %p150 = scmp.ne.s32.totalorder %s138, %s139
    %p151 = scmp.eq.s32.totalorder %s24, 1
    %p152 = por %p150, %p151
    %p154 = scmp.ne.s32.totalorder %s139, %s153
    %p155 = scmp.eq.s32.totalorder %s24, 0
    %p156 = por %p154, %p155
    %s158 = sadd.s32 %s157, 1
    %p161 = scmp.eq.s32.totalorder %s18, 1
    %p162 = scmp.ne.s32.totalorder %s157, %s159
    %p163 = scmp.eq.s32.totalorder %s18, 0
    %p164 = por %p162, %p163
    %p165 = scmp.ne.s32.totalorder %s157, %s159
    %p166 = scmp.eq.s32.totalorder %s23, 1
    %p167 = por %p165, %p166
    %p168 = scmp.ne.s32.totalorder %s159, %s160
    %p169 = scmp.eq.s32.totalorder %s23, 0
    %p170 = por %p168, %p169
    %p171 = scmp.ne.s32.totalorder %s159, %s160
    %p172 = scmp.eq.s32.totalorder %s24, 1
    %p173 = por %p171, %p172
    %p175 = scmp.ne.s32.totalorder %s160, %s174
    %p176 = scmp.eq.s32.totalorder %s24, 0
    %p177 = por %p175, %p176
    %s179 = sadd.s32 %s178, 1
    %p182 = scmp.eq.s32.totalorder %s18, 1
    %p183 = scmp.ne.s32.totalorder %s178, %s180
    %p184 = scmp.eq.s32.totalorder %s18, 0
    %p185 = por %p183, %p184
    %p186 = scmp.ne.s32.totalorder %s178, %s180
    %p187 = scmp.eq.s32.totalorder %s23, 1
    %p188 = por %p186, %p187
    %p189 = scmp.ne.s32.totalorder %s180, %s181
    %p190 = scmp.eq.s32.totalorder %s23, 0
    %p191 = por %p189, %p190
    %p192 = scmp.ne.s32.totalorder %s180, %s181
    %p193 = scmp.eq.s32.totalorder %s24, 1
    %p194 = por %p192, %p193
    %p196 = scmp.ne.s32.totalorder %s181, %s195
    %p197 = scmp.eq.s32.totalorder %s24, 0
    %p198 = por %p196, %p197
    %s200 = sadd.s32 %s199, 1
    %p203 = scmp.eq.s32.totalorder %s18, 1
    %p204 = scmp.ne.s32.totalorder %s199, %s201
    %p205 = scmp.eq.s32.totalorder %s18, 0
    %p206 = por %p204, %p205
    %p207 = scmp.ne.s32.totalorder %s199, %s201
    %p208 = scmp.eq.s32.totalorder %s23, 1
    %p209 = por %p207, %p208
    %p210 = scmp.ne.s32.totalorder %s201, %s202
    %p211 = scmp.eq.s32.totalorder %s23, 0
    %p212 = por %p210, %p211
    %p213 = scmp.ne.s32.totalorder %s201, %s202
    %p214 = scmp.eq.s32.totalorder %s24, 1
    %p215 = por %p213, %p214
    %p217 = scmp.ne.s32.totalorder %s202, %s216
    %p218 = scmp.eq.s32.totalorder %s24, 0
    %p219 = por %p217, %p218
    %s221 = sadd.s32 %s220, 1
    %p224 = scmp.eq.s32.totalorder %s18, 1
    %p225 = scmp.ne.s32.totalorder %s220, %s222
    %p226 = scmp.eq.s32.totalorder %s18, 0
    %p227 = por %p225, %p226
    %p228 = scmp.ne.s32.totalorder %s220, %s222
    %p229 = scmp.eq.s32.totalorder %s23, 1
    %p230 = por %p228, %p229
    %p231 = scmp.ne.s32.totalorder %s222, %s223
    %p232 = scmp.eq.s32.totalorder %s23, 0
    %p233 = por %p231, %p232
    %p234 = scmp.ne.s32.totalorder %s222, %s223
    %p235 = scmp.eq.s32.totalorder %s24, 1
    %p236 = por %p234, %p235
    %p238 = scmp.ne.s32.totalorder %s223, %s237
    %p239 = scmp.eq.s32.totalorder %s24, 0
    %p240 = por %p238, %p239
    %s242 = sadd.s32 %s241, 1
    %p245 = scmp.eq.s32.totalorder %s18, 1
    %p246 = scmp.ne.s32.totalorder %s241, %s243
    %p247 = scmp.eq.s32.totalorder %s18, 0
    %p248 = por %p246, %p247
    %p249 = scmp.ne.s32.totalorder %s241, %s243
    %p250 = scmp.eq.s32.totalorder %s23, 1
    %p251 = por %p249, %p250
    %p252 = scmp.ne.s32.totalorder %s243, %s244
    %p253 = scmp.eq.s32.totalorder %s23, 0
    %p254 = por %p252, %p253
    %p255 = scmp.ne.s32.totalorder %s243, %s244
    %p256 = scmp.eq.s32.totalorder %s24, 1
    %p257 = por %p255, %p256
    %p259 = scmp.ne.s32.totalorder %s244, %s258
    %p260 = scmp.eq.s32.totalorder %s24, 0
    %p261 = por %p259, %p260
    %s263 = sadd.s32 %s262, 1
    %p266 = scmp.eq.s32.totalorder %s18, 1
    %p267 = scmp.ne.s32.totalorder %s262, %s264
    %p268 = scmp.eq.s32.totalorder %s18, 0
    %p269 = por %p267, %p268
    %p270 = scmp.ne.s32.totalorder %s262, %s264
    %p271 = scmp.eq.s32.totalorder %s23, 1
    %p272 = por %p270, %p271
    %p273 = scmp.ne.s32.totalorder %s264, %s265
    %p274 = scmp.eq.s32.totalorder %s23, 0
    %p275 = por %p273, %p274
    %p276 = scmp.ne.s32.totalorder %s264, %s265
    %p277 = scmp.eq.s32.totalorder %s24, 1
    %p278 = por %p276, %p277
    %p280 = scmp.ne.s32.totalorder %s265, %s279
    %p281 = scmp.eq.s32.totalorder %s24, 0
    %p282 = por %p280, %p281
    %s283 = ssub.s32 %s18, %s25
    %p284 = scmp.eq.s32.totalorder %s283, 0
    %s286 = sadd.s32 %s285, 1
    %s287 = scalar_select %p284, %s285, %s286
    %p290 = pneg %p284
    %p291 = scmp.eq.s32.totalorder %s18, 1
    %p292 = por %p290, %p291
    %p293 = scmp.ne.s32.totalorder %s285, %s288
    %p294 = scmp.eq.s32.totalorder %s18, 0
    %p295 = por %p293, %p294
    %p296 = scmp.ne.s32.totalorder %s285, %s288
    %p297 = scmp.eq.s32.totalorder %s23, 1
    %p298 = por %p296, %p297
    %p299 = scmp.ne.s32.totalorder %s288, %s289
    %p300 = scmp.eq.s32.totalorder %s23, 0
    %p301 = por %p299, %p300
    %p302 = scmp.ne.s32.totalorder %s288, %s289
    %p303 = scmp.eq.s32.totalorder %s24, 1
    %p304 = por %p302, %p303
    %p306 = scmp.ne.s32.totalorder %s289, %s305
    %p307 = scmp.eq.s32.totalorder %s24, 0
    %p308 = por %p306, %p307
    %p309 = scmp.le.s32.totalorder 1, %s18
    %p310 = scmp.lt.s32.totalorder %s18, 3
    %p311 = pnand %p309, %p310
    %p312 = pneg %p311
    // Predicated region
    $region9: #{E_forward.1} parent=5 // pred_check
      _
    $region10: #{E_forward.1} parent=5 // pred_check_branch
      %314 = sbr.rel (%p311) target = $region12
    $region11: #{E_forward.1} parent=5 // pred_region
      %s315 = ssub.s32 %s18, 1
      // Predicated region
      $region13: #{E_forward.1} parent=11 // pred_check
        %p316 = pneg %p65
      $region14: #{E_forward.1} parent=11 // pred_check_branch
        %318 = sbr.rel (%p316) target = $region16
      $region15: #{E_forward.1} parent=11 // pred_region
        _
      $region16: #{E_forward.1} parent=11 // pred_fallthru
        _
      // Predicated region
      $region17: #{E_forward.1} parent=11 // pred_check
        %p319 = pneg %p86
      $region18: #{E_forward.1} parent=11 // pred_check_branch
        %321 = sbr.rel (%p319) target = $region20
      $region19: #{E_forward.1} parent=11 // pred_region
        _
      $region20: #{E_forward.1} parent=11 // pred_fallthru
        _
      // Predicated region
      $region21: #{E_forward.1} parent=11 // pred_check
        %p322 = pneg %p107
      $region22: #{E_forward.1} parent=11 // pred_check_branch
        %324 = sbr.rel (%p322) target = $region24
      $region23: #{E_forward.1} parent=11 // pred_region
        _
      $region24: #{E_forward.1} parent=11 // pred_fallthru
        _
      // Predicated region
      $region25: #{E_forward.1} parent=11 // pred_check
        %p325 = pneg %p128
      $region26: #{E_forward.1} parent=11 // pred_check_branch
        %327 = sbr.rel (%p325) target = $region28
      $region27: #{E_forward.1} parent=11 // pred_region
        _
      $region28: #{E_forward.1} parent=11 // pred_fallthru
        _
      // Predicated region
      $region29: #{E_forward.1} parent=11 // pred_check
        %p328 = pneg %p149
      $region30: #{E_forward.1} parent=11 // pred_check_branch
        %330 = sbr.rel (%p328) target = $region32
      $region31: #{E_forward.1} parent=11 // pred_region
        _
      $region32: #{E_forward.1} parent=11 // pred_fallthru
        _
      // Predicated region
      $region33: #{E_forward.1} parent=11 // pred_check
        %p331 = pneg %p170
      $region34: #{E_forward.1} parent=11 // pred_check_branch
        %333 = sbr.rel (%p331) target = $region36
      $region35: #{E_forward.1} parent=11 // pred_region
        _
      $region36: #{E_forward.1} parent=11 // pred_fallthru
        _
      // Predicated region
      $region37: #{E_forward.1} parent=11 // pred_check
        %p334 = pneg %p191
      $region38: #{E_forward.1} parent=11 // pred_check_branch
        %336 = sbr.rel (%p334) target = $region40
      $region39: #{E_forward.1} parent=11 // pred_region
        _
      $region40: #{E_forward.1} parent=11 // pred_fallthru
        _
      // Predicated region
      $region41: #{E_forward.1} parent=11 // pred_check
        %p337 = pneg %p212
      $region42: #{E_forward.1} parent=11 // pred_check_branch
        %339 = sbr.rel (%p337) target = $region44
      $region43: #{E_forward.1} parent=11 // pred_region
        _
      $region44: #{E_forward.1} parent=11 // pred_fallthru
        _
      // Predicated region
      $region45: #{E_forward.1} parent=11 // pred_check
        %p340 = pneg %p233
      $region46: #{E_forward.1} parent=11 // pred_check_branch
        %342 = sbr.rel (%p340) target = $region48
      $region47: #{E_forward.1} parent=11 // pred_region
        _
      $region48: #{E_forward.1} parent=11 // pred_fallthru
        _
      // Predicated region
      $region49: #{E_forward.1} parent=11 // pred_check
        %p343 = pneg %p254
      $region50: #{E_forward.1} parent=11 // pred_check_branch
        %345 = sbr.rel (%p343) target = $region52
      $region51: #{E_forward.1} parent=11 // pred_region
        _
      $region52: #{E_forward.1} parent=11 // pred_fallthru
        _
      // Predicated region
      $region53: #{E_forward.1} parent=11 // pred_check
        %p346 = pneg %p275
      $region54: #{E_forward.1} parent=11 // pred_check_branch
        %348 = sbr.rel (%p346) target = $region56
      $region55: #{E_forward.1} parent=11 // pred_region
        _
      $region56: #{E_forward.1} parent=11 // pred_fallthru
        _
    $region12: #{E_forward.1} parent=5 // pred_fallthru
      _
    %p349 = scmp.lt.s32.totalorder %s18, 2
    // Predicated region
    $region57: #{E_forward.1} parent=5 // pred_check
      %p350 = pneg %p349
    $region58: #{E_forward.1} parent=5 // pred_check_branch
      %352 = sbr.rel (%p350) target = $region60
    $region59: #{E_forward.1} parent=5 // pred_region
      // Predicated region
      $region61: #{E_forward.1} parent=59 // pred_check
        %p353 = pneg %p38
      $region62: #{E_forward.1} parent=59 // pred_check_branch
        %355 = sbr.rel (%p353) target = $region64
      $region63: #{E_forward.1} parent=59 // pred_region
        %p356 = scmp.lt.s32.totalorder %s18, 1
        %s357 = scalar_select %p356, %s18, 1
        %s358 = smul.addr %s357, 8
        %s359 = smul.addr %s358, 4
        %s360 = scalar_lea.vmem %s0, %s359
      $region64: #{E_forward.1} parent=59 // pred_fallthru
        _
    $region60: #{E_forward.1} parent=5 // pred_fallthru
      _
    %p361 = scmp.le.s32.totalorder 1, %s18
    %p362 = scmp.lt.s32.totalorder %s18, 3
    %p363 = pnand %p361, %p362
    %p364 = pneg %p363
    // Predicated region
    $region65: #{E_forward.1} parent=5 // pred_check
      _
    $region66: #{E_forward.1} parent=5 // pred_check_branch
      %366 = sbr.rel (%p363) target = $region68
    $region67: #{E_forward.1} parent=5 // pred_region
      %s367 = ssub.s32 %s18, 1
      %p368 = scmp.lt.s32.totalorder %s23, 1
      %s369 = scalar_select %p368, %s23, 1
      %s370 = smul.addr %s369, 8
      %s371 = smul.addr %s370, 4
      %s372 = scalar_lea.vmem %s0, %s371
      %p373 = pneg %p44
      %p374 = pneg %p41
      %p375 = pneg %p65
      %p376 = pneg %p62
      %p377 = pneg %p86
      %p378 = pneg %p83
      %p379 = pneg %p107
      %p380 = pneg %p104
      %p381 = pneg %p128
      %p382 = pneg %p125
      %p383 = pneg %p149
      %p384 = pneg %p146
      %p385 = pneg %p170
      %p386 = pneg %p167
      %p387 = pneg %p191
      %p388 = pneg %p188
      %p389 = pneg %p212
      %p390 = pneg %p209
      %p391 = pneg %p233
      %p392 = pneg %p230
      %p393 = pneg %p254
      %p394 = pneg %p251
      %p395 = pneg %p275
      %p396 = pneg %p272
      %p397 = pneg %p301
      %p398 = pneg %p298
      %p399 = scmp.lt.s32.totalorder %s23, 1
      %s400 = scalar_select %p399, %s23, 1
      %s401 = smul.addr %s400, 4
      %s402 = smul.addr %s401, 8
      %s403 = scalar_lea.vmem %s12, %s402
      %p404 = scmp.lt.s32.totalorder %s23, 1
      %s405 = scalar_select %p404, %s23, 1
      %s406 = smul.addr %s405, 8
      %s407 = smul.addr %s406, 4
      %s408 = scalar_lea.vmem %s0, %s407
      %p409 = scmp.lt.s32.totalorder %s23, 1
      %s410 = scalar_select %p409, %s23, 1
      %s411 = smul.addr %s410, 4
      %s412 = smul.addr %s411, 8
      %s413 = scalar_lea.vmem %s12, %s412
      %v415 = vld [vmem:[%s408] sm:$0xf]
      %v416 = vld [vmem:[%s408 + $0x4] sm:$0xf]
      %v417 = vld [vmem:[%s408 + $0x8] sm:$0xf]
      %v418 = vld [vmem:[%s408 + $0xc] sm:$0xf]
      %v419 = vld [vmem:[%s408 + $0x10] sm:$0xf]
      %v420 = vld [vmem:[%s408 + $0x14] sm:$0xf]
      %v421 = vld [vmem:[%s408 + $0x18] sm:$0xf]
      %v422 = vld [vmem:[%s408 + $0x1c] sm:$0xf]
      %v423 = vld [vmem:[%s1] sm:$0xf]
      %v424 = vld [vmem:[%s1 + $0x4] sm:$0xf]
      %v425 = vld [vmem:[%s1 + $0x8] sm:$0xf]
      %v426 = vld [vmem:[%s1 + $0xc] sm:$0xf]
      %v427 = vld [vmem:[%s1 + $0x10] sm:$0xf]
      %v428 = vld [vmem:[%s1 + $0x14] sm:$0xf]
      %v437 = vunpack.c.l.b16 %v415
      %v438 = vunpack.c.l.b16 %v416
      %v439 = vunpack.c.l.b16 %v417
      %v440 = vunpack.c.l.b16 %v418
      %v441 = vunpack.c.l.b16 %v419
      %v442 = vunpack.c.l.b16 %v420
      %v443 = vunpack.c.l.b16 %v421
      %v444 = vunpack.c.l.b16 %v422
      %v445 = vpack.c.b16 %v438, %v437
      %v446 = vpack.c.b16 %v440, %v439
      %v447 = vpack.c.b16 %v442, %v441
      %v448 = vpack.c.b16 %v444, %v443
      %v455 = vunpack.c.l.b16 %v423
      %v456 = vunpack.c.l.b16 %v424
      %v457 = vunpack.c.l.b16 %v425
      %v458 = vunpack.c.l.b16 %v426
      %v459 = vunpack.c.l.b16 %v427
      %v460 = vunpack.c.l.b16 %v428
      %v461 = vpack.c.b16 %v456, %v455
      %v462 = vpack.c.b16 %v458, %v457
      %v463 = vpack.c.b16 %v460, %v459
      %vm467 = vcmask 392192
      %v469 = vsel %vm467, %v445, 0
      %v472 = vsel %vm467, %v446, 0
      %v475 = vsel %vm467, %v447, 0
      %v478 = vsel %vm467, %v448, 0
      %480 = vmatprep.subr.bf16.mxu0 0
      %481 = vmatpush1.bf16.msra.mxu0 0
      %482 = vmatprep.subr.bf16.mxu0 0
      %483 = vmatpush1.bf16.msra.mxu0 0
      %484 = vmatprep.subr.bf16.mxu0 0
      %485 = vmatpush1.bf16.msra.mxu0 0
      %486 = vmatprep.subr.bf16.mxu0 0
      %487 = vmatpush1.bf16.msra.mxu0 0
      %488 = vmatprep.subr.bf16.mxu0 0
      %489 = vmatpush1.bf16.msra.mxu0 0
      %490 = vmatprep.subr.bf16.mxu0 0
      %491 = vmatpush1.bf16.msra.mxu0 %v463
      %492 = vmatprep.subr.bf16.mxu0 0
      %493 = vmatpush1.bf16.msra.mxu0 %v462
      %494 = vmatprep.subr.bf16.mxu0 0
      %495 = vmatpush1.bf16.msra.mxu0 %v461
      %496 = vmatprep.subr.bf16.mxu0 0
      %497 = vmatpush2.bf16.msra.mxu0 0
      %498 = vmatprep.subr.bf16.mxu0 0
      %499 = vmatpush2.bf16.msra.mxu0 0
      %500 = vmatprep.subr.bf16.mxu0 0
      %501 = vmatpush2.bf16.msra.mxu0 0
      %502 = vmatprep.subr.bf16.mxu0 0
      %503 = vmatpush2.bf16.msra.mxu0 0
      %504 = vmatprep.subr.bf16.mxu0 0
      %505 = vmatpush2.bf16.msra.mxu0 0
      %506 = vmatprep.subr.bf16.mxu0 0
      %507 = vmatpush2.bf16.msra.mxu0 0
      %508 = vmatprep.subr.bf16.mxu0 0
      %509 = vmatpush2.bf16.msra.mxu0 0
      %510 = vmatprep.subr.bf16.mxu0 0
      %511 = vmatpush2.bf16.msra.mxu0 0
      %512 = vmatprep.mubr.bf16.mxu0 0
      %513 = vmatmul.mubr.bf16.gmra.mxu0 %v469
      %v514 = vpop.f32.mrf.mxu0
      %v515 = vadd.f32 0.0, %v514
      %v516 = vpop.f32.mrf.mxu0
      %v517 = vpop.f32.mrf.mxu0
      %v518 = vadd.f32 0.0, %v517
      %v519 = vpop.f32.mrf.mxu0
      %520 = vmatprep.mubr.bf16.mxu0 0
      %521 = vmatmul.mubr.bf16.gmra.mxu0 %v472
      %v522 = vpop.f32.mrf.mxu0
      %v523 = vadd.f32 0.0, %v522
      %v524 = vpop.f32.mrf.mxu0
      %v525 = vpop.f32.mrf.mxu0
      %v526 = vadd.f32 0.0, %v525
      %v527 = vpop.f32.mrf.mxu0
      %528 = vmatprep.mubr.bf16.mxu0 0
      %529 = vmatmul.mubr.bf16.gmra.mxu0 %v475
      %v530 = vpop.f32.mrf.mxu0
      %v531 = vadd.f32 0.0, %v530
      %v532 = vpop.f32.mrf.mxu0
      %v533 = vpop.f32.mrf.mxu0
      %v534 = vadd.f32 0.0, %v533
      %v535 = vpop.f32.mrf.mxu0
      %536 = vmatprep.mubr.bf16.mxu0 0
      %537 = vmatmul.mubr.bf16.gmra.mxu0 %v478
      %v538 = vpop.f32.mrf.mxu0
      %v539 = vadd.f32 0.0, %v538
      %v540 = vpop.f32.mrf.mxu0
      %v541 = vpop.f32.mrf.mxu0
      %v542 = vadd.f32 0.0, %v541
      %v543 = vpop.f32.mrf.mxu0
      %544 = vdwg.mxu0
      %vm545 = vcmp.ge.f32.partialorder %v515, 0.0
      %vm546 = vcmp.ge.f32.partialorder %v518, 0.0
      %vm547 = vcmp.ge.f32.partialorder %v523, 0.0
      %vm548 = vcmp.ge.f32.partialorder %v526, 0.0
      %vm549 = vcmp.ge.f32.partialorder %v531, 0.0
      %vm550 = vcmp.ge.f32.partialorder %v534, 0.0
      %vm551 = vcmp.ge.f32.partialorder %v539, 0.0
      %vm552 = vcmp.ge.f32.partialorder %v542, 0.0
      %v553 = vmul.f32 %v515, 0.2
      %v554 = vmul.f32 %v518, 0.2
      %v555 = vmul.f32 %v523, 0.2
      %v556 = vmul.f32 %v526, 0.2
      %v557 = vmul.f32 %v531, 0.2
      %v558 = vmul.f32 %v534, 0.2
      %v559 = vmul.f32 %v539, 0.2
      %v560 = vmul.f32 %v542, 0.2
      %v561 = vsel %vm545, %v515, %v553
      %v562 = vsel %vm546, %v518, %v554
      %v563 = vsel %vm547, %v523, %v555
      %v564 = vsel %vm548, %v526, %v556
      %v565 = vsel %vm549, %v531, %v557
      %v566 = vsel %vm550, %v534, %v558
      %v567 = vsel %vm551, %v539, %v559
      %v568 = vsel %vm552, %v542, %v560
      %v569 = vpack.c.bf16 %v562, %v561
      %v570 = vpack.c.bf16 %v564, %v563
      %v571 = vpack.c.bf16 %v566, %v565
      %v572 = vpack.c.bf16 %v568, %v567
      %v573 = vld [vmem:[%s9] sm:$0xf]
      %v574 = vld [vmem:[%s9 + $0x4] sm:$0xf]
      %v575 = vld [vmem:[%s9 + $0x8] sm:$0xf]
      %v576 = vld [vmem:[%s9 + $0xc] sm:$0xf]
      %v577 = vld [vmem:[%s9 + $0x10] sm:$0xf]
      %v578 = vld [vmem:[%s9 + $0x14] sm:$0xf]
      %v579 = vld [vmem:[%s9 + $0x18] sm:$0xf]
      %v580 = vld [vmem:[%s9 + $0x1c] sm:$0xf]
      %v581 = vld [vmem:[%s9 + $0x20] sm:$0xf]
      %v582 = vld [vmem:[%s9 + $0x24] sm:$0xf]
      %v583 = vld [vmem:[%s9 + $0x28] sm:$0xf]
      %v584 = vld [vmem:[%s9 + $0x2c] sm:$0xf]
      %v585 = vld [vmem:[%s9 + $0x30] sm:$0xf]
      %v586 = vld [vmem:[%s9 + $0x34] sm:$0xf]
      %v587 = vld [vmem:[%s9 + $0x38] sm:$0xf]
      %v588 = vld [vmem:[%s9 + $0x3c] sm:$0xf]
      %v589 = vld [vmem:[%s9 + $0x40] sm:$0xf]
      %v590 = vld [vmem:[%s9 + $0x44] sm:$0xf]
      %v591 = vld [vmem:[%s9 + $0x48] sm:$0xf]
      %v592 = vld [vmem:[%s9 + $0x4c] sm:$0xf]
      %v593 = vld [vmem:[%s9 + $0x50] sm:$0xf]
      %v594 = vld [vmem:[%s9 + $0x54] sm:$0xf]
      %v595 = vld [vmem:[%s9 + $0x58] sm:$0xf]
      %v596 = vld [vmem:[%s9 + $0x5c] sm:$0xf]
      %v597 = vld [vmem:[%s9 + $0x60] sm:$0xf]
      %v598 = vld [vmem:[%s9 + $0x64] sm:$0xf]
      %v599 = vld [vmem:[%s9 + $0x68] sm:$0xf]
      %v600 = vld [vmem:[%s9 + $0x6c] sm:$0xf]
      %v601 = vld [vmem:[%s9 + $0x70] sm:$0xf]
      %v602 = vld [vmem:[%s9 + $0x74] sm:$0xf]
      %v603 = vld [vmem:[%s9 + $0x78] sm:$0xf]
      %v604 = vld [vmem:[%s9 + $0x7c] sm:$0xf]
      %v637 = vunpack.c.l.b16 %v573
      %v638 = vunpack.c.l.b16 %v574
      %v639 = vunpack.c.l.b16 %v575
      %v640 = vunpack.c.l.b16 %v576
      %v641 = vunpack.c.l.b16 %v577
      %v642 = vunpack.c.l.b16 %v578
      %v643 = vunpack.c.l.b16 %v579
      %v644 = vunpack.c.l.b16 %v580
      %v645 = vunpack.c.l.b16 %v581
      %v646 = vunpack.c.l.b16 %v582
      %v647 = vunpack.c.l.b16 %v583
      %v648 = vunpack.c.l.b16 %v584
      %v649 = vunpack.c.l.b16 %v585
      %v650 = vunpack.c.l.b16 %v586
      %v651 = vunpack.c.l.b16 %v587
      %v652 = vunpack.c.l.b16 %v588
      %v653 = vunpack.c.l.b16 %v589
      %v654 = vunpack.c.l.b16 %v590
      %v655 = vunpack.c.l.b16 %v591
      %v656 = vunpack.c.l.b16 %v592
      %v657 = vunpack.c.l.b16 %v593
      %v658 = vunpack.c.l.b16 %v594
      %v659 = vunpack.c.l.b16 %v595
      %v660 = vunpack.c.l.b16 %v596
      %v661 = vunpack.c.l.b16 %v597
      %v662 = vunpack.c.l.b16 %v598
      %v663 = vunpack.c.l.b16 %v599
      %v664 = vunpack.c.l.b16 %v600
      %v665 = vunpack.c.l.b16 %v601
      %v666 = vunpack.c.l.b16 %v602
      %v667 = vunpack.c.l.b16 %v603
      %v668 = vunpack.c.l.b16 %v604
      %v669 = vpack.c.b16 %v638, %v637
      %v670 = vpack.c.b16 %v640, %v639
      %v671 = vpack.c.b16 %v642, %v641
      %v672 = vpack.c.b16 %v644, %v643
      %v673 = vpack.c.b16 %v646, %v645
      %v674 = vpack.c.b16 %v648, %v647
      %v675 = vpack.c.b16 %v650, %v649
      %v676 = vpack.c.b16 %v652, %v651
      %v677 = vpack.c.b16 %v654, %v653
      %v678 = vpack.c.b16 %v656, %v655
      %v679 = vpack.c.b16 %v658, %v657
      %v680 = vpack.c.b16 %v660, %v659
      %v681 = vpack.c.b16 %v662, %v661
      %v682 = vpack.c.b16 %v664, %v663
      %v683 = vpack.c.b16 %v666, %v665
      %v684 = vpack.c.b16 %v668, %v667
      %vm685 = vcmask 523264
      %v687 = vsel %vm685, %v669, 0
      %v690 = vsel %vm685, %v670, 0
      %v693 = vsel %vm685, %v671, 0
      %v696 = vsel %vm685, %v672, 0
      %v699 = vsel %vm685, %v673, 0
      %v702 = vsel %vm685, %v674, 0
      %v705 = vsel %vm685, %v675, 0
      %v708 = vsel %vm685, %v676, 0
      %v711 = vsel %vm685, %v677, 0
      %v714 = vsel %vm685, %v678, 0
      %v717 = vsel %vm685, %v679, 0
      %v720 = vsel %vm685, %v680, 0
      %v723 = vsel %vm685, %v681, 0
      %v726 = vsel %vm685, %v682, 0
      %v729 = vsel %vm685, %v683, 0
      %v732 = vsel %vm685, %v684, 0
      %734 = vmatprep.subr.bf16.mxu0 0
      %735 = vmatpush1.bf16.msra.mxu0 0
      %736 = vmatprep.subr.bf16.mxu0 0
      %737 = vmatpush1.bf16.msra.mxu0 0
      %738 = vmatprep.subr.bf16.mxu0 0
      %739 = vmatpush1.bf16.msra.mxu0 0
      %740 = vmatprep.subr.bf16.mxu0 0
      %741 = vmatpush1.bf16.msra.mxu0 0
      %742 = vmatprep.subr.bf16.mxu0 0
      %743 = vmatpush1.bf16.msra.mxu0 %v572
      %744 = vmatprep.subr.bf16.mxu0 0
      %745 = vmatpush1.bf16.msra.mxu0 %v571
      %746 = vmatprep.subr.bf16.mxu0 0
      %747 = vmatpush1.bf16.msra.mxu0 %v570
      %748 = vmatprep.subr.bf16.mxu0 0
      %749 = vmatpush1.bf16.msra.mxu0 %v569
      %750 = vmatprep.subr.bf16.mxu0 0
      %751 = vmatpush2.bf16.msra.mxu0 0
      %752 = vmatprep.subr.bf16.mxu0 0
      %753 = vmatpush2.bf16.msra.mxu0 0
      %754 = vmatprep.subr.bf16.mxu0 0
      %755 = vmatpush2.bf16.msra.mxu0 0
      %756 = vmatprep.subr.bf16.mxu0 0
      %757 = vmatpush2.bf16.msra.mxu0 0
      %758 = vmatprep.subr.bf16.mxu0 0
      %759 = vmatpush2.bf16.msra.mxu0 0
      %760 = vmatprep.subr.bf16.mxu0 0
      %761 = vmatpush2.bf16.msra.mxu0 0
      %762 = vmatprep.subr.bf16.mxu0 0
      %763 = vmatpush2.bf16.msra.mxu0 0
      %764 = vmatprep.subr.bf16.mxu0 0
      %765 = vmatpush2.bf16.msra.mxu0 0
      %766 = vmatprep.mubr.bf16.mxu0 0
      %767 = vmatmul.mubr.bf16.gmra.mxu0 %v687
      %v768 = vpop.f32.mrf.mxu0
      %v769 = vadd.f32 0.0, %v768
      %v770 = vpop.f32.mrf.mxu0
      %v771 = vpop.f32.mrf.mxu0
      %v772 = vadd.f32 0.0, %v771
      %v773 = vpop.f32.mrf.mxu0
      %774 = vmatprep.mubr.bf16.mxu0 0
      %775 = vmatmul.mubr.bf16.gmra.mxu0 %v690
      %v776 = vpop.f32.mrf.mxu0
      %v777 = vadd.f32 0.0, %v776
      %v778 = vpop.f32.mrf.mxu0
      %v779 = vpop.f32.mrf.mxu0
      %v780 = vadd.f32 0.0, %v779
      %v781 = vpop.f32.mrf.mxu0
      %782 = vmatprep.mubr.bf16.mxu0 0
      %783 = vmatmul.mubr.bf16.gmra.mxu0 %v693
      %v784 = vpop.f32.mrf.mxu0
      %v785 = vadd.f32 0.0, %v784
      %v786 = vpop.f32.mrf.mxu0
      %v787 = vpop.f32.mrf.mxu0
      %v788 = vadd.f32 0.0, %v787
      %v789 = vpop.f32.mrf.mxu0
      %790 = vmatprep.mubr.bf16.mxu0 0
      %791 = vmatmul.mubr.bf16.gmra.mxu0 %v696
      %v792 = vpop.f32.mrf.mxu0
      %v793 = vadd.f32 0.0, %v792
      %v794 = vpop.f32.mrf.mxu0
      %v795 = vpop.f32.mrf.mxu0
      %v796 = vadd.f32 0.0, %v795
      %v797 = vpop.f32.mrf.mxu0
      %798 = vmatprep.mubr.bf16.mxu0 0
      %799 = vmatmul.mubr.bf16.gmra.mxu0 %v699
      %v800 = vpop.f32.mrf.mxu0
      %v801 = vadd.f32 0.0, %v800
      %v802 = vpop.f32.mrf.mxu0
      %v803 = vpop.f32.mrf.mxu0
      %v804 = vadd.f32 0.0, %v803
      %v805 = vpop.f32.mrf.mxu0
      %806 = vmatprep.mubr.bf16.mxu0 0
      %807 = vmatmul.mubr.bf16.gmra.mxu0 %v702
      %v808 = vpop.f32.mrf.mxu0
      %v809 = vadd.f32 0.0, %v808
      %v810 = vpop.f32.mrf.mxu0
      %v811 = vpop.f32.mrf.mxu0
      %v812 = vadd.f32 0.0, %v811
      %v813 = vpop.f32.mrf.mxu0
      %814 = vmatprep.mubr.bf16.mxu0 0
      %815 = vmatmul.mubr.bf16.gmra.mxu0 %v705
      %v816 = vpop.f32.mrf.mxu0
      %v817 = vadd.f32 0.0, %v816
      %v818 = vpop.f32.mrf.mxu0
      %v819 = vpop.f32.mrf.mxu0
      %v820 = vadd.f32 0.0, %v819
      %v821 = vpop.f32.mrf.mxu0
      %822 = vmatprep.mubr.bf16.mxu0 0
      %823 = vmatmul.mubr.bf16.gmra.mxu0 %v708
      %v824 = vpop.f32.mrf.mxu0
      %v825 = vadd.f32 0.0, %v824
      %v826 = vpop.f32.mrf.mxu0
      %v827 = vpop.f32.mrf.mxu0
      %v828 = vadd.f32 0.0, %v827
      %v829 = vpop.f32.mrf.mxu0
      %830 = vmatprep.mubr.bf16.mxu0 0
      %831 = vmatmul.mubr.bf16.gmra.mxu0 %v711
      %v832 = vpop.f32.mrf.mxu0
      %v833 = vadd.f32 0.0, %v832
      %v834 = vpop.f32.mrf.mxu0
      %v835 = vpop.f32.mrf.mxu0
      %v836 = vadd.f32 0.0, %v835
      %v837 = vpop.f32.mrf.mxu0
      %838 = vmatprep.mubr.bf16.mxu0 0
      %839 = vmatmul.mubr.bf16.gmra.mxu0 %v714
      %v840 = vpop.f32.mrf.mxu0
      %v841 = vadd.f32 0.0, %v840
      %v842 = vpop.f32.mrf.mxu0
      %v843 = vpop.f32.mrf.mxu0
      %v844 = vadd.f32 0.0, %v843
      %v845 = vpop.f32.mrf.mxu0
      %846 = vmatprep.mubr.bf16.mxu0 0
      %847 = vmatmul.mubr.bf16.gmra.mxu0 %v717
      %v848 = vpop.f32.mrf.mxu0
      %v849 = vadd.f32 0.0, %v848
      %v850 = vpop.f32.mrf.mxu0
      %v851 = vpop.f32.mrf.mxu0
      %v852 = vadd.f32 0.0, %v851
      %v853 = vpop.f32.mrf.mxu0
      %854 = vmatprep.mubr.bf16.mxu0 0
      %855 = vmatmul.mubr.bf16.gmra.mxu0 %v720
      %v856 = vpop.f32.mrf.mxu0
      %v857 = vadd.f32 0.0, %v856
      %v858 = vpop.f32.mrf.mxu0
      %v859 = vpop.f32.mrf.mxu0
      %v860 = vadd.f32 0.0, %v859
      %v861 = vpop.f32.mrf.mxu0
      %862 = vmatprep.mubr.bf16.mxu0 0
      %863 = vmatmul.mubr.bf16.gmra.mxu0 %v723
      %v864 = vpop.f32.mrf.mxu0
      %v865 = vadd.f32 0.0, %v864
      %v866 = vpop.f32.mrf.mxu0
      %v867 = vpop.f32.mrf.mxu0
      %v868 = vadd.f32 0.0, %v867
      %v869 = vpop.f32.mrf.mxu0
      %870 = vmatprep.mubr.bf16.mxu0 0
      %871 = vmatmul.mubr.bf16.gmra.mxu0 %v726
      %v872 = vpop.f32.mrf.mxu0
      %v873 = vadd.f32 0.0, %v872
      %v874 = vpop.f32.mrf.mxu0
      %v875 = vpop.f32.mrf.mxu0
      %v876 = vadd.f32 0.0, %v875
      %v877 = vpop.f32.mrf.mxu0
      %878 = vmatprep.mubr.bf16.mxu0 0
      %879 = vmatmul.mubr.bf16.gmra.mxu0 %v729
      %v880 = vpop.f32.mrf.mxu0
      %v881 = vadd.f32 0.0, %v880
      %v882 = vpop.f32.mrf.mxu0
      %v883 = vpop.f32.mrf.mxu0
      %v884 = vadd.f32 0.0, %v883
      %v885 = vpop.f32.mrf.mxu0
      %886 = vmatprep.mubr.bf16.mxu0 0
      %887 = vmatmul.mubr.bf16.gmra.mxu0 %v732
      %v888 = vpop.f32.mrf.mxu0
      %v889 = vadd.f32 0.0, %v888
      %v890 = vpop.f32.mrf.mxu0
      %v891 = vpop.f32.mrf.mxu0
      %v892 = vadd.f32 0.0, %v891
      %v893 = vpop.f32.mrf.mxu0
      %894 = vdwg.mxu0
      %v895 = vpack.c.bf16 %v772, %v769
      %v896 = vpack.c.bf16 %v780, %v777
      %v897 = vpack.c.bf16 %v788, %v785
      %v898 = vpack.c.bf16 %v796, %v793
      %v899 = vpack.c.bf16 %v804, %v801
      %v900 = vpack.c.bf16 %v812, %v809
      %v901 = vpack.c.bf16 %v820, %v817
      %v902 = vpack.c.bf16 %v828, %v825
      %v903 = vpack.c.bf16 %v836, %v833
      %v904 = vpack.c.bf16 %v844, %v841
      %v905 = vpack.c.bf16 %v852, %v849
      %v906 = vpack.c.bf16 %v860, %v857
      %v907 = vpack.c.bf16 %v868, %v865
      %v908 = vpack.c.bf16 %v876, %v873
      %v909 = vpack.c.bf16 %v884, %v881
      %v910 = vpack.c.bf16 %v892, %v889
      %v912 = vunpack.c.l.b16 %v895
      %v913 = vunpack.c.h.b16 %v895
      %v914 = vpack.c.b16 %v912, %v912
      %v915 = vpack.c.b16 %v913, %v913
      %vm918 = vcmask 519168
      %919 = vst.msk [vmem:[#allocation2] sm:$0xf] %vm918, %v914
      %920 = vst.msk [vmem:[#allocation2 + $0x20] sm:$0xf] %vm918, %v915
      %v922 = vunpack.c.l.b16 %v896
      %v923 = vunpack.c.h.b16 %v896
      %v924 = vpack.c.b16 %v922, %v922
      %v925 = vpack.c.b16 %v923, %v923
      %926 = vrot.lane.b32.xlu0 %v924, 64
      %v927 = vpop.permute.xlu0 %926
      %928 = vrot.lane.b32.xlu0 %v925, 64
      %v929 = vpop.permute.xlu0 %928
      %vm932 = vcmask 1043968
      %933 = vst.msk [vmem:[#allocation2] sm:$0xf] %vm932, %v927
      %934 = vst.msk [vmem:[#allocation2 + $0x20] sm:$0xf] %vm932, %v929
      %v936 = vunpack.c.l.b16 %v897
      %v937 = vunpack.c.h.b16 %v897
      %v938 = vpack.c.b16 %v936, %v936
      %v939 = vpack.c.b16 %v937, %v937
      %942 = vst.msk [vmem:[#allocation2 + $0x4] sm:$0xf] %vm918, %v938
      %943 = vst.msk [vmem:[#allocation2 + $0x24] sm:$0xf] %vm918, %v939
      %v945 = vunpack.c.l.b16 %v898
      %v946 = vunpack.c.h.b16 %v898
      %v947 = vpack.c.b16 %v945, %v945
      %v948 = vpack.c.b16 %v946, %v946
      %949 = vrot.lane.b32.xlu0 %v947, 64
      %v950 = vpop.permute.xlu0 %949
      %951 = vrot.lane.b32.xlu0 %v948, 64
      %v952 = vpop.permute.xlu0 %951
      %955 = vst.msk [vmem:[#allocation2 + $0x4] sm:$0xf] %vm932, %v950
      %956 = vst.msk [vmem:[#allocation2 + $0x24] sm:$0xf] %vm932, %v952
      %v958 = vunpack.c.l.b16 %v899
      %v959 = vunpack.c.h.b16 %v899
      %v960 = vpack.c.b16 %v958, %v958
      %v961 = vpack.c.b16 %v959, %v959
      %964 = vst.msk [vmem:[#allocation2 + $0x8] sm:$0xf] %vm918, %v960
      %965 = vst.msk [vmem:[#allocation2 + $0x28] sm:$0xf] %vm918, %v961
      %v967 = vunpack.c.l.b16 %v900
      %v968 = vunpack.c.h.b16 %v900
      %v969 = vpack.c.b16 %v967, %v967
      %v970 = vpack.c.b16 %v968, %v968
      %971 = vrot.lane.b32.xlu0 %v969, 64
      %v972 = vpop.permute.xlu0 %971
      %973 = vrot.lane.b32.xlu0 %v970, 64
      %v974 = vpop.permute.xlu0 %973
      %977 = vst.msk [vmem:[#allocation2 + $0x8] sm:$0xf] %vm932, %v972
      %978 = vst.msk [vmem:[#allocation2 + $0x28] sm:$0xf] %vm932, %v974
      %v980 = vunpack.c.l.b16 %v901
      %v981 = vunpack.c.h.b16 %v901
      %v982 = vpack.c.b16 %v980, %v980
      %v983 = vpack.c.b16 %v981, %v981
      %986 = vst.msk [vmem:[#allocation2 + $0xc] sm:$0xf] %vm918, %v982
      %987 = vst.msk [vmem:[#allocation2 + $0x2c] sm:$0xf] %vm918, %v983
      %v989 = vunpack.c.l.b16 %v902
      %v990 = vunpack.c.h.b16 %v902
      %v991 = vpack.c.b16 %v989, %v989
      %v992 = vpack.c.b16 %v990, %v990
      %993 = vrot.lane.b32.xlu0 %v991, 64
      %v994 = vpop.permute.xlu0 %993
      %995 = vrot.lane.b32.xlu0 %v992, 64
      %v996 = vpop.permute.xlu0 %995
      %999 = vst.msk [vmem:[#allocation2 + $0xc] sm:$0xf] %vm932, %v994
      %1000 = vst.msk [vmem:[#allocation2 + $0x2c] sm:$0xf] %vm932, %v996
      %v1002 = vunpack.c.l.b16 %v903
      %v1003 = vunpack.c.h.b16 %v903
      %v1004 = vpack.c.b16 %v1002, %v1002
      %v1005 = vpack.c.b16 %v1003, %v1003
      %1008 = vst.msk [vmem:[#allocation2 + $0x10] sm:$0xf] %vm918, %v1004
      %1009 = vst.msk [vmem:[#allocation2 + $0x30] sm:$0xf] %vm918, %v1005
      %v1011 = vunpack.c.l.b16 %v904
      %v1012 = vunpack.c.h.b16 %v904
      %v1013 = vpack.c.b16 %v1011, %v1011
      %v1014 = vpack.c.b16 %v1012, %v1012
      %1015 = vrot.lane.b32.xlu0 %v1013, 64
      %v1016 = vpop.permute.xlu0 %1015
      %1017 = vrot.lane.b32.xlu0 %v1014, 64
      %v1018 = vpop.permute.xlu0 %1017
      %1021 = vst.msk [vmem:[#allocation2 + $0x10] sm:$0xf] %vm932, %v1016
      %1022 = vst.msk [vmem:[#allocation2 + $0x30] sm:$0xf] %vm932, %v1018
      %v1024 = vunpack.c.l.b16 %v905
      %v1025 = vunpack.c.h.b16 %v905
      %v1026 = vpack.c.b16 %v1024, %v1024
      %v1027 = vpack.c.b16 %v1025, %v1025
      %1030 = vst.msk [vmem:[#allocation2 + $0x14] sm:$0xf] %vm918, %v1026
      %1031 = vst.msk [vmem:[#allocation2 + $0x34] sm:$0xf] %vm918, %v1027
      %v1033 = vunpack.c.l.b16 %v906
      %v1034 = vunpack.c.h.b16 %v906
      %v1035 = vpack.c.b16 %v1033, %v1033
      %v1036 = vpack.c.b16 %v1034, %v1034
      %1037 = vrot.lane.b32.xlu0 %v1035, 64
      %v1038 = vpop.permute.xlu0 %1037
      %1039 = vrot.lane.b32.xlu0 %v1036, 64
      %v1040 = vpop.permute.xlu0 %1039
      %1043 = vst.msk [vmem:[#allocation2 + $0x14] sm:$0xf] %vm932, %v1038
      %1044 = vst.msk [vmem:[#allocation2 + $0x34] sm:$0xf] %vm932, %v1040
      %v1046 = vunpack.c.l.b16 %v907
      %v1047 = vunpack.c.h.b16 %v907
      %v1048 = vpack.c.b16 %v1046, %v1046
      %v1049 = vpack.c.b16 %v1047, %v1047
      %1052 = vst.msk [vmem:[#allocation2 + $0x18] sm:$0xf] %vm918, %v1048
      %1053 = vst.msk [vmem:[#allocation2 + $0x38] sm:$0xf] %vm918, %v1049
      %v1055 = vunpack.c.l.b16 %v908
      %v1056 = vunpack.c.h.b16 %v908
      %v1057 = vpack.c.b16 %v1055, %v1055
      %v1058 = vpack.c.b16 %v1056, %v1056
      %1059 = vrot.lane.b32.xlu0 %v1057, 64
      %v1060 = vpop.permute.xlu0 %1059
      %1061 = vrot.lane.b32.xlu0 %v1058, 64
      %v1062 = vpop.permute.xlu0 %1061
      %1065 = vst.msk [vmem:[#allocation2 + $0x18] sm:$0xf] %vm932, %v1060
      %1066 = vst.msk [vmem:[#allocation2 + $0x38] sm:$0xf] %vm932, %v1062
      %v1068 = vunpack.c.l.b16 %v909
      %v1069 = vunpack.c.h.b16 %v909
      %v1070 = vpack.c.b16 %v1068, %v1068
      %v1071 = vpack.c.b16 %v1069, %v1069
      %1074 = vst.msk [vmem:[#allocation2 + $0x1c] sm:$0xf] %vm918, %v1070
      %1075 = vst.msk [vmem:[#allocation2 + $0x3c] sm:$0xf] %vm918, %v1071
      %v1077 = vunpack.c.l.b16 %v910
      %v1078 = vunpack.c.h.b16 %v910
      %v1079 = vpack.c.b16 %v1077, %v1077
      %v1080 = vpack.c.b16 %v1078, %v1078
      %1081 = vrot.lane.b32.xlu0 %v1079, 64
      %v1082 = vpop.permute.xlu0 %1081
      %1083 = vrot.lane.b32.xlu0 %v1080, 64
      %v1084 = vpop.permute.xlu0 %1083
      %1087 = vst.msk [vmem:[#allocation2 + $0x1c] sm:$0xf] %vm932, %v1082
      %1088 = vst.msk [vmem:[#allocation2 + $0x3c] sm:$0xf] %vm932, %v1084
      %v1089 = vld [vmem:[#allocation2] sm:$0xff]
      %v1090 = vld [vmem:[#allocation2 + $0x8] sm:$0xff]
      %v1091 = vld [vmem:[#allocation2 + $0x10] sm:$0xff]
      %v1092 = vld [vmem:[#allocation2 + $0x18] sm:$0xff]
      %v1093 = vld [vmem:[#allocation2 + $0x20] sm:$0xff]
      %v1094 = vld [vmem:[#allocation2 + $0x28] sm:$0xff]
      %v1095 = vld [vmem:[#allocation2 + $0x30] sm:$0xff]
      %v1096 = vld [vmem:[#allocation2 + $0x38] sm:$0xff]
      %v1097 = vld [vmem:[%s2] sm:$0xf]
      %v1098 = vld [vmem:[%s2 + $0x4] sm:$0xf]
      %v1099 = vld [vmem:[%s2 + $0x8] sm:$0xf]
      %v1100 = vld [vmem:[%s2 + $0xc] sm:$0xf]
      %v1101 = vld [vmem:[%s2 + $0x10] sm:$0xf]
      %v1102 = vld [vmem:[%s2 + $0x14] sm:$0xf]
      %v1103 = vld [vmem:[%s2 + $0x18] sm:$0xf]
      %v1104 = vld [vmem:[%s2 + $0x1c] sm:$0xf]
      %v1105 = vld [vmem:[%s2 + $0x20] sm:$0xf]
      %v1106 = vld [vmem:[%s2 + $0x24] sm:$0xf]
      %v1107 = vld [vmem:[%s2 + $0x28] sm:$0xf]
      %v1108 = vld [vmem:[%s2 + $0x2c] sm:$0xf]
      %v1109 = vld [vmem:[%s2 + $0x30] sm:$0xf]
      %v1110 = vld [vmem:[%s2 + $0x34] sm:$0xf]
      %v1111 = vld [vmem:[%s2 + $0x38] sm:$0xf]
      %v1112 = vld [vmem:[%s2 + $0x3c] sm:$0xf]
      %v1113 = vld [vmem:[%s2 + $0x40] sm:$0xf]
      %v1114 = vld [vmem:[%s2 + $0x44] sm:$0xf]
      %v1115 = vld [vmem:[%s2 + $0x48] sm:$0xf]
      %v1116 = vld [vmem:[%s2 + $0x4c] sm:$0xf]
      %v1117 = vld [vmem:[%s2 + $0x50] sm:$0xf]
      %v1118 = vld [vmem:[%s2 + $0x54] sm:$0xf]
      %v1119 = vld [vmem:[%s2 + $0x58] sm:$0xf]
      %v1120 = vld [vmem:[%s2 + $0x5c] sm:$0xf]
      %v1121 = vld [vmem:[%s2 + $0x60] sm:$0xf]
      %v1122 = vld [vmem:[%s2 + $0x64] sm:$0xf]
      %v1123 = vld [vmem:[%s2 + $0x68] sm:$0xf]
      %v1124 = vld [vmem:[%s2 + $0x6c] sm:$0xf]
      %v1125 = vld [vmem:[%s2 + $0x70] sm:$0xf]
      %v1126 = vld [vmem:[%s2 + $0x74] sm:$0xf]
      %v1127 = vld [vmem:[%s2 + $0x78] sm:$0xf]
      %v1128 = vld [vmem:[%s2 + $0x7c] sm:$0xf]
      %v1129 = vld [vmem:[%s2 + $0x80] sm:$0xf]
      %v1130 = vld [vmem:[%s2 + $0x84] sm:$0xf]
      %v1131 = vld [vmem:[%s2 + $0x88] sm:$0xf]
      %v1132 = vld [vmem:[%s2 + $0x8c] sm:$0xf]
      %v1133 = vld [vmem:[%s2 + $0x90] sm:$0xf]
      %v1134 = vld [vmem:[%s2 + $0x94] sm:$0xf]
      %v1135 = vld [vmem:[%s2 + $0x98] sm:$0xf]
      %v1136 = vld [vmem:[%s2 + $0x9c] sm:$0xf]
      %v1137 = vld [vmem:[%s2 + $0xa0] sm:$0xf]
      %v1138 = vld [vmem:[%s2 + $0xa4] sm:$0xf]
      %v1139 = vld [vmem:[%s2 + $0xa8] sm:$0xf]
      %v1140 = vld [vmem:[%s2 + $0xac] sm:$0xf]
      %v1141 = vld [vmem:[%s2 + $0xb0] sm:$0xf]
      %v1142 = vld [vmem:[%s2 + $0xb4] sm:$0xf]
      %v1143 = vld [vmem:[%s2 + $0xb8] sm:$0xf]
      %v1144 = vld [vmem:[%s2 + $0xbc] sm:$0xf]
      %v1145 = vld [vmem:[%s2 + $0xc0] sm:$0xf]
      %v1146 = vld [vmem:[%s2 + $0xc4] sm:$0xf]
      %v1147 = vld [vmem:[%s2 + $0xc8] sm:$0xf]
      %v1148 = vld [vmem:[%s2 + $0xcc] sm:$0xf]
      %v1149 = vld [vmem:[%s2 + $0xd0] sm:$0xf]
      %v1150 = vld [vmem:[%s2 + $0xd4] sm:$0xf]
      %v1151 = vld [vmem:[%s2 + $0xd8] sm:$0xf]
      %v1152 = vld [vmem:[%s2 + $0xdc] sm:$0xf]
      %v1153 = vld [vmem:[%s2 + $0xe0] sm:$0xf]
      %v1154 = vld [vmem:[%s2 + $0xe4] sm:$0xf]
      %v1155 = vld [vmem:[%s2 + $0xe8] sm:$0xf]
      %v1156 = vld [vmem:[%s2 + $0xec] sm:$0xf]
      %v1157 = vld [vmem:[%s2 + $0xf0] sm:$0xf]
      %v1158 = vld [vmem:[%s2 + $0xf4] sm:$0xf]
      %v1159 = vld [vmem:[%s2 + $0xf8] sm:$0xf]
      %v1160 = vld [vmem:[%s2 + $0xfc] sm:$0xf]
      %v1161 = vld [vmem:[%s2 + $0x100] sm:$0xf]
      %v1162 = vld [vmem:[%s2 + $0x104] sm:$0xf]
      %v1163 = vld [vmem:[%s2 + $0x108] sm:$0xf]
      %v1164 = vld [vmem:[%s2 + $0x10c] sm:$0xf]
      %v1165 = vld [vmem:[%s2 + $0x110] sm:$0xf]
      %v1166 = vld [vmem:[%s2 + $0x114] sm:$0xf]
      %v1167 = vld [vmem:[%s2 + $0x118] sm:$0xf]
      %v1168 = vld [vmem:[%s2 + $0x11c] sm:$0xf]
      %v1169 = vld [vmem:[%s2 + $0x120] sm:$0xf]
      %v1170 = vld [vmem:[%s2 + $0x124] sm:$0xf]
      %v1171 = vld [vmem:[%s2 + $0x128] sm:$0xf]
      %v1172 = vld [vmem:[%s2 + $0x12c] sm:$0xf]
      %v1173 = vld [vmem:[%s2 + $0x130] sm:$0xf]
      %v1174 = vld [vmem:[%s2 + $0x134] sm:$0xf]
      %v1175 = vld [vmem:[%s2 + $0x138] sm:$0xf]
      %v1176 = vld [vmem:[%s2 + $0x13c] sm:$0xf]
      %v1177 = vld [vmem:[%s2 + $0x140] sm:$0xf]
      %v1178 = vld [vmem:[%s2 + $0x144] sm:$0xf]
      %v1179 = vld [vmem:[%s2 + $0x148] sm:$0xf]
      %v1180 = vld [vmem:[%s2 + $0x14c] sm:$0xf]
      %v1181 = vld [vmem:[%s2 + $0x150] sm:$0xf]
      %v1182 = vld [vmem:[%s2 + $0x154] sm:$0xf]
      %v1183 = vld [vmem:[%s2 + $0x158] sm:$0xf]
      %v1184 = vld [vmem:[%s2 + $0x15c] sm:$0xf]
      %v1185 = vld [vmem:[%s2 + $0x160] sm:$0xf]
      %v1186 = vld [vmem:[%s2 + $0x164] sm:$0xf]
      %v1187 = vld [vmem:[%s2 + $0x168] sm:$0xf]
      %v1188 = vld [vmem:[%s2 + $0x16c] sm:$0xf]
      %v1189 = vld [vmem:[%s2 + $0x170] sm:$0xf]
      %v1190 = vld [vmem:[%s2 + $0x174] sm:$0xf]
      %v1191 = vld [vmem:[%s2 + $0x178] sm:$0xf]
      %v1192 = vld [vmem:[%s2 + $0x17c] sm:$0xf]
      %v1193 = vld [vmem:[%s2 + $0x180] sm:$0xf]
      %v1194 = vld [vmem:[%s2 + $0x184] sm:$0xf]
      %v1195 = vld [vmem:[%s2 + $0x188] sm:$0xf]
      %v1196 = vld [vmem:[%s2 + $0x18c] sm:$0xf]
      %v1197 = vld [vmem:[%s2 + $0x190] sm:$0xf]
      %v1198 = vld [vmem:[%s2 + $0x194] sm:$0xf]
      %v1199 = vld [vmem:[%s2 + $0x198] sm:$0xf]
      %v1200 = vld [vmem:[%s2 + $0x19c] sm:$0xf]
      %v1201 = vld [vmem:[%s2 + $0x1a0] sm:$0xf]
      %v1202 = vld [vmem:[%s2 + $0x1a4] sm:$0xf]
      %v1203 = vld [vmem:[%s2 + $0x1a8] sm:$0xf]
      %v1204 = vld [vmem:[%s2 + $0x1ac] sm:$0xf]
      %v1205 = vld [vmem:[%s2 + $0x1b0] sm:$0xf]
      %v1206 = vld [vmem:[%s2 + $0x1b4] sm:$0xf]
      %v1207 = vld [vmem:[%s2 + $0x1b8] sm:$0xf]
      %v1208 = vld [vmem:[%s2 + $0x1bc] sm:$0xf]
      %v1209 = vld [vmem:[%s2 + $0x1c0] sm:$0xf]
      %v1210 = vld [vmem:[%s2 + $0x1c4] sm:$0xf]
      %v1211 = vld [vmem:[%s2 + $0x1c8] sm:$0xf]
      %v1212 = vld [vmem:[%s2 + $0x1cc] sm:$0xf]
      %v1213 = vld [vmem:[%s2 + $0x1d0] sm:$0xf]
      %v1214 = vld [vmem:[%s2 + $0x1d4] sm:$0xf]
      %v1215 = vld [vmem:[%s2 + $0x1d8] sm:$0xf]
      %v1216 = vld [vmem:[%s2 + $0x1dc] sm:$0xf]
      %v1217 = vld [vmem:[%s2 + $0x1e0] sm:$0xf]
      %v1218 = vld [vmem:[%s2 + $0x1e4] sm:$0xf]
      %v1219 = vld [vmem:[%s2 + $0x1e8] sm:$0xf]
      %v1220 = vld [vmem:[%s2 + $0x1ec] sm:$0xf]
      %v1221 = vld [vmem:[%s2 + $0x1f0] sm:$0xf]
      %v1222 = vld [vmem:[%s2 + $0x1f4] sm:$0xf]
      %v1223 = vld [vmem:[%s2 + $0x1f8] sm:$0xf]
      %v1224 = vld [vmem:[%s2 + $0x1fc] sm:$0xf]
      %v1233 = vunpack.c.l.b16 %v1089
      %v1234 = vunpack.c.h.b16 %v1089
      %v1235 = vunpack.c.l.b16 %v1090
      %v1236 = vunpack.c.h.b16 %v1090
      %v1237 = vunpack.c.l.b16 %v1091
      %v1238 = vunpack.c.h.b16 %v1091
      %v1239 = vunpack.c.l.b16 %v1092
      %v1240 = vunpack.c.h.b16 %v1092
      %v1241 = vunpack.c.l.b16 %v1093
      %v1242 = vunpack.c.h.b16 %v1093
      %v1243 = vunpack.c.l.b16 %v1094
      %v1244 = vunpack.c.h.b16 %v1094
      %v1245 = vunpack.c.l.b16 %v1095
      %v1246 = vunpack.c.h.b16 %v1095
      %v1247 = vunpack.c.l.b16 %v1096
      %v1248 = vunpack.c.h.b16 %v1096
      %v1249 = vpack.c.b16 %v1241, %v1233
      %v1250 = vpack.c.b16 %v1242, %v1234
      %v1251 = vpack.c.b16 %v1243, %v1235
      %v1252 = vpack.c.b16 %v1244, %v1236
      %v1253 = vpack.c.b16 %v1245, %v1237
      %v1254 = vpack.c.b16 %v1246, %v1238
      %v1255 = vpack.c.b16 %v1247, %v1239
      %v1256 = vpack.c.b16 %v1248, %v1240
      %v1393 = vunpack.c.l.b16 %v1097
      %v1394 = vunpack.c.l.b16 %v1098
      %v1395 = vunpack.c.l.b16 %v1099
      %v1396 = vunpack.c.l.b16 %v1100
      %v1397 = vunpack.c.l.b16 %v1101
      %v1398 = vunpack.c.l.b16 %v1102
      %v1399 = vunpack.c.l.b16 %v1103
      %v1400 = vunpack.c.l.b16 %v1104
      %v1401 = vunpack.c.l.b16 %v1105
      %v1402 = vunpack.c.l.b16 %v1106
      %v1403 = vunpack.c.l.b16 %v1107
      %v1404 = vunpack.c.l.b16 %v1108
      %v1405 = vunpack.c.l.b16 %v1109
      %v1406 = vunpack.c.l.b16 %v1110
      %v1407 = vunpack.c.l.b16 %v1111
      %v1408 = vunpack.c.l.b16 %v1112
      %v1409 = vunpack.c.l.b16 %v1113
      %v1410 = vunpack.c.l.b16 %v1114
      %v1411 = vunpack.c.l.b16 %v1115
      %v1412 = vunpack.c.l.b16 %v1116
      %v1413 = vunpack.c.l.b16 %v1117
      %v1414 = vunpack.c.l.b16 %v1118
      %v1415 = vunpack.c.l.b16 %v1119
      %v1416 = vunpack.c.l.b16 %v1120
      %v1417 = vunpack.c.l.b16 %v1121
      %v1418 = vunpack.c.l.b16 %v1122
      %v1419 = vunpack.c.l.b16 %v1123
      %v1420 = vunpack.c.l.b16 %v1124
      %v1421 = vunpack.c.l.b16 %v1125
      %v1422 = vunpack.c.l.b16 %v1126
      %v1423 = vunpack.c.l.b16 %v1127
      %v1424 = vunpack.c.l.b16 %v1128
      %v1425 = vunpack.c.l.b16 %v1129
      %v1426 = vunpack.c.l.b16 %v1130
      %v1427 = vunpack.c.l.b16 %v1131
      %v1428 = vunpack.c.l.b16 %v1132
      %v1429 = vunpack.c.l.b16 %v1133
      %v1430 = vunpack.c.l.b16 %v1134
      %v1431 = vunpack.c.l.b16 %v1135
      %v1432 = vunpack.c.l.b16 %v1136
      %v1433 = vunpack.c.l.b16 %v1137
      %v1434 = vunpack.c.l.b16 %v1138
      %v1435 = vunpack.c.l.b16 %v1139
      %v1436 = vunpack.c.l.b16 %v1140
      %v1437 = vunpack.c.l.b16 %v1141
      %v1438 = vunpack.c.l.b16 %v1142
      %v1439 = vunpack.c.l.b16 %v1143
      %v1440 = vunpack.c.l.b16 %v1144
      %v1441 = vunpack.c.l.b16 %v1145
      %v1442 = vunpack.c.l.b16 %v1146
      %v1443 = vunpack.c.l.b16 %v1147
      %v1444 = vunpack.c.l.b16 %v1148
      %v1445 = vunpack.c.l.b16 %v1149
      %v1446 = vunpack.c.l.b16 %v1150
      %v1447 = vunpack.c.l.b16 %v1151
      %v1448 = vunpack.c.l.b16 %v1152
      %v1449 = vunpack.c.l.b16 %v1153
      %v1450 = vunpack.c.l.b16 %v1154
      %v1451 = vunpack.c.l.b16 %v1155
      %v1452 = vunpack.c.l.b16 %v1156
      %v1453 = vunpack.c.l.b16 %v1157
      %v1454 = vunpack.c.l.b16 %v1158
      %v1455 = vunpack.c.l.b16 %v1159
      %v1456 = vunpack.c.l.b16 %v1160
      %v1457 = vunpack.c.l.b16 %v1161
      %v1458 = vunpack.c.l.b16 %v1162
      %v1459 = vunpack.c.l.b16 %v1163
      %v1460 = vunpack.c.l.b16 %v1164
      %v1461 = vunpack.c.l.b16 %v1165
      %v1462 = vunpack.c.l.b16 %v1166
      %v1463 = vunpack.c.l.b16 %v1167
      %v1464 = vunpack.c.l.b16 %v1168
      %v1465 = vunpack.c.l.b16 %v1169
      %v1466 = vunpack.c.l.b16 %v1170
      %v1467 = vunpack.c.l.b16 %v1171
      %v1468 = vunpack.c.l.b16 %v1172
      %v1469 = vunpack.c.l.b16 %v1173
      %v1470 = vunpack.c.l.b16 %v1174
      %v1471 = vunpack.c.l.b16 %v1175
      %v1472 = vunpack.c.l.b16 %v1176
      %v1473 = vunpack.c.l.b16 %v1177
      %v1474 = vunpack.c.l.b16 %v1178
      %v1475 = vunpack.c.l.b16 %v1179
      %v1476 = vunpack.c.l.b16 %v1180
      %v1477 = vunpack.c.l.b16 %v1181
      %v1478 = vunpack.c.l.b16 %v1182
      %v1479 = vunpack.c.l.b16 %v1183
      %v1480 = vunpack.c.l.b16 %v1184
      %v1481 = vunpack.c.l.b16 %v1185
      %v1482 = vunpack.c.l.b16 %v1186
      %v1483 = vunpack.c.l.b16 %v1187
      %v1484 = vunpack.c.l.b16 %v1188
      %v1485 = vunpack.c.l.b16 %v1189
      %v1486 = vunpack.c.l.b16 %v1190
      %v1487 = vunpack.c.l.b16 %v1191
      %v1488 = vunpack.c.l.b16 %v1192
      %v1489 = vunpack.c.l.b16 %v1193
      %v1490 = vunpack.c.l.b16 %v1194
      %v1491 = vunpack.c.l.b16 %v1195
      %v1492 = vunpack.c.l.b16 %v1196
      %v1493 = vunpack.c.l.b16 %v1197
      %v1494 = vunpack.c.l.b16 %v1198
      %v1495 = vunpack.c.l.b16 %v1199
      %v1496 = vunpack.c.l.b16 %v1200
      %v1497 = vunpack.c.l.b16 %v1201
      %v1498 = vunpack.c.l.b16 %v1202
      %v1499 = vunpack.c.l.b16 %v1203
      %v1500 = vunpack.c.l.b16 %v1204
      %v1501 = vunpack.c.l.b16 %v1205
      %v1502 = vunpack.c.l.b16 %v1206
      %v1503 = vunpack.c.l.b16 %v1207
      %v1504 = vunpack.c.l.b16 %v1208
      %v1505 = vunpack.c.l.b16 %v1209
      %v1506 = vunpack.c.l.b16 %v1210
      %v1507 = vunpack.c.l.b16 %v1211
      %v1508 = vunpack.c.l.b16 %v1212
      %v1509 = vunpack.c.l.b16 %v1213
      %v1510 = vunpack.c.l.b16 %v1214
      %v1511 = vunpack.c.l.b16 %v1215
      %v1512 = vunpack.c.l.b16 %v1216
      %v1513 = vunpack.c.l.b16 %v1217
      %v1514 = vunpack.c.l.b16 %v1218
      %v1515 = vunpack.c.l.b16 %v1219
      %v1516 = vunpack.c.l.b16 %v1220
      %v1517 = vunpack.c.l.b16 %v1221
      %v1518 = vunpack.c.l.b16 %v1222
      %v1519 = vunpack.c.l.b16 %v1223
      %v1520 = vunpack.c.l.b16 %v1224
      %v1521 = vpack.c.b16 %v1394, %v1393
      %v1522 = vpack.c.b16 %v1396, %v1395
      %v1523 = vpack.c.b16 %v1398, %v1397
      %v1524 = vpack.c.b16 %v1400, %v1399
      %v1525 = vpack.c.b16 %v1402, %v1401
      %v1526 = vpack.c.b16 %v1404, %v1403
      %v1527 = vpack.c.b16 %v1406, %v1405
      %v1528 = vpack.c.b16 %v1408, %v1407
      %v1529 = vpack.c.b16 %v1410, %v1409
      %v1530 = vpack.c.b16 %v1412, %v1411
      %v1531 = vpack.c.b16 %v1414, %v1413
      %v1532 = vpack.c.b16 %v1416, %v1415
      %v1533 = vpack.c.b16 %v1418, %v1417
      %v1534 = vpack.c.b16 %v1420, %v1419
      %v1535 = vpack.c.b16 %v1422, %v1421
      %v1536 = vpack.c.b16 %v1424, %v1423
      %v1537 = vpack.c.b16 %v1426, %v1425
      %v1538 = vpack.c.b16 %v1428, %v1427
      %v1539 = vpack.c.b16 %v1430, %v1429
      %v1540 = vpack.c.b16 %v1432, %v1431
      %v1541 = vpack.c.b16 %v1434, %v1433
      %v1542 = vpack.c.b16 %v1436, %v1435
      %v1543 = vpack.c.b16 %v1438, %v1437
      %v1544 = vpack.c.b16 %v1440, %v1439
      %v1545 = vpack.c.b16 %v1442, %v1441
      %v1546 = vpack.c.b16 %v1444, %v1443
      %v1547 = vpack.c.b16 %v1446, %v1445
      %v1548 = vpack.c.b16 %v1448, %v1447
      %v1549 = vpack.c.b16 %v1450, %v1449
      %v1550 = vpack.c.b16 %v1452, %v1451
      %v1551 = vpack.c.b16 %v1454, %v1453
      %v1552 = vpack.c.b16 %v1456, %v1455
      %v1553 = vpack.c.b16 %v1458, %v1457
      %v1554 = vpack.c.b16 %v1460, %v1459
      %v1555 = vpack.c.b16 %v1462, %v1461
      %v1556 = vpack.c.b16 %v1464, %v1463
      %v1557 = vpack.c.b16 %v1466, %v1465
      %v1558 = vpack.c.b16 %v1468, %v1467
      %v1559 = vpack.c.b16 %v1470, %v1469
      %v1560 = vpack.c.b16 %v1472, %v1471
      %v1561 = vpack.c.b16 %v1474, %v1473
      %v1562 = vpack.c.b16 %v1476, %v1475
      %v1563 = vpack.c.b16 %v1478, %v1477
      %v1564 = vpack.c.b16 %v1480, %v1479
      %v1565 = vpack.c.b16 %v1482, %v1481
      %v1566 = vpack.c.b16 %v1484, %v1483
      %v1567 = vpack.c.b16 %v1486, %v1485
      %v1568 = vpack.c.b16 %v1488, %v1487
      %v1569 = vpack.c.b16 %v1490, %v1489
      %v1570 = vpack.c.b16 %v1492, %v1491
      %v1571 = vpack.c.b16 %v1494, %v1493
      %v1572 = vpack.c.b16 %v1496, %v1495
      %v1573 = vpack.c.b16 %v1498, %v1497
      %v1574 = vpack.c.b16 %v1500, %v1499
      %v1575 = vpack.c.b16 %v1502, %v1501
      %v1576 = vpack.c.b16 %v1504, %v1503
      %v1577 = vpack.c.b16 %v1506, %v1505
      %v1578 = vpack.c.b16 %v1508, %v1507
      %v1579 = vpack.c.b16 %v1510, %v1509
      %v1580 = vpack.c.b16 %v1512, %v1511
      %v1581 = vpack.c.b16 %v1514, %v1513
      %v1582 = vpack.c.b16 %v1516, %v1515
      %v1583 = vpack.c.b16 %v1518, %v1517
      %v1584 = vpack.c.b16 %v1520, %v1519
      %1649 = vmatprep.subr.bf16.mxu0 0
      %1650 = vmatpush1.bf16.msra.mxu0 %v1528
      %1651 = vmatprep.subr.bf16.mxu0 0
      %1652 = vmatpush1.bf16.msra.mxu0 %v1527
      %1653 = vmatprep.subr.bf16.mxu0 0
      %1654 = vmatpush1.bf16.msra.mxu0 %v1526
      %1655 = vmatprep.subr.bf16.mxu0 0
      %1656 = vmatpush1.bf16.msra.mxu0 %v1525
      %1657 = vmatprep.subr.bf16.mxu0 0
      %1658 = vmatpush1.bf16.msra.mxu0 %v1524
      %1659 = vmatprep.subr.bf16.mxu0 0
      %1660 = vmatpush1.bf16.msra.mxu0 %v1523
      %1661 = vmatprep.subr.bf16.mxu0 0
      %1662 = vmatpush1.bf16.msra.mxu0 %v1522
      %1663 = vmatprep.subr.bf16.mxu0 0
      %1664 = vmatpush1.bf16.msra.mxu0 %v1521
      %1665 = vmatprep.subr.bf16.mxu0 0
      %1666 = vmatpush2.bf16.msra.mxu0 %v1536
      %1667 = vmatprep.subr.bf16.mxu0 0
      %1668 = vmatpush2.bf16.msra.mxu0 %v1535
      %1669 = vmatprep.subr.bf16.mxu0 0
      %1670 = vmatpush2.bf16.msra.mxu0 %v1534
      %1671 = vmatprep.subr.bf16.mxu0 0
      %1672 = vmatpush2.bf16.msra.mxu0 %v1533
      %1673 = vmatprep.subr.bf16.mxu0 0
      %1674 = vmatpush2.bf16.msra.mxu0 %v1532
      %1675 = vmatprep.subr.bf16.mxu0 0
      %1676 = vmatpush2.bf16.msra.mxu0 %v1531
      %1677 = vmatprep.subr.bf16.mxu0 0
      %1678 = vmatpush2.bf16.msra.mxu0 %v1530
      %1679 = vmatprep.subr.bf16.mxu0 0
      %1680 = vmatpush2.bf16.msra.mxu0 %v1529
      %1681 = vmatprep.mubr.bf16.mxu0 %v1250
      %1682 = vmatmul.mubr.bf16.gmra.mxu0 %v1249
      %v1683 = vpop.f32.mrf.mxu0
      %v1684 = vadd.f32 0.0, %v1683
      %v1685 = vpop.f32.mrf.mxu0
      %v1686 = vpop.f32.mrf.mxu0
      %v1687 = vadd.f32 0.0, %v1686
      %v1688 = vpop.f32.mrf.mxu0
      %1689 = vdwg.mxu0
      %1690 = vmatprep.subr.bf16.mxu0 0
      %1691 = vmatpush1.bf16.msra.mxu0 %v1544
      %1692 = vmatprep.subr.bf16.mxu0 0
      %1693 = vmatpush1.bf16.msra.mxu0 %v1543
      %1694 = vmatprep.subr.bf16.mxu0 0
      %1695 = vmatpush1.bf16.msra.mxu0 %v1542
      %1696 = vmatprep.subr.bf16.mxu0 0
      %1697 = vmatpush1.bf16.msra.mxu0 %v1541
      %1698 = vmatprep.subr.bf16.mxu0 0
      %1699 = vmatpush1.bf16.msra.mxu0 %v1540
      %1700 = vmatprep.subr.bf16.mxu0 0
      %1701 = vmatpush1.bf16.msra.mxu0 %v1539
      %1702 = vmatprep.subr.bf16.mxu0 0
      %1703 = vmatpush1.bf16.msra.mxu0 %v1538
      %1704 = vmatprep.subr.bf16.mxu0 0
      %1705 = vmatpush1.bf16.msra.mxu0 %v1537
      %1706 = vmatprep.subr.bf16.mxu0 0
      %1707 = vmatpush2.bf16.msra.mxu0 %v1552
      %1708 = vmatprep.subr.bf16.mxu0 0
      %1709 = vmatpush2.bf16.msra.mxu0 %v1551
      %1710 = vmatprep.subr.bf16.mxu0 0
      %1711 = vmatpush2.bf16.msra.mxu0 %v1550
      %1712 = vmatprep.subr.bf16.mxu0 0
      %1713 = vmatpush2.bf16.msra.mxu0 %v1549
      %1714 = vmatprep.subr.bf16.mxu0 0
      %1715 = vmatpush2.bf16.msra.mxu0 %v1548
      %1716 = vmatprep.subr.bf16.mxu0 0
      %1717 = vmatpush2.bf16.msra.mxu0 %v1547
      %1718 = vmatprep.subr.bf16.mxu0 0
      %1719 = vmatpush2.bf16.msra.mxu0 %v1546
      %1720 = vmatprep.subr.bf16.mxu0 0
      %1721 = vmatpush2.bf16.msra.mxu0 %v1545
      %1722 = vmatprep.mubr.bf16.mxu0 %v1252
      %1723 = vmatmul.mubr.bf16.gmra.mxu0 %v1251
      %v1724 = vpop.f32.mrf.mxu0
      %v1725 = vadd.f32 %v1684, %v1724
      %v1726 = vpop.f32.mrf.mxu0
      %v1727 = vpop.f32.mrf.mxu0
      %v1728 = vadd.f32 %v1687, %v1727
      %v1729 = vpop.f32.mrf.mxu0
      %1730 = vdwg.mxu0
      %1731 = vmatprep.subr.bf16.mxu0 0
      %1732 = vmatpush1.bf16.msra.mxu0 %v1560
      %1733 = vmatprep.subr.bf16.mxu0 0
      %1734 = vmatpush1.bf16.msra.mxu0 %v1559
      %1735 = vmatprep.subr.bf16.mxu0 0
      %1736 = vmatpush1.bf16.msra.mxu0 %v1558
      %1737 = vmatprep.subr.bf16.mxu0 0
      %1738 = vmatpush1.bf16.msra.mxu0 %v1557
      %1739 = vmatprep.subr.bf16.mxu0 0
      %1740 = vmatpush1.bf16.msra.mxu0 %v1556
      %1741 = vmatprep.subr.bf16.mxu0 0
      %1742 = vmatpush1.bf16.msra.mxu0 %v1555
      %1743 = vmatprep.subr.bf16.mxu0 0
      %1744 = vmatpush1.bf16.msra.mxu0 %v1554
      %1745 = vmatprep.subr.bf16.mxu0 0
      %1746 = vmatpush1.bf16.msra.mxu0 %v1553
      %1747 = vmatprep.subr.bf16.mxu0 0
      %1748 = vmatpush2.bf16.msra.mxu0 %v1568
      %1749 = vmatprep.subr.bf16.mxu0 0
      %1750 = vmatpush2.bf16.msra.mxu0 %v1567
      %1751 = vmatprep.subr.bf16.mxu0 0
      %1752 = vmatpush2.bf16.msra.mxu0 %v1566
      %1753 = vmatprep.subr.bf16.mxu0 0
      %1754 = vmatpush2.bf16.msra.mxu0 %v1565
      %1755 = vmatprep.subr.bf16.mxu0 0
      %1756 = vmatpush2.bf16.msra.mxu0 %v1564
      %1757 = vmatprep.subr.bf16.mxu0 0
      %1758 = vmatpush2.bf16.msra.mxu0 %v1563
      %1759 = vmatprep.subr.bf16.mxu0 0
      %1760 = vmatpush2.bf16.msra.mxu0 %v1562
      %1761 = vmatprep.subr.bf16.mxu0 0
      %1762 = vmatpush2.bf16.msra.mxu0 %v1561
      %1763 = vmatprep.mubr.bf16.mxu0 %v1254
      %1764 = vmatmul.mubr.bf16.gmra.mxu0 %v1253
      %v1765 = vpop.f32.mrf.mxu0
      %v1766 = vadd.f32 %v1725, %v1765
      %v1767 = vpop.f32.mrf.mxu0
      %v1768 = vpop.f32.mrf.mxu0
      %v1769 = vadd.f32 %v1728, %v1768
      %v1770 = vpop.f32.mrf.mxu0
      %1771 = vdwg.mxu0
      %1772 = vmatprep.subr.bf16.mxu0 0
      %1773 = vmatpush1.bf16.msra.mxu0 %v1576
      %1774 = vmatprep.subr.bf16.mxu0 0
      %1775 = vmatpush1.bf16.msra.mxu0 %v1575
      %1776 = vmatprep.subr.bf16.mxu0 0
      %1777 = vmatpush1.bf16.msra.mxu0 %v1574
      %1778 = vmatprep.subr.bf16.mxu0 0
      %1779 = vmatpush1.bf16.msra.mxu0 %v1573
      %1780 = vmatprep.subr.bf16.mxu0 0
      %1781 = vmatpush1.bf16.msra.mxu0 %v1572
      %1782 = vmatprep.subr.bf16.mxu0 0
      %1783 = vmatpush1.bf16.msra.mxu0 %v1571
      %1784 = vmatprep.subr.bf16.mxu0 0
      %1785 = vmatpush1.bf16.msra.mxu0 %v1570
      %1786 = vmatprep.subr.bf16.mxu0 0
      %1787 = vmatpush1.bf16.msra.mxu0 %v1569
      %1788 = vmatprep.subr.bf16.mxu0 0
      %1789 = vmatpush2.bf16.msra.mxu0 %v1584
      %1790 = vmatprep.subr.bf16.mxu0 0
      %1791 = vmatpush2.bf16.msra.mxu0 %v1583
      %1792 = vmatprep.subr.bf16.mxu0 0
      %1793 = vmatpush2.bf16.msra.mxu0 %v1582
      %1794 = vmatprep.subr.bf16.mxu0 0
      %1795 = vmatpush2.bf16.msra.mxu0 %v1581
      %1796 = vmatprep.subr.bf16.mxu0 0
      %1797 = vmatpush2.bf16.msra.mxu0 %v1580
      %1798 = vmatprep.subr.bf16.mxu0 0
      %1799 = vmatpush2.bf16.msra.mxu0 %v1579
      %1800 = vmatprep.subr.bf16.mxu0 0
      %1801 = vmatpush2.bf16.msra.mxu0 %v1578
      %1802 = vmatprep.subr.bf16.mxu0 0
      %1803 = vmatpush2.bf16.msra.mxu0 %v1577
      %1804 = vmatprep.mubr.bf16.mxu0 %v1256
      %1805 = vmatmul.mubr.bf16.gmra.mxu0 %v1255
      %v1806 = vpop.f32.mrf.mxu0
      %v1807 = vadd.f32 %v1766, %v1806
      %v1808 = vpop.f32.mrf.mxu0
      %v1809 = vpop.f32.mrf.mxu0
      %v1810 = vadd.f32 %v1769, %v1809
      %v1811 = vpop.f32.mrf.mxu0
      %1812 = vdwg.mxu0
      %v1813 = vld [vmem:[%s5] sm:$0x1]
      %v1815 = vlaneseq
      %v1816 = vshrl.u32 %v1815, 7
      %v1817 = vsub.s32 0, %v1816
      %v1818 = vrot.slane %v1813, %v1817
      %v1820 = vmul.f32 %v1807, %v1818
      %v1821 = vmul.f32 %v1810, %v1818
      %v1822 = vld [vmem:[%s6] sm:$0x1]
      %v1824 = vlaneseq
      %v1825 = vshrl.u32 %v1824, 7
      %v1826 = vsub.s32 0, %v1825
      %v1827 = vrot.slane %v1822, %v1826
      %v1829 = vadd.f32 %v1820, %v1827
      %v1830 = vadd.f32 %v1821, %v1827
      %vm1831 = vcmp.ge.f32.partialorder %v1829, 0.0
      %vm1832 = vcmp.ge.f32.partialorder %v1830, 0.0
      %v1833 = vmul.f32 %v1829, 0.2
      %v1834 = vmul.f32 %v1830, 0.2
      %v1835 = vsel %vm1831, %v1829, %v1833
      %v1836 = vsel %vm1832, %v1830, %v1834
      %v1837 = vpack.c.bf16 %v1836, %v1835
      %v1838 = vld [vmem:[%s10] sm:$0xf]
      %v1839 = vld [vmem:[%s10 + $0x4] sm:$0xf]
      %v1840 = vld [vmem:[%s10 + $0x8] sm:$0xf]
      %v1841 = vld [vmem:[%s10 + $0xc] sm:$0xf]
      %v1842 = vld [vmem:[%s10 + $0x10] sm:$0xf]
      %v1843 = vld [vmem:[%s10 + $0x14] sm:$0xf]
      %v1844 = vld [vmem:[%s10 + $0x18] sm:$0xf]
      %v1845 = vld [vmem:[%s10 + $0x1c] sm:$0xf]
      %v1846 = vld [vmem:[%s10 + $0x20] sm:$0xf]
      %v1847 = vld [vmem:[%s10 + $0x24] sm:$0xf]
      %v1848 = vld [vmem:[%s10 + $0x28] sm:$0xf]
      %v1849 = vld [vmem:[%s10 + $0x2c] sm:$0xf]
      %v1850 = vld [vmem:[%s10 + $0x30] sm:$0xf]
      %v1851 = vld [vmem:[%s10 + $0x34] sm:$0xf]
      %v1852 = vld [vmem:[%s10 + $0x38] sm:$0xf]
      %v1853 = vld [vmem:[%s10 + $0x3c] sm:$0xf]
      %v1854 = vld [vmem:[%s10 + $0x40] sm:$0xf]
      %v1855 = vld [vmem:[%s10 + $0x44] sm:$0xf]
      %v1874 = vunpack.c.l.b16 %v1838
      %v1875 = vunpack.c.l.b16 %v1839
      %v1876 = vunpack.c.l.b16 %v1840
      %v1877 = vunpack.c.l.b16 %v1841
      %v1878 = vunpack.c.l.b16 %v1842
      %v1879 = vunpack.c.l.b16 %v1843
      %v1880 = vunpack.c.l.b16 %v1844
      %v1881 = vunpack.c.l.b16 %v1845
      %v1882 = vunpack.c.l.b16 %v1846
      %v1883 = vunpack.c.l.b16 %v1847
      %v1884 = vunpack.c.l.b16 %v1848
      %v1885 = vunpack.c.l.b16 %v1849
      %v1886 = vunpack.c.l.b16 %v1850
      %v1887 = vunpack.c.l.b16 %v1851
      %v1888 = vunpack.c.l.b16 %v1852
      %v1889 = vunpack.c.l.b16 %v1853
      %v1890 = vunpack.c.l.b16 %v1854
      %v1891 = vunpack.c.l.b16 %v1855
      %v1892 = vpack.c.b16 %v1875, %v1874
      %v1893 = vpack.c.b16 %v1877, %v1876
      %v1894 = vpack.c.b16 %v1879, %v1878
      %v1895 = vpack.c.b16 %v1881, %v1880
      %v1896 = vpack.c.b16 %v1883, %v1882
      %v1897 = vpack.c.b16 %v1885, %v1884
      %v1898 = vpack.c.b16 %v1887, %v1886
      %v1899 = vpack.c.b16 %v1889, %v1888
      %v1900 = vpack.c.b16 %v1891, %v1890
      %vm1901 = vcmask 130048
      %v1903 = vsel %vm1901, %v1892, 0
      %v1906 = vsel %vm1901, %v1893, 0
      %v1909 = vsel %vm1901, %v1894, 0
      %v1912 = vsel %vm1901, %v1895, 0
      %v1915 = vsel %vm1901, %v1896, 0
      %v1918 = vsel %vm1901, %v1897, 0
      %v1921 = vsel %vm1901, %v1898, 0
      %v1924 = vsel %vm1901, %v1899, 0
      %v1927 = vsel %vm1901, %v1900, 0
      %1929 = vmatprep.subr.bf16.mxu0 0
      %1930 = vmatpush1.bf16.msra.mxu0 0
      %1931 = vmatprep.subr.bf16.mxu0 0
      %1932 = vmatpush1.bf16.msra.mxu0 0
      %1933 = vmatprep.subr.bf16.mxu0 0
      %1934 = vmatpush1.bf16.msra.mxu0 0
      %1935 = vmatprep.subr.bf16.mxu0 0
      %1936 = vmatpush1.bf16.msra.mxu0 0
      %1937 = vmatprep.subr.bf16.mxu0 0
      %1938 = vmatpush1.bf16.msra.mxu0 0
      %1939 = vmatprep.subr.bf16.mxu0 0
      %1940 = vmatpush1.bf16.msra.mxu0 0
      %1941 = vmatprep.subr.bf16.mxu0 0
      %1942 = vmatpush1.bf16.msra.mxu0 0
      %1943 = vmatprep.subr.bf16.mxu0 0
      %1944 = vmatpush1.bf16.msra.mxu0 %v1837
      %1945 = vmatprep.subr.bf16.mxu0 0
      %1946 = vmatpush2.bf16.msra.mxu0 0
      %1947 = vmatprep.subr.bf16.mxu0 0
      %1948 = vmatpush2.bf16.msra.mxu0 0
      %1949 = vmatprep.subr.bf16.mxu0 0
      %1950 = vmatpush2.bf16.msra.mxu0 0
      %1951 = vmatprep.subr.bf16.mxu0 0
      %1952 = vmatpush2.bf16.msra.mxu0 0
      %1953 = vmatprep.subr.bf16.mxu0 0
      %1954 = vmatpush2.bf16.msra.mxu0 0
      %1955 = vmatprep.subr.bf16.mxu0 0
      %1956 = vmatpush2.bf16.msra.mxu0 0
      %1957 = vmatprep.subr.bf16.mxu0 0
      %1958 = vmatpush2.bf16.msra.mxu0 0
      %1959 = vmatprep.subr.bf16.mxu0 0
      %1960 = vmatpush2.bf16.msra.mxu0 0
      %1961 = vmatprep.mubr.bf16.mxu0 0
      %1962 = vmatmul.mubr.bf16.gmra.mxu0 %v1903
      %v1963 = vpop.f32.mrf.mxu0
      %v1964 = vadd.f32 0.0, %v1963
      %v1965 = vpop.f32.mrf.mxu0
      %v1966 = vpop.f32.mrf.mxu0
      %v1967 = vadd.f32 0.0, %v1966
      %v1968 = vpop.f32.mrf.mxu0
      %1969 = vmatprep.mubr.bf16.mxu0 0
      %1970 = vmatmul.mubr.bf16.gmra.mxu0 %v1906
      %v1971 = vpop.f32.mrf.mxu0
      %v1972 = vadd.f32 0.0, %v1971
      %v1973 = vpop.f32.mrf.mxu0
      %v1974 = vpop.f32.mrf.mxu0
      %v1975 = vadd.f32 0.0, %v1974
      %v1976 = vpop.f32.mrf.mxu0
      %1977 = vmatprep.mubr.bf16.mxu0 0
      %1978 = vmatmul.mubr.bf16.gmra.mxu0 %v1909
      %v1979 = vpop.f32.mrf.mxu0
      %v1980 = vadd.f32 0.0, %v1979
      %v1981 = vpop.f32.mrf.mxu0
      %v1982 = vpop.f32.mrf.mxu0
      %v1983 = vadd.f32 0.0, %v1982
      %v1984 = vpop.f32.mrf.mxu0
      %1985 = vmatprep.mubr.bf16.mxu0 0
      %1986 = vmatmul.mubr.bf16.gmra.mxu0 %v1912
      %v1987 = vpop.f32.mrf.mxu0
      %v1988 = vadd.f32 0.0, %v1987
      %v1989 = vpop.f32.mrf.mxu0
      %v1990 = vpop.f32.mrf.mxu0
      %v1991 = vadd.f32 0.0, %v1990
      %v1992 = vpop.f32.mrf.mxu0
      %1993 = vmatprep.mubr.bf16.mxu0 0
      %1994 = vmatmul.mubr.bf16.gmra.mxu0 %v1915
      %v1995 = vpop.f32.mrf.mxu0
      %v1996 = vadd.f32 0.0, %v1995
      %v1997 = vpop.f32.mrf.mxu0
      %v1998 = vpop.f32.mrf.mxu0
      %v1999 = vadd.f32 0.0, %v1998
      %v2000 = vpop.f32.mrf.mxu0
      %2001 = vmatprep.mubr.bf16.mxu0 0
      %2002 = vmatmul.mubr.bf16.gmra.mxu0 %v1918
      %v2003 = vpop.f32.mrf.mxu0
      %v2004 = vadd.f32 0.0, %v2003
      %v2005 = vpop.f32.mrf.mxu0
      %v2006 = vpop.f32.mrf.mxu0
      %v2007 = vadd.f32 0.0, %v2006
      %v2008 = vpop.f32.mrf.mxu0
      %2009 = vmatprep.mubr.bf16.mxu0 0
      %2010 = vmatmul.mubr.bf16.gmra.mxu0 %v1921
      %v2011 = vpop.f32.mrf.mxu0
      %v2012 = vadd.f32 0.0, %v2011
      %v2013 = vpop.f32.mrf.mxu0
      %v2014 = vpop.f32.mrf.mxu0
      %v2015 = vadd.f32 0.0, %v2014
      %v2016 = vpop.f32.mrf.mxu0
      %2017 = vmatprep.mubr.bf16.mxu0 0
      %2018 = vmatmul.mubr.bf16.gmra.mxu0 %v1924
      %v2019 = vpop.f32.mrf.mxu0
      %v2020 = vadd.f32 0.0, %v2019
      %v2021 = vpop.f32.mrf.mxu0
      %v2022 = vpop.f32.mrf.mxu0
      %v2023 = vadd.f32 0.0, %v2022
      %v2024 = vpop.f32.mrf.mxu0
      %2025 = vmatprep.mubr.bf16.mxu0 0
      %2026 = vmatmul.mubr.bf16.gmra.mxu0 %v1927
      %v2027 = vpop.f32.mrf.mxu0
      %v2028 = vadd.f32 0.0, %v2027
      %v2029 = vpop.f32.mrf.mxu0
      %v2030 = vpop.f32.mrf.mxu0
      %v2031 = vadd.f32 0.0, %v2030
      %v2032 = vpop.f32.mrf.mxu0
      %2033 = vdwg.mxu0
      %v2034 = vpack.c.bf16 %v1967, %v1964
      %v2035 = vpack.c.bf16 %v1975, %v1972
      %v2036 = vpack.c.bf16 %v1983, %v1980
      %v2037 = vpack.c.bf16 %v1991, %v1988
      %v2038 = vpack.c.bf16 %v1999, %v1996
      %v2039 = vpack.c.bf16 %v2007, %v2004
      %v2040 = vpack.c.bf16 %v2015, %v2012
      %v2041 = vpack.c.bf16 %v2023, %v2020
      %v2042 = vpack.c.bf16 %v2031, %v2028
      %v2044 = vunpack.c.l.b16 %v2034
      %v2045 = vunpack.c.h.b16 %v2034
      %v2046 = vpack.c.b16 %v2044, %v2044
      %v2047 = vpack.c.b16 %v2045, %v2045
      %2050 = vst [vmem:[#allocation3] sm:$0xf] %v2046
      %2051 = vst [vmem:[#allocation3 + $0x24] sm:$0xf] %v2047
      %v2053 = vunpack.c.l.b16 %v2035
      %v2054 = vunpack.c.h.b16 %v2035
      %v2055 = vpack.c.b16 %v2053, %v2053
      %v2056 = vpack.c.b16 %v2054, %v2054
      %2059 = vst [vmem:[#allocation3 + $0x4] sm:$0xf] %v2055
      %2060 = vst [vmem:[#allocation3 + $0x28] sm:$0xf] %v2056
      %v2062 = vunpack.c.l.b16 %v2036
      %v2063 = vunpack.c.h.b16 %v2036
      %v2064 = vpack.c.b16 %v2062, %v2062
      %v2065 = vpack.c.b16 %v2063, %v2063
      %2068 = vst [vmem:[#allocation3 + $0x8] sm:$0xf] %v2064
      %2069 = vst [vmem:[#allocation3 + $0x2c] sm:$0xf] %v2065
      %v2071 = vunpack.c.l.b16 %v2037
      %v2072 = vunpack.c.h.b16 %v2037
      %v2073 = vpack.c.b16 %v2071, %v2071
      %v2074 = vpack.c.b16 %v2072, %v2072
      %2077 = vst [vmem:[#allocation3 + $0xc] sm:$0xf] %v2073
      %2078 = vst [vmem:[#allocation3 + $0x30] sm:$0xf] %v2074
      %v2080 = vunpack.c.l.b16 %v2038
      %v2081 = vunpack.c.h.b16 %v2038
      %v2082 = vpack.c.b16 %v2080, %v2080
      %v2083 = vpack.c.b16 %v2081, %v2081
      %2086 = vst [vmem:[#allocation3 + $0x10] sm:$0xf] %v2082
      %2087 = vst [vmem:[#allocation3 + $0x34] sm:$0xf] %v2083
      %v2089 = vunpack.c.l.b16 %v2039
      %v2090 = vunpack.c.h.b16 %v2039
      %v2091 = vpack.c.b16 %v2089, %v2089
      %v2092 = vpack.c.b16 %v2090, %v2090
      %2095 = vst [vmem:[#allocation3 + $0x14] sm:$0xf] %v2091
      %2096 = vst [vmem:[#allocation3 + $0x38] sm:$0xf] %v2092
      %v2098 = vunpack.c.l.b16 %v2040
      %v2099 = vunpack.c.h.b16 %v2040
      %v2100 = vpack.c.b16 %v2098, %v2098
      %v2101 = vpack.c.b16 %v2099, %v2099
      %2104 = vst [vmem:[#allocation3 + $0x18] sm:$0xf] %v2100
      %2105 = vst [vmem:[#allocation3 + $0x3c] sm:$0xf] %v2101
      %v2107 = vunpack.c.l.b16 %v2041
      %v2108 = vunpack.c.h.b16 %v2041
      %v2109 = vpack.c.b16 %v2107, %v2107
      %v2110 = vpack.c.b16 %v2108, %v2108
      %2113 = vst [vmem:[#allocation3 + $0x1c] sm:$0xf] %v2109
      %2114 = vst [vmem:[#allocation3 + $0x40] sm:$0xf] %v2110
      %v2116 = vunpack.c.l.b16 %v2042
      %v2117 = vunpack.c.h.b16 %v2042
      %v2118 = vpack.c.b16 %v2116, %v2116
      %v2119 = vpack.c.b16 %v2117, %v2117
      %2122 = vst [vmem:[#allocation3 + $0x20] sm:$0xf] %v2118
      %2123 = vst [vmem:[#allocation3 + $0x44] sm:$0xf] %v2119
      %v2124 = vld [vmem:[#allocation3] sm:$0xff]
      %v2125 = vld [vmem:[#allocation3 + $0x8] sm:$0xff]
      %v2126 = vld [vmem:[#allocation3 + $0x10] sm:$0xff]
      %v2127 = vld [vmem:[#allocation3 + $0x18] sm:$0xff]
      %v2128 = vld [vmem:[#allocation3 + $0x20] sm:$0xf]
      %v2129 = vld [vmem:[#allocation3 + $0x24] sm:$0xff]
      %v2130 = vld [vmem:[#allocation3 + $0x2c] sm:$0xff]
      %v2131 = vld [vmem:[#allocation3 + $0x34] sm:$0xff]
      %v2132 = vld [vmem:[#allocation3 + $0x3c] sm:$0xff]
      %v2133 = vld [vmem:[#allocation3 + $0x44] sm:$0xf]
      %v2134 = vld [vmem:[%s3] sm:$0xf]
      %v2135 = vld [vmem:[%s3 + $0x4] sm:$0xf]
      %v2136 = vld [vmem:[%s3 + $0x8] sm:$0xf]
      %v2137 = vld [vmem:[%s3 + $0xc] sm:$0xf]
      %v2138 = vld [vmem:[%s3 + $0x10] sm:$0xf]
      %v2139 = vld [vmem:[%s3 + $0x14] sm:$0xf]
      %v2140 = vld [vmem:[%s3 + $0x18] sm:$0xf]
      %v2141 = vld [vmem:[%s3 + $0x1c] sm:$0xf]
      %v2142 = vld [vmem:[%s3 + $0x20] sm:$0xf]
      %v2143 = vld [vmem:[%s3 + $0x24] sm:$0xf]
      %v2144 = vld [vmem:[%s3 + $0x28] sm:$0xf]
      %v2145 = vld [vmem:[%s3 + $0x2c] sm:$0xf]
      %v2146 = vld [vmem:[%s3 + $0x30] sm:$0xf]
      %v2147 = vld [vmem:[%s3 + $0x34] sm:$0xf]
      %v2148 = vld [vmem:[%s3 + $0x38] sm:$0xf]
      %v2149 = vld [vmem:[%s3 + $0x3c] sm:$0xf]
      %v2150 = vld [vmem:[%s3 + $0x40] sm:$0xf]
      %v2151 = vld [vmem:[%s3 + $0x44] sm:$0xf]
      %v2152 = vld [vmem:[%s3 + $0x48] sm:$0xf]
      %v2153 = vld [vmem:[%s3 + $0x4c] sm:$0xf]
      %v2154 = vld [vmem:[%s3 + $0x50] sm:$0xf]
      %v2155 = vld [vmem:[%s3 + $0x54] sm:$0xf]
      %v2156 = vld [vmem:[%s3 + $0x58] sm:$0xf]
      %v2157 = vld [vmem:[%s3 + $0x5c] sm:$0xf]
      %v2158 = vld [vmem:[%s3 + $0x60] sm:$0xf]
      %v2159 = vld [vmem:[%s3 + $0x64] sm:$0xf]
      %v2160 = vld [vmem:[%s3 + $0x68] sm:$0xf]
      %v2161 = vld [vmem:[%s3 + $0x6c] sm:$0xf]
      %v2162 = vld [vmem:[%s3 + $0x70] sm:$0xf]
      %v2163 = vld [vmem:[%s3 + $0x74] sm:$0xf]
      %v2164 = vld [vmem:[%s3 + $0x78] sm:$0xf]
      %v2165 = vld [vmem:[%s3 + $0x7c] sm:$0xf]
      %v2166 = vld [vmem:[%s3 + $0x80] sm:$0xf]
      %v2167 = vld [vmem:[%s3 + $0x84] sm:$0xf]
      %v2168 = vld [vmem:[%s3 + $0x88] sm:$0xf]
      %v2169 = vld [vmem:[%s3 + $0x8c] sm:$0xf]
      %v2170 = vld [vmem:[%s3 + $0x90] sm:$0xf]
      %v2171 = vld [vmem:[%s3 + $0x94] sm:$0xf]
      %v2172 = vld [vmem:[%s3 + $0x98] sm:$0xf]
      %v2173 = vld [vmem:[%s3 + $0x9c] sm:$0xf]
      %v2174 = vld [vmem:[%s3 + $0xa0] sm:$0xf]
      %v2175 = vld [vmem:[%s3 + $0xa4] sm:$0xf]
      %v2176 = vld [vmem:[%s3 + $0xa8] sm:$0xf]
      %v2177 = vld [vmem:[%s3 + $0xac] sm:$0xf]
      %v2178 = vld [vmem:[%s3 + $0xb0] sm:$0xf]
      %v2179 = vld [vmem:[%s3 + $0xb4] sm:$0xf]
      %v2180 = vld [vmem:[%s3 + $0xb8] sm:$0xf]
      %v2181 = vld [vmem:[%s3 + $0xbc] sm:$0xf]
      %v2182 = vld [vmem:[%s3 + $0xc0] sm:$0xf]
      %v2183 = vld [vmem:[%s3 + $0xc4] sm:$0xf]
      %v2184 = vld [vmem:[%s3 + $0xc8] sm:$0xf]
      %v2185 = vld [vmem:[%s3 + $0xcc] sm:$0xf]
      %v2186 = vld [vmem:[%s3 + $0xd0] sm:$0xf]
      %v2187 = vld [vmem:[%s3 + $0xd4] sm:$0xf]
      %v2188 = vld [vmem:[%s3 + $0xd8] sm:$0xf]
      %v2189 = vld [vmem:[%s3 + $0xdc] sm:$0xf]
      %v2190 = vld [vmem:[%s3 + $0xe0] sm:$0xf]
      %v2191 = vld [vmem:[%s3 + $0xe4] sm:$0xf]
      %v2192 = vld [vmem:[%s3 + $0xe8] sm:$0xf]
      %v2193 = vld [vmem:[%s3 + $0xec] sm:$0xf]
      %v2194 = vld [vmem:[%s3 + $0xf0] sm:$0xf]
      %v2195 = vld [vmem:[%s3 + $0xf4] sm:$0xf]
      %v2196 = vld [vmem:[%s3 + $0xf8] sm:$0xf]
      %v2197 = vld [vmem:[%s3 + $0xfc] sm:$0xf]
      %v2198 = vld [vmem:[%s3 + $0x100] sm:$0xf]
      %v2199 = vld [vmem:[%s3 + $0x104] sm:$0xf]
      %v2200 = vld [vmem:[%s3 + $0x108] sm:$0xf]
      %v2201 = vld [vmem:[%s3 + $0x10c] sm:$0xf]
      %v2202 = vld [vmem:[%s3 + $0x110] sm:$0xf]
      %v2203 = vld [vmem:[%s3 + $0x114] sm:$0xf]
      %v2204 = vld [vmem:[%s3 + $0x118] sm:$0xf]
      %v2205 = vld [vmem:[%s3 + $0x11c] sm:$0xf]
      %v2206 = vld [vmem:[%s3 + $0x120] sm:$0xf]
      %v2207 = vld [vmem:[%s3 + $0x124] sm:$0xf]
      %v2208 = vld [vmem:[%s3 + $0x128] sm:$0xf]
      %v2209 = vld [vmem:[%s3 + $0x12c] sm:$0xf]
      %v2210 = vld [vmem:[%s3 + $0x130] sm:$0xf]
      %v2211 = vld [vmem:[%s3 + $0x134] sm:$0xf]
      %v2212 = vld [vmem:[%s3 + $0x138] sm:$0xf]
      %v2213 = vld [vmem:[%s3 + $0x13c] sm:$0xf]
      %v2214 = vld [vmem:[%s3 + $0x140] sm:$0xf]
      %v2215 = vld [vmem:[%s3 + $0x144] sm:$0xf]
      %v2216 = vld [vmem:[%s3 + $0x148] sm:$0xf]
      %v2217 = vld [vmem:[%s3 + $0x14c] sm:$0xf]
      %v2218 = vld [vmem:[%s3 + $0x150] sm:$0xf]
      %v2219 = vld [vmem:[%s3 + $0x154] sm:$0xf]
      %v2220 = vld [vmem:[%s3 + $0x158] sm:$0xf]
      %v2221 = vld [vmem:[%s3 + $0x15c] sm:$0xf]
      %v2222 = vld [vmem:[%s3 + $0x160] sm:$0xf]
      %v2223 = vld [vmem:[%s3 + $0x164] sm:$0xf]
      %v2224 = vld [vmem:[%s3 + $0x168] sm:$0xf]
      %v2225 = vld [vmem:[%s3 + $0x16c] sm:$0xf]
      %v2226 = vld [vmem:[%s3 + $0x170] sm:$0xf]
      %v2227 = vld [vmem:[%s3 + $0x174] sm:$0xf]
      %v2228 = vld [vmem:[%s3 + $0x178] sm:$0xf]
      %v2229 = vld [vmem:[%s3 + $0x17c] sm:$0xf]
      %v2230 = vld [vmem:[%s3 + $0x180] sm:$0xf]
      %v2231 = vld [vmem:[%s3 + $0x184] sm:$0xf]
      %v2232 = vld [vmem:[%s3 + $0x188] sm:$0xf]
      %v2233 = vld [vmem:[%s3 + $0x18c] sm:$0xf]
      %v2234 = vld [vmem:[%s3 + $0x190] sm:$0xf]
      %v2235 = vld [vmem:[%s3 + $0x194] sm:$0xf]
      %v2236 = vld [vmem:[%s3 + $0x198] sm:$0xf]
      %v2237 = vld [vmem:[%s3 + $0x19c] sm:$0xf]
      %v2238 = vld [vmem:[%s3 + $0x1a0] sm:$0xf]
      %v2239 = vld [vmem:[%s3 + $0x1a4] sm:$0xf]
      %v2240 = vld [vmem:[%s3 + $0x1a8] sm:$0xf]
      %v2241 = vld [vmem:[%s3 + $0x1ac] sm:$0xf]
      %v2242 = vld [vmem:[%s3 + $0x1b0] sm:$0xf]
      %v2243 = vld [vmem:[%s3 + $0x1b4] sm:$0xf]
      %v2244 = vld [vmem:[%s3 + $0x1b8] sm:$0xf]
      %v2245 = vld [vmem:[%s3 + $0x1bc] sm:$0xf]
      %v2246 = vld [vmem:[%s3 + $0x1c0] sm:$0xf]
      %v2247 = vld [vmem:[%s3 + $0x1c4] sm:$0xf]
      %v2248 = vld [vmem:[%s3 + $0x1c8] sm:$0xf]
      %v2249 = vld [vmem:[%s3 + $0x1cc] sm:$0xf]
      %v2250 = vld [vmem:[%s3 + $0x1d0] sm:$0xf]
      %v2251 = vld [vmem:[%s3 + $0x1d4] sm:$0xf]
      %v2252 = vld [vmem:[%s3 + $0x1d8] sm:$0xf]
      %v2253 = vld [vmem:[%s3 + $0x1dc] sm:$0xf]
      %v2254 = vld [vmem:[%s3 + $0x1e0] sm:$0xf]
      %v2255 = vld [vmem:[%s3 + $0x1e4] sm:$0xf]
      %v2256 = vld [vmem:[%s3 + $0x1e8] sm:$0xf]
      %v2257 = vld [vmem:[%s3 + $0x1ec] sm:$0xf]
      %v2258 = vld [vmem:[%s3 + $0x1f0] sm:$0xf]
      %v2259 = vld [vmem:[%s3 + $0x1f4] sm:$0xf]
      %v2260 = vld [vmem:[%s3 + $0x1f8] sm:$0xf]
      %v2261 = vld [vmem:[%s3 + $0x1fc] sm:$0xf]
      %v2262 = vld [vmem:[%s3 + $0x200] sm:$0xf]
      %v2263 = vld [vmem:[%s3 + $0x204] sm:$0xf]
      %v2264 = vld [vmem:[%s3 + $0x208] sm:$0xf]
      %v2265 = vld [vmem:[%s3 + $0x20c] sm:$0xf]
      %v2266 = vld [vmem:[%s3 + $0x210] sm:$0xf]
      %v2267 = vld [vmem:[%s3 + $0x214] sm:$0xf]
      %v2268 = vld [vmem:[%s3 + $0x218] sm:$0xf]
      %v2269 = vld [vmem:[%s3 + $0x21c] sm:$0xf]
      %v2270 = vld [vmem:[%s3 + $0x220] sm:$0xf]
      %v2271 = vld [vmem:[%s3 + $0x224] sm:$0xf]
      %v2272 = vld [vmem:[%s3 + $0x228] sm:$0xf]
      %v2273 = vld [vmem:[%s3 + $0x22c] sm:$0xf]
      %v2274 = vld [vmem:[%s3 + $0x230] sm:$0xf]
      %v2275 = vld [vmem:[%s3 + $0x234] sm:$0xf]
      %v2276 = vld [vmem:[%s3 + $0x238] sm:$0xf]
      %v2277 = vld [vmem:[%s3 + $0x23c] sm:$0xf]
      %v2288 = vunpack.c.l.b16 %v2124
      %v2289 = vunpack.c.h.b16 %v2124
      %v2290 = vunpack.c.l.b16 %v2125
      %v2291 = vunpack.c.h.b16 %v2125
      %v2292 = vunpack.c.l.b16 %v2126
      %v2293 = vunpack.c.h.b16 %v2126
      %v2294 = vunpack.c.l.b16 %v2127
      %v2295 = vunpack.c.h.b16 %v2127
      %v2296 = vunpack.c.l.b16 %v2128
      %v2297 = vunpack.c.l.b16 %v2129
      %v2298 = vunpack.c.h.b16 %v2129
      %v2299 = vunpack.c.l.b16 %v2130
      %v2300 = vunpack.c.h.b16 %v2130
      %v2301 = vunpack.c.l.b16 %v2131
      %v2302 = vunpack.c.h.b16 %v2131
      %v2303 = vunpack.c.l.b16 %v2132
      %v2304 = vunpack.c.h.b16 %v2132
      %v2305 = vunpack.c.l.b16 %v2133
      %v2306 = vpack.c.b16 %v2297, %v2288
      %v2307 = vpack.c.b16 %v2298, %v2289
      %v2308 = vpack.c.b16 %v2299, %v2290
      %v2309 = vpack.c.b16 %v2300, %v2291
      %v2310 = vpack.c.b16 %v2301, %v2292
      %v2311 = vpack.c.b16 %v2302, %v2293
      %v2312 = vpack.c.b16 %v2303, %v2294
      %v2313 = vpack.c.b16 %v2304, %v2295
      %v2314 = vpack.c.b16 %v2305, %v2296
      %v2468 = vunpack.c.l.b16 %v2134
      %v2469 = vunpack.c.l.b16 %v2135
      %v2470 = vunpack.c.l.b16 %v2136
      %v2471 = vunpack.c.l.b16 %v2137
      %v2472 = vunpack.c.l.b16 %v2138
      %v2473 = vunpack.c.l.b16 %v2139
      %v2474 = vunpack.c.l.b16 %v2140
      %v2475 = vunpack.c.l.b16 %v2141
      %v2476 = vunpack.c.l.b16 %v2142
      %v2477 = vunpack.c.l.b16 %v2143
      %v2478 = vunpack.c.l.b16 %v2144
      %v2479 = vunpack.c.l.b16 %v2145
      %v2480 = vunpack.c.l.b16 %v2146
      %v2481 = vunpack.c.l.b16 %v2147
      %v2482 = vunpack.c.l.b16 %v2148
      %v2483 = vunpack.c.l.b16 %v2149
      %v2484 = vunpack.c.l.b16 %v2150
      %v2485 = vunpack.c.l.b16 %v2151
      %v2486 = vunpack.c.l.b16 %v2152
      %v2487 = vunpack.c.l.b16 %v2153
      %v2488 = vunpack.c.l.b16 %v2154
      %v2489 = vunpack.c.l.b16 %v2155
      %v2490 = vunpack.c.l.b16 %v2156
      %v2491 = vunpack.c.l.b16 %v2157
      %v2492 = vunpack.c.l.b16 %v2158
      %v2493 = vunpack.c.l.b16 %v2159
      %v2494 = vunpack.c.l.b16 %v2160
      %v2495 = vunpack.c.l.b16 %v2161
      %v2496 = vunpack.c.l.b16 %v2162
      %v2497 = vunpack.c.l.b16 %v2163
      %v2498 = vunpack.c.l.b16 %v2164
      %v2499 = vunpack.c.l.b16 %v2165
      %v2500 = vunpack.c.l.b16 %v2166
      %v2501 = vunpack.c.l.b16 %v2167
      %v2502 = vunpack.c.l.b16 %v2168
      %v2503 = vunpack.c.l.b16 %v2169
      %v2504 = vunpack.c.l.b16 %v2170
      %v2505 = vunpack.c.l.b16 %v2171
      %v2506 = vunpack.c.l.b16 %v2172
      %v2507 = vunpack.c.l.b16 %v2173
      %v2508 = vunpack.c.l.b16 %v2174
      %v2509 = vunpack.c.l.b16 %v2175
      %v2510 = vunpack.c.l.b16 %v2176
      %v2511 = vunpack.c.l.b16 %v2177
      %v2512 = vunpack.c.l.b16 %v2178
      %v2513 = vunpack.c.l.b16 %v2179
      %v2514 = vunpack.c.l.b16 %v2180
      %v2515 = vunpack.c.l.b16 %v2181
      %v2516 = vunpack.c.l.b16 %v2182
      %v2517 = vunpack.c.l.b16 %v2183
      %v2518 = vunpack.c.l.b16 %v2184
      %v2519 = vunpack.c.l.b16 %v2185
      %v2520 = vunpack.c.l.b16 %v2186
      %v2521 = vunpack.c.l.b16 %v2187
      %v2522 = vunpack.c.l.b16 %v2188
      %v2523 = vunpack.c.l.b16 %v2189
      %v2524 = vunpack.c.l.b16 %v2190
      %v2525 = vunpack.c.l.b16 %v2191
      %v2526 = vunpack.c.l.b16 %v2192
      %v2527 = vunpack.c.l.b16 %v2193
      %v2528 = vunpack.c.l.b16 %v2194
      %v2529 = vunpack.c.l.b16 %v2195
      %v2530 = vunpack.c.l.b16 %v2196
      %v2531 = vunpack.c.l.b16 %v2197
      %v2532 = vunpack.c.l.b16 %v2198
      %v2533 = vunpack.c.l.b16 %v2199
      %v2534 = vunpack.c.l.b16 %v2200
      %v2535 = vunpack.c.l.b16 %v2201
      %v2536 = vunpack.c.l.b16 %v2202
      %v2537 = vunpack.c.l.b16 %v2203
      %v2538 = vunpack.c.l.b16 %v2204
      %v2539 = vunpack.c.l.b16 %v2205
      %v2540 = vunpack.c.l.b16 %v2206
      %v2541 = vunpack.c.l.b16 %v2207
      %v2542 = vunpack.c.l.b16 %v2208
      %v2543 = vunpack.c.l.b16 %v2209
      %v2544 = vunpack.c.l.b16 %v2210
      %v2545 = vunpack.c.l.b16 %v2211
      %v2546 = vunpack.c.l.b16 %v2212
      %v2547 = vunpack.c.l.b16 %v2213
      %v2548 = vunpack.c.l.b16 %v2214
      %v2549 = vunpack.c.l.b16 %v2215
      %v2550 = vunpack.c.l.b16 %v2216
      %v2551 = vunpack.c.l.b16 %v2217
      %v2552 = vunpack.c.l.b16 %v2218
      %v2553 = vunpack.c.l.b16 %v2219
      %v2554 = vunpack.c.l.b16 %v2220
      %v2555 = vunpack.c.l.b16 %v2221
      %v2556 = vunpack.c.l.b16 %v2222
      %v2557 = vunpack.c.l.b16 %v2223
      %v2558 = vunpack.c.l.b16 %v2224
      %v2559 = vunpack.c.l.b16 %v2225
      %v2560 = vunpack.c.l.b16 %v2226
      %v2561 = vunpack.c.l.b16 %v2227
      %v2562 = vunpack.c.l.b16 %v2228
      %v2563 = vunpack.c.l.b16 %v2229
      %v2564 = vunpack.c.l.b16 %v2230
      %v2565 = vunpack.c.l.b16 %v2231
      %v2566 = vunpack.c.l.b16 %v2232
      %v2567 = vunpack.c.l.b16 %v2233
      %v2568 = vunpack.c.l.b16 %v2234
      %v2569 = vunpack.c.l.b16 %v2235
      %v2570 = vunpack.c.l.b16 %v2236
      %v2571 = vunpack.c.l.b16 %v2237
      %v2572 = vunpack.c.l.b16 %v2238
      %v2573 = vunpack.c.l.b16 %v2239
      %v2574 = vunpack.c.l.b16 %v2240
      %v2575 = vunpack.c.l.b16 %v2241
      %v2576 = vunpack.c.l.b16 %v2242
      %v2577 = vunpack.c.l.b16 %v2243
      %v2578 = vunpack.c.l.b16 %v2244
      %v2579 = vunpack.c.l.b16 %v2245
      %v2580 = vunpack.c.l.b16 %v2246
      %v2581 = vunpack.c.l.b16 %v2247
      %v2582 = vunpack.c.l.b16 %v2248
      %v2583 = vunpack.c.l.b16 %v2249
      %v2584 = vunpack.c.l.b16 %v2250
      %v2585 = vunpack.c.l.b16 %v2251
      %v2586 = vunpack.c.l.b16 %v2252
      %v2587 = vunpack.c.l.b16 %v2253
      %v2588 = vunpack.c.l.b16 %v2254
      %v2589 = vunpack.c.l.b16 %v2255
      %v2590 = vunpack.c.l.b16 %v2256
      %v2591 = vunpack.c.l.b16 %v2257
      %v2592 = vunpack.c.l.b16 %v2258
      %v2593 = vunpack.c.l.b16 %v2259
      %v2594 = vunpack.c.l.b16 %v2260
      %v2595 = vunpack.c.l.b16 %v2261
      %v2596 = vunpack.c.l.b16 %v2262
      %v2597 = vunpack.c.l.b16 %v2263
      %v2598 = vunpack.c.l.b16 %v2264
      %v2599 = vunpack.c.l.b16 %v2265
      %v2600 = vunpack.c.l.b16 %v2266
      %v2601 = vunpack.c.l.b16 %v2267
      %v2602 = vunpack.c.l.b16 %v2268
      %v2603 = vunpack.c.l.b16 %v2269
      %v2604 = vunpack.c.l.b16 %v2270
      %v2605 = vunpack.c.l.b16 %v2271
      %v2606 = vunpack.c.l.b16 %v2272
      %v2607 = vunpack.c.l.b16 %v2273
      %v2608 = vunpack.c.l.b16 %v2274
      %v2609 = vunpack.c.l.b16 %v2275
      %v2610 = vunpack.c.l.b16 %v2276
      %v2611 = vunpack.c.l.b16 %v2277
      %v2612 = vpack.c.b16 %v2469, %v2468
      %v2613 = vpack.c.b16 %v2471, %v2470
      %v2614 = vpack.c.b16 %v2473, %v2472
      %v2615 = vpack.c.b16 %v2475, %v2474
      %v2616 = vpack.c.b16 %v2477, %v2476
      %v2617 = vpack.c.b16 %v2479, %v2478
      %v2618 = vpack.c.b16 %v2481, %v2480
      %v2619 = vpack.c.b16 %v2483, %v2482
      %v2620 = vpack.c.b16 %v2485, %v2484
      %v2621 = vpack.c.b16 %v2487, %v2486
      %v2622 = vpack.c.b16 %v2489, %v2488
      %v2623 = vpack.c.b16 %v2491, %v2490
      %v2624 = vpack.c.b16 %v2493, %v2492
      %v2625 = vpack.c.b16 %v2495, %v2494
      %v2626 = vpack.c.b16 %v2497, %v2496
      %v2627 = vpack.c.b16 %v2499, %v2498
      %v2628 = vpack.c.b16 %v2501, %v2500
      %v2629 = vpack.c.b16 %v2503, %v2502
      %v2630 = vpack.c.b16 %v2505, %v2504
      %v2631 = vpack.c.b16 %v2507, %v2506
      %v2632 = vpack.c.b16 %v2509, %v2508
      %v2633 = vpack.c.b16 %v2511, %v2510
      %v2634 = vpack.c.b16 %v2513, %v2512
      %v2635 = vpack.c.b16 %v2515, %v2514
      %v2636 = vpack.c.b16 %v2517, %v2516
      %v2637 = vpack.c.b16 %v2519, %v2518
      %v2638 = vpack.c.b16 %v2521, %v2520
      %v2639 = vpack.c.b16 %v2523, %v2522
      %v2640 = vpack.c.b16 %v2525, %v2524
      %v2641 = vpack.c.b16 %v2527, %v2526
      %v2642 = vpack.c.b16 %v2529, %v2528
      %v2643 = vpack.c.b16 %v2531, %v2530
      %v2644 = vpack.c.b16 %v2533, %v2532
      %v2645 = vpack.c.b16 %v2535, %v2534
      %v2646 = vpack.c.b16 %v2537, %v2536
      %v2647 = vpack.c.b16 %v2539, %v2538
      %v2648 = vpack.c.b16 %v2541, %v2540
      %v2649 = vpack.c.b16 %v2543, %v2542
      %v2650 = vpack.c.b16 %v2545, %v2544
      %v2651 = vpack.c.b16 %v2547, %v2546
      %v2652 = vpack.c.b16 %v2549, %v2548
      %v2653 = vpack.c.b16 %v2551, %v2550
      %v2654 = vpack.c.b16 %v2553, %v2552
      %v2655 = vpack.c.b16 %v2555, %v2554
      %v2656 = vpack.c.b16 %v2557, %v2556
      %v2657 = vpack.c.b16 %v2559, %v2558
      %v2658 = vpack.c.b16 %v2561, %v2560
      %v2659 = vpack.c.b16 %v2563, %v2562
      %v2660 = vpack.c.b16 %v2565, %v2564
      %v2661 = vpack.c.b16 %v2567, %v2566
      %v2662 = vpack.c.b16 %v2569, %v2568
      %v2663 = vpack.c.b16 %v2571, %v2570
      %v2664 = vpack.c.b16 %v2573, %v2572
      %v2665 = vpack.c.b16 %v2575, %v2574
      %v2666 = vpack.c.b16 %v2577, %v2576
      %v2667 = vpack.c.b16 %v2579, %v2578
      %v2668 = vpack.c.b16 %v2581, %v2580
      %v2669 = vpack.c.b16 %v2583, %v2582
      %v2670 = vpack.c.b16 %v2585, %v2584
      %v2671 = vpack.c.b16 %v2587, %v2586
      %v2672 = vpack.c.b16 %v2589, %v2588
      %v2673 = vpack.c.b16 %v2591, %v2590
      %v2674 = vpack.c.b16 %v2593, %v2592
      %v2675 = vpack.c.b16 %v2595, %v2594
      %v2676 = vpack.c.b16 %v2597, %v2596
      %v2677 = vpack.c.b16 %v2599, %v2598
      %v2678 = vpack.c.b16 %v2601, %v2600
      %v2679 = vpack.c.b16 %v2603, %v2602
      %v2680 = vpack.c.b16 %v2605, %v2604
      %v2681 = vpack.c.b16 %v2607, %v2606
      %v2682 = vpack.c.b16 %v2609, %v2608
      %v2683 = vpack.c.b16 %v2611, %v2610
      %2756 = vmatprep.subr.bf16.mxu0 0
      %2757 = vmatpush1.bf16.msra.mxu0 %v2619
      %2758 = vmatprep.subr.bf16.mxu0 0
      %2759 = vmatpush1.bf16.msra.mxu0 %v2618
      %2760 = vmatprep.subr.bf16.mxu0 0
      %2761 = vmatpush1.bf16.msra.mxu0 %v2617
      %2762 = vmatprep.subr.bf16.mxu0 0
      %2763 = vmatpush1.bf16.msra.mxu0 %v2616
      %2764 = vmatprep.subr.bf16.mxu0 0
      %2765 = vmatpush1.bf16.msra.mxu0 %v2615
      %2766 = vmatprep.subr.bf16.mxu0 0
      %2767 = vmatpush1.bf16.msra.mxu0 %v2614
      %2768 = vmatprep.subr.bf16.mxu0 0
      %2769 = vmatpush1.bf16.msra.mxu0 %v2613
      %2770 = vmatprep.subr.bf16.mxu0 0
      %2771 = vmatpush1.bf16.msra.mxu0 %v2612
      %2772 = vmatprep.subr.bf16.mxu0 0
      %2773 = vmatpush2.bf16.msra.mxu0 %v2627
      %2774 = vmatprep.subr.bf16.mxu0 0
      %2775 = vmatpush2.bf16.msra.mxu0 %v2626
      %2776 = vmatprep.subr.bf16.mxu0 0
      %2777 = vmatpush2.bf16.msra.mxu0 %v2625
      %2778 = vmatprep.subr.bf16.mxu0 0
      %2779 = vmatpush2.bf16.msra.mxu0 %v2624
      %2780 = vmatprep.subr.bf16.mxu0 0
      %2781 = vmatpush2.bf16.msra.mxu0 %v2623
      %2782 = vmatprep.subr.bf16.mxu0 0
      %2783 = vmatpush2.bf16.msra.mxu0 %v2622
      %2784 = vmatprep.subr.bf16.mxu0 0
      %2785 = vmatpush2.bf16.msra.mxu0 %v2621
      %2786 = vmatprep.subr.bf16.mxu0 0
      %2787 = vmatpush2.bf16.msra.mxu0 %v2620
      %2788 = vmatprep.mubr.bf16.mxu0 %v2307
      %2789 = vmatmul.mubr.bf16.gmra.mxu0 %v2306
      %v2790 = vpop.f32.mrf.mxu0
      %v2791 = vadd.f32 0.0, %v2790
      %v2792 = vpop.f32.mrf.mxu0
      %v2793 = vpop.f32.mrf.mxu0
      %v2794 = vadd.f32 0.0, %v2793
      %v2795 = vpop.f32.mrf.mxu0
      %2796 = vdwg.mxu0
      %2797 = vmatprep.subr.bf16.mxu0 0
      %2798 = vmatpush1.bf16.msra.mxu0 %v2635
      %2799 = vmatprep.subr.bf16.mxu0 0
      %2800 = vmatpush1.bf16.msra.mxu0 %v2634
      %2801 = vmatprep.subr.bf16.mxu0 0
      %2802 = vmatpush1.bf16.msra.mxu0 %v2633
      %2803 = vmatprep.subr.bf16.mxu0 0
      %2804 = vmatpush1.bf16.msra.mxu0 %v2632
      %2805 = vmatprep.subr.bf16.mxu0 0
      %2806 = vmatpush1.bf16.msra.mxu0 %v2631
      %2807 = vmatprep.subr.bf16.mxu0 0
      %2808 = vmatpush1.bf16.msra.mxu0 %v2630
      %2809 = vmatprep.subr.bf16.mxu0 0
      %2810 = vmatpush1.bf16.msra.mxu0 %v2629
      %2811 = vmatprep.subr.bf16.mxu0 0
      %2812 = vmatpush1.bf16.msra.mxu0 %v2628
      %2813 = vmatprep.subr.bf16.mxu0 0
      %2814 = vmatpush2.bf16.msra.mxu0 %v2643
      %2815 = vmatprep.subr.bf16.mxu0 0
      %2816 = vmatpush2.bf16.msra.mxu0 %v2642
      %2817 = vmatprep.subr.bf16.mxu0 0
      %2818 = vmatpush2.bf16.msra.mxu0 %v2641
      %2819 = vmatprep.subr.bf16.mxu0 0
      %2820 = vmatpush2.bf16.msra.mxu0 %v2640
      %2821 = vmatprep.subr.bf16.mxu0 0
      %2822 = vmatpush2.bf16.msra.mxu0 %v2639
      %2823 = vmatprep.subr.bf16.mxu0 0
      %2824 = vmatpush2.bf16.msra.mxu0 %v2638
      %2825 = vmatprep.subr.bf16.mxu0 0
      %2826 = vmatpush2.bf16.msra.mxu0 %v2637
      %2827 = vmatprep.subr.bf16.mxu0 0
      %2828 = vmatpush2.bf16.msra.mxu0 %v2636
      %2829 = vmatprep.mubr.bf16.mxu0 %v2309
      %2830 = vmatmul.mubr.bf16.gmra.mxu0 %v2308
      %v2831 = vpop.f32.mrf.mxu0
      %v2832 = vadd.f32 %v2791, %v2831
      %v2833 = vpop.f32.mrf.mxu0
      %v2834 = vpop.f32.mrf.mxu0
      %v2835 = vadd.f32 %v2794, %v2834
      %v2836 = vpop.f32.mrf.mxu0
      %2837 = vdwg.mxu0
      %2838 = vmatprep.subr.bf16.mxu0 0
      %2839 = vmatpush1.bf16.msra.mxu0 %v2651
      %2840 = vmatprep.subr.bf16.mxu0 0
      %2841 = vmatpush1.bf16.msra.mxu0 %v2650
      %2842 = vmatprep.subr.bf16.mxu0 0
      %2843 = vmatpush1.bf16.msra.mxu0 %v2649
      %2844 = vmatprep.subr.bf16.mxu0 0
      %2845 = vmatpush1.bf16.msra.mxu0 %v2648
      %2846 = vmatprep.subr.bf16.mxu0 0
      %2847 = vmatpush1.bf16.msra.mxu0 %v2647
      %2848 = vmatprep.subr.bf16.mxu0 0
      %2849 = vmatpush1.bf16.msra.mxu0 %v2646
      %2850 = vmatprep.subr.bf16.mxu0 0
      %2851 = vmatpush1.bf16.msra.mxu0 %v2645
      %2852 = vmatprep.subr.bf16.mxu0 0
      %2853 = vmatpush1.bf16.msra.mxu0 %v2644
      %2854 = vmatprep.subr.bf16.mxu0 0
      %2855 = vmatpush2.bf16.msra.mxu0 %v2659
      %2856 = vmatprep.subr.bf16.mxu0 0
      %2857 = vmatpush2.bf16.msra.mxu0 %v2658
      %2858 = vmatprep.subr.bf16.mxu0 0
      %2859 = vmatpush2.bf16.msra.mxu0 %v2657
      %2860 = vmatprep.subr.bf16.mxu0 0
      %2861 = vmatpush2.bf16.msra.mxu0 %v2656
      %2862 = vmatprep.subr.bf16.mxu0 0
      %2863 = vmatpush2.bf16.msra.mxu0 %v2655
      %2864 = vmatprep.subr.bf16.mxu0 0
      %2865 = vmatpush2.bf16.msra.mxu0 %v2654
      %2866 = vmatprep.subr.bf16.mxu0 0
      %2867 = vmatpush2.bf16.msra.mxu0 %v2653
      %2868 = vmatprep.subr.bf16.mxu0 0
      %2869 = vmatpush2.bf16.msra.mxu0 %v2652
      %2870 = vmatprep.mubr.bf16.mxu0 %v2311
      %2871 = vmatmul.mubr.bf16.gmra.mxu0 %v2310
      %v2872 = vpop.f32.mrf.mxu0
      %v2873 = vadd.f32 %v2832, %v2872
      %v2874 = vpop.f32.mrf.mxu0
      %v2875 = vpop.f32.mrf.mxu0
      %v2876 = vadd.f32 %v2835, %v2875
      %v2877 = vpop.f32.mrf.mxu0
      %2878 = vdwg.mxu0
      %2879 = vmatprep.subr.bf16.mxu0 0
      %2880 = vmatpush1.bf16.msra.mxu0 %v2667
      %2881 = vmatprep.subr.bf16.mxu0 0
      %2882 = vmatpush1.bf16.msra.mxu0 %v2666
      %2883 = vmatprep.subr.bf16.mxu0 0
      %2884 = vmatpush1.bf16.msra.mxu0 %v2665
      %2885 = vmatprep.subr.bf16.mxu0 0
      %2886 = vmatpush1.bf16.msra.mxu0 %v2664
      %2887 = vmatprep.subr.bf16.mxu0 0
      %2888 = vmatpush1.bf16.msra.mxu0 %v2663
      %2889 = vmatprep.subr.bf16.mxu0 0
      %2890 = vmatpush1.bf16.msra.mxu0 %v2662
      %2891 = vmatprep.subr.bf16.mxu0 0
      %2892 = vmatpush1.bf16.msra.mxu0 %v2661
      %2893 = vmatprep.subr.bf16.mxu0 0
      %2894 = vmatpush1.bf16.msra.mxu0 %v2660
      %2895 = vmatprep.subr.bf16.mxu0 0
      %2896 = vmatpush2.bf16.msra.mxu0 %v2675
      %2897 = vmatprep.subr.bf16.mxu0 0
      %2898 = vmatpush2.bf16.msra.mxu0 %v2674
      %2899 = vmatprep.subr.bf16.mxu0 0
      %2900 = vmatpush2.bf16.msra.mxu0 %v2673
      %2901 = vmatprep.subr.bf16.mxu0 0
      %2902 = vmatpush2.bf16.msra.mxu0 %v2672
      %2903 = vmatprep.subr.bf16.mxu0 0
      %2904 = vmatpush2.bf16.msra.mxu0 %v2671
      %2905 = vmatprep.subr.bf16.mxu0 0
      %2906 = vmatpush2.bf16.msra.mxu0 %v2670
      %2907 = vmatprep.subr.bf16.mxu0 0
      %2908 = vmatpush2.bf16.msra.mxu0 %v2669
      %2909 = vmatprep.subr.bf16.mxu0 0
      %2910 = vmatpush2.bf16.msra.mxu0 %v2668
      %2911 = vmatprep.mubr.bf16.mxu0 %v2313
      %2912 = vmatmul.mubr.bf16.gmra.mxu0 %v2312
      %v2913 = vpop.f32.mrf.mxu0
      %v2914 = vadd.f32 %v2873, %v2913
      %v2915 = vpop.f32.mrf.mxu0
      %v2916 = vpop.f32.mrf.mxu0
      %v2917 = vadd.f32 %v2876, %v2916
      %v2918 = vpop.f32.mrf.mxu0
      %2919 = vdwg.mxu0
      %2920 = vmatprep.subr.bf16.mxu0 0
      %2921 = vmatpush1.bf16.msra.mxu0 %v2683
      %2922 = vmatprep.subr.bf16.mxu0 0
      %2923 = vmatpush1.bf16.msra.mxu0 %v2682
      %2924 = vmatprep.subr.bf16.mxu0 0
      %2925 = vmatpush1.bf16.msra.mxu0 %v2681
      %2926 = vmatprep.subr.bf16.mxu0 0
      %2927 = vmatpush1.bf16.msra.mxu0 %v2680
      %2928 = vmatprep.subr.bf16.mxu0 0
      %2929 = vmatpush1.bf16.msra.mxu0 %v2679
      %2930 = vmatprep.subr.bf16.mxu0 0
      %2931 = vmatpush1.bf16.msra.mxu0 %v2678
      %2932 = vmatprep.subr.bf16.mxu0 0
      %2933 = vmatpush1.bf16.msra.mxu0 %v2677
      %2934 = vmatprep.subr.bf16.mxu0 0
      %2935 = vmatpush1.bf16.msra.mxu0 %v2676
      %2936 = vmatprep.subr.bf16.mxu0 0
      %2937 = vmatpush2.bf16.msra.mxu0 0
      %2938 = vmatprep.subr.bf16.mxu0 0
      %2939 = vmatpush2.bf16.msra.mxu0 0
      %2940 = vmatprep.subr.bf16.mxu0 0
      %2941 = vmatpush2.bf16.msra.mxu0 0
      %2942 = vmatprep.subr.bf16.mxu0 0
      %2943 = vmatpush2.bf16.msra.mxu0 0
      %2944 = vmatprep.subr.bf16.mxu0 0
      %2945 = vmatpush2.bf16.msra.mxu0 0
      %2946 = vmatprep.subr.bf16.mxu0 0
      %2947 = vmatpush2.bf16.msra.mxu0 0
      %2948 = vmatprep.subr.bf16.mxu0 0
      %2949 = vmatpush2.bf16.msra.mxu0 0
      %2950 = vmatprep.subr.bf16.mxu0 0
      %2951 = vmatpush2.bf16.msra.mxu0 0
      %2952 = vmatprep.mubr.bf16.mxu0 0
      %2953 = vmatmul.mubr.bf16.gmra.mxu0 %v2314
      %v2954 = vpop.f32.mrf.mxu0
      %v2955 = vadd.f32 %v2914, %v2954
      %v2956 = vpop.f32.mrf.mxu0
      %v2957 = vpop.f32.mrf.mxu0
      %v2958 = vadd.f32 %v2917, %v2957
      %v2959 = vpop.f32.mrf.mxu0
      %2960 = vdwg.mxu0
      %v2961 = vld [vmem:[%s7] sm:$0x1]
      %v2963 = vlaneseq
      %v2964 = vshrl.u32 %v2963, 7
      %v2965 = vsub.s32 0, %v2964
      %v2966 = vrot.slane %v2961, %v2965
      %v2968 = vmul.f32 %v2955, %v2966
      %v2969 = vmul.f32 %v2958, %v2966
      %v2970 = vld [vmem:[%s8] sm:$0x1]
      %v2972 = vlaneseq
      %v2973 = vshrl.u32 %v2972, 7
      %v2974 = vsub.s32 0, %v2973
      %v2975 = vrot.slane %v2970, %v2974
      %v2977 = vadd.f32 %v2968, %v2975
      %v2978 = vadd.f32 %v2969, %v2975
      %vm2979 = vcmp.ge.f32.partialorder %v2977, 0.0
      %vm2980 = vcmp.ge.f32.partialorder %v2978, 0.0
      %v2981 = vmul.f32 %v2977, 0.2
      %v2982 = vmul.f32 %v2978, 0.2
      %v2983 = vsel %vm2979, %v2977, %v2981
      %v2984 = vsel %vm2980, %v2978, %v2982
      %v2985 = vpack.c.bf16 %v2984, %v2983
      %v2986 = vld [vmem:[%s11] sm:$0xf]
      %v2987 = vld [vmem:[%s11 + $0x4] sm:$0xf]
      %v2988 = vld [vmem:[%s11 + $0x8] sm:$0xf]
      %v2989 = vld [vmem:[%s11 + $0xc] sm:$0xf]
      %v2990 = vld [vmem:[%s11 + $0x10] sm:$0xf]
      %v2991 = vld [vmem:[%s11 + $0x14] sm:$0xf]
      %v2992 = vld [vmem:[%s11 + $0x18] sm:$0xf]
      %v2993 = vld [vmem:[%s11 + $0x1c] sm:$0xf]
      %v2994 = vld [vmem:[%s11 + $0x20] sm:$0xf]
      %v2995 = vld [vmem:[%s11 + $0x24] sm:$0xf]
      %v2996 = vld [vmem:[%s11 + $0x28] sm:$0xf]
      %v2997 = vld [vmem:[%s11 + $0x2c] sm:$0xf]
      %v2998 = vld [vmem:[%s11 + $0x30] sm:$0xf]
      %v2999 = vld [vmem:[%s11 + $0x34] sm:$0xf]
      %v3000 = vld [vmem:[%s11 + $0x38] sm:$0xf]
      %v3001 = vld [vmem:[%s11 + $0x3c] sm:$0xf]
      %v3002 = vld [vmem:[%s11 + $0x40] sm:$0xf]
      %v3003 = vld [vmem:[%s11 + $0x44] sm:$0xf]
      %v3004 = vld [vmem:[%s11 + $0x48] sm:$0xf]
      %v3005 = vld [vmem:[%s11 + $0x4c] sm:$0xf]
      %v3006 = vld [vmem:[%s11 + $0x50] sm:$0xf]
      %v3007 = vld [vmem:[%s11 + $0x54] sm:$0xf]
      %v3008 = vld [vmem:[%s11 + $0x58] sm:$0xf]
      %v3009 = vld [vmem:[%s11 + $0x5c] sm:$0xf]
      %v3010 = vld [vmem:[%s11 + $0x60] sm:$0xf]
      %v3011 = vld [vmem:[%s11 + $0x64] sm:$0xf]
      %v3012 = vld [vmem:[%s11 + $0x68] sm:$0xf]
      %v3013 = vld [vmem:[%s11 + $0x6c] sm:$0xf]
      %v3014 = vld [vmem:[%s11 + $0x70] sm:$0xf]
      %v3015 = vld [vmem:[%s11 + $0x74] sm:$0xf]
      %v3016 = vld [vmem:[%s11 + $0x78] sm:$0xf]
      %v3017 = vld [vmem:[%s11 + $0x7c] sm:$0xf]
      %v3050 = vunpack.c.l.b16 %v2986
      %v3051 = vunpack.c.l.b16 %v2987
      %v3052 = vunpack.c.l.b16 %v2988
      %v3053 = vunpack.c.l.b16 %v2989
      %v3054 = vunpack.c.l.b16 %v2990
      %v3055 = vunpack.c.l.b16 %v2991
      %v3056 = vunpack.c.l.b16 %v2992
      %v3057 = vunpack.c.l.b16 %v2993
      %v3058 = vunpack.c.l.b16 %v2994
      %v3059 = vunpack.c.l.b16 %v2995
      %v3060 = vunpack.c.l.b16 %v2996
      %v3061 = vunpack.c.l.b16 %v2997
      %v3062 = vunpack.c.l.b16 %v2998
      %v3063 = vunpack.c.l.b16 %v2999
      %v3064 = vunpack.c.l.b16 %v3000
      %v3065 = vunpack.c.l.b16 %v3001
      %v3066 = vunpack.c.l.b16 %v3002
      %v3067 = vunpack.c.l.b16 %v3003
      %v3068 = vunpack.c.l.b16 %v3004
      %v3069 = vunpack.c.l.b16 %v3005
      %v3070 = vunpack.c.l.b16 %v3006
      %v3071 = vunpack.c.l.b16 %v3007
      %v3072 = vunpack.c.l.b16 %v3008
      %v3073 = vunpack.c.l.b16 %v3009
      %v3074 = vunpack.c.l.b16 %v3010
      %v3075 = vunpack.c.l.b16 %v3011
      %v3076 = vunpack.c.l.b16 %v3012
      %v3077 = vunpack.c.l.b16 %v3013
      %v3078 = vunpack.c.l.b16 %v3014
      %v3079 = vunpack.c.l.b16 %v3015
      %v3080 = vunpack.c.l.b16 %v3016
      %v3081 = vunpack.c.l.b16 %v3017
      %v3082 = vpack.c.b16 %v3051, %v3050
      %v3083 = vpack.c.b16 %v3053, %v3052
      %v3084 = vpack.c.b16 %v3055, %v3054
      %v3085 = vpack.c.b16 %v3057, %v3056
      %v3086 = vpack.c.b16 %v3059, %v3058
      %v3087 = vpack.c.b16 %v3061, %v3060
      %v3088 = vpack.c.b16 %v3063, %v3062
      %v3089 = vpack.c.b16 %v3065, %v3064
      %v3090 = vpack.c.b16 %v3067, %v3066
      %v3091 = vpack.c.b16 %v3069, %v3068
      %v3092 = vpack.c.b16 %v3071, %v3070
      %v3093 = vpack.c.b16 %v3073, %v3072
      %v3094 = vpack.c.b16 %v3075, %v3074
      %v3095 = vpack.c.b16 %v3077, %v3076
      %v3096 = vpack.c.b16 %v3079, %v3078
      %v3097 = vpack.c.b16 %v3081, %v3080
      %v3099 = vsel %vm1901, %v3082, 0
      %v3102 = vsel %vm1901, %v3083, 0
      %v3105 = vsel %vm1901, %v3084, 0
      %v3108 = vsel %vm1901, %v3085, 0
      %v3111 = vsel %vm1901, %v3086, 0
      %v3114 = vsel %vm1901, %v3087, 0
      %v3117 = vsel %vm1901, %v3088, 0
      %v3120 = vsel %vm1901, %v3089, 0
      %v3123 = vsel %vm1901, %v3090, 0
      %v3126 = vsel %vm1901, %v3091, 0
      %v3129 = vsel %vm1901, %v3092, 0
      %v3132 = vsel %vm1901, %v3093, 0
      %v3135 = vsel %vm1901, %v3094, 0
      %v3138 = vsel %vm1901, %v3095, 0
      %v3141 = vsel %vm1901, %v3096, 0
      %v3144 = vsel %vm1901, %v3097, 0
      %3146 = vmatprep.subr.bf16.mxu0 0
      %3147 = vmatpush1.bf16.msra.mxu0 0
      %3148 = vmatprep.subr.bf16.mxu0 0
      %3149 = vmatpush1.bf16.msra.mxu0 0
      %3150 = vmatprep.subr.bf16.mxu0 0
      %3151 = vmatpush1.bf16.msra.mxu0 0
      %3152 = vmatprep.subr.bf16.mxu0 0
      %3153 = vmatpush1.bf16.msra.mxu0 0
      %3154 = vmatprep.subr.bf16.mxu0 0
      %3155 = vmatpush1.bf16.msra.mxu0 0
      %3156 = vmatprep.subr.bf16.mxu0 0
      %3157 = vmatpush1.bf16.msra.mxu0 0
      %3158 = vmatprep.subr.bf16.mxu0 0
      %3159 = vmatpush1.bf16.msra.mxu0 0
      %3160 = vmatprep.subr.bf16.mxu0 0
      %3161 = vmatpush1.bf16.msra.mxu0 %v2985
      %3162 = vmatprep.subr.bf16.mxu0 0
      %3163 = vmatpush2.bf16.msra.mxu0 0
      %3164 = vmatprep.subr.bf16.mxu0 0
      %3165 = vmatpush2.bf16.msra.mxu0 0
      %3166 = vmatprep.subr.bf16.mxu0 0
      %3167 = vmatpush2.bf16.msra.mxu0 0
      %3168 = vmatprep.subr.bf16.mxu0 0
      %3169 = vmatpush2.bf16.msra.mxu0 0
      %3170 = vmatprep.subr.bf16.mxu0 0
      %3171 = vmatpush2.bf16.msra.mxu0 0
      %3172 = vmatprep.subr.bf16.mxu0 0
      %3173 = vmatpush2.bf16.msra.mxu0 0
      %3174 = vmatprep.subr.bf16.mxu0 0
      %3175 = vmatpush2.bf16.msra.mxu0 0
      %3176 = vmatprep.subr.bf16.mxu0 0
      %3177 = vmatpush2.bf16.msra.mxu0 0
      %3178 = vmatprep.mubr.bf16.mxu0 0
      %3179 = vmatmul.mubr.bf16.gmra.mxu0 %v3099
      %v3180 = vpop.f32.mrf.mxu0
      %v3181 = vadd.f32 0.0, %v3180
      %v3182 = vpop.f32.mrf.mxu0
      %v3183 = vpop.f32.mrf.mxu0
      %v3184 = vadd.f32 0.0, %v3183
      %v3185 = vpop.f32.mrf.mxu0
      %3186 = vmatprep.mubr.bf16.mxu0 0
      %3187 = vmatmul.mubr.bf16.gmra.mxu0 %v3102
      %v3188 = vpop.f32.mrf.mxu0
      %v3189 = vadd.f32 0.0, %v3188
      %v3190 = vpop.f32.mrf.mxu0
      %v3191 = vpop.f32.mrf.mxu0
      %v3192 = vadd.f32 0.0, %v3191
      %v3193 = vpop.f32.mrf.mxu0
      %3194 = vmatprep.mubr.bf16.mxu0 0
      %3195 = vmatmul.mubr.bf16.gmra.mxu0 %v3105
      %v3196 = vpop.f32.mrf.mxu0
      %v3197 = vadd.f32 0.0, %v3196
      %v3198 = vpop.f32.mrf.mxu0
      %v3199 = vpop.f32.mrf.mxu0
      %v3200 = vadd.f32 0.0, %v3199
      %v3201 = vpop.f32.mrf.mxu0
      %3202 = vmatprep.mubr.bf16.mxu0 0
      %3203 = vmatmul.mubr.bf16.gmra.mxu0 %v3108
      %v3204 = vpop.f32.mrf.mxu0
      %v3205 = vadd.f32 0.0, %v3204
      %v3206 = vpop.f32.mrf.mxu0
      %v3207 = vpop.f32.mrf.mxu0
      %v3208 = vadd.f32 0.0, %v3207
      %v3209 = vpop.f32.mrf.mxu0
      %3210 = vmatprep.mubr.bf16.mxu0 0
      %3211 = vmatmul.mubr.bf16.gmra.mxu0 %v3111
      %v3212 = vpop.f32.mrf.mxu0
      %v3213 = vadd.f32 0.0, %v3212
      %v3214 = vpop.f32.mrf.mxu0
      %v3215 = vpop.f32.mrf.mxu0
      %v3216 = vadd.f32 0.0, %v3215
      %v3217 = vpop.f32.mrf.mxu0
      %3218 = vmatprep.mubr.bf16.mxu0 0
      %3219 = vmatmul.mubr.bf16.gmra.mxu0 %v3114
      %v3220 = vpop.f32.mrf.mxu0
      %v3221 = vadd.f32 0.0, %v3220
      %v3222 = vpop.f32.mrf.mxu0
      %v3223 = vpop.f32.mrf.mxu0
      %v3224 = vadd.f32 0.0, %v3223
      %v3225 = vpop.f32.mrf.mxu0
      %3226 = vmatprep.mubr.bf16.mxu0 0
      %3227 = vmatmul.mubr.bf16.gmra.mxu0 %v3117
      %v3228 = vpop.f32.mrf.mxu0
      %v3229 = vadd.f32 0.0, %v3228
      %v3230 = vpop.f32.mrf.mxu0
      %v3231 = vpop.f32.mrf.mxu0
      %v3232 = vadd.f32 0.0, %v3231
      %v3233 = vpop.f32.mrf.mxu0
      %3234 = vmatprep.mubr.bf16.mxu0 0
      %3235 = vmatmul.mubr.bf16.gmra.mxu0 %v3120
      %v3236 = vpop.f32.mrf.mxu0
      %v3237 = vadd.f32 0.0, %v3236
      %v3238 = vpop.f32.mrf.mxu0
      %v3239 = vpop.f32.mrf.mxu0
      %v3240 = vadd.f32 0.0, %v3239
      %v3241 = vpop.f32.mrf.mxu0
      %3242 = vmatprep.mubr.bf16.mxu0 0
      %3243 = vmatmul.mubr.bf16.gmra.mxu0 %v3123
      %v3244 = vpop.f32.mrf.mxu0
      %v3245 = vadd.f32 0.0, %v3244
      %v3246 = vpop.f32.mrf.mxu0
      %v3247 = vpop.f32.mrf.mxu0
      %v3248 = vadd.f32 0.0, %v3247
      %v3249 = vpop.f32.mrf.mxu0
      %3250 = vmatprep.mubr.bf16.mxu0 0
      %3251 = vmatmul.mubr.bf16.gmra.mxu0 %v3126
      %v3252 = vpop.f32.mrf.mxu0
      %v3253 = vadd.f32 0.0, %v3252
      %v3254 = vpop.f32.mrf.mxu0
      %v3255 = vpop.f32.mrf.mxu0
      %v3256 = vadd.f32 0.0, %v3255
      %v3257 = vpop.f32.mrf.mxu0
      %3258 = vmatprep.mubr.bf16.mxu0 0
      %3259 = vmatmul.mubr.bf16.gmra.mxu0 %v3129
      %v3260 = vpop.f32.mrf.mxu0
      %v3261 = vadd.f32 0.0, %v3260
      %v3262 = vpop.f32.mrf.mxu0
      %v3263 = vpop.f32.mrf.mxu0
      %v3264 = vadd.f32 0.0, %v3263
      %v3265 = vpop.f32.mrf.mxu0
      %3266 = vmatprep.mubr.bf16.mxu0 0
      %3267 = vmatmul.mubr.bf16.gmra.mxu0 %v3132
      %v3268 = vpop.f32.mrf.mxu0
      %v3269 = vadd.f32 0.0, %v3268
      %v3270 = vpop.f32.mrf.mxu0
      %v3271 = vpop.f32.mrf.mxu0
      %v3272 = vadd.f32 0.0, %v3271
      %v3273 = vpop.f32.mrf.mxu0
      %3274 = vmatprep.mubr.bf16.mxu0 0
      %3275 = vmatmul.mubr.bf16.gmra.mxu0 %v3135
      %v3276 = vpop.f32.mrf.mxu0
      %v3277 = vadd.f32 0.0, %v3276
      %v3278 = vpop.f32.mrf.mxu0
      %v3279 = vpop.f32.mrf.mxu0
      %v3280 = vadd.f32 0.0, %v3279
      %v3281 = vpop.f32.mrf.mxu0
      %3282 = vmatprep.mubr.bf16.mxu0 0
      %3283 = vmatmul.mubr.bf16.gmra.mxu0 %v3138
      %v3284 = vpop.f32.mrf.mxu0
      %v3285 = vadd.f32 0.0, %v3284
      %v3286 = vpop.f32.mrf.mxu0
      %v3287 = vpop.f32.mrf.mxu0
      %v3288 = vadd.f32 0.0, %v3287
      %v3289 = vpop.f32.mrf.mxu0
      %3290 = vmatprep.mubr.bf16.mxu0 0
      %3291 = vmatmul.mubr.bf16.gmra.mxu0 %v3141
      %v3292 = vpop.f32.mrf.mxu0
      %v3293 = vadd.f32 0.0, %v3292
      %v3294 = vpop.f32.mrf.mxu0
      %v3295 = vpop.f32.mrf.mxu0
      %v3296 = vadd.f32 0.0, %v3295
      %v3297 = vpop.f32.mrf.mxu0
      %3298 = vmatprep.mubr.bf16.mxu0 0
      %3299 = vmatmul.mubr.bf16.gmra.mxu0 %v3144
      %v3300 = vpop.f32.mrf.mxu0
      %v3301 = vadd.f32 0.0, %v3300
      %v3302 = vpop.f32.mrf.mxu0
      %v3303 = vpop.f32.mrf.mxu0
      %v3304 = vadd.f32 0.0, %v3303
      %v3305 = vpop.f32.mrf.mxu0
      %3306 = vdwg.mxu0
      %v3307 = vpack.c.bf16 %v3184, %v3181
      %v3308 = vpack.c.bf16 %v3192, %v3189
      %v3309 = vpack.c.bf16 %v3200, %v3197
      %v3310 = vpack.c.bf16 %v3208, %v3205
      %v3311 = vpack.c.bf16 %v3216, %v3213
      %v3312 = vpack.c.bf16 %v3224, %v3221
      %v3313 = vpack.c.bf16 %v3232, %v3229
      %v3314 = vpack.c.bf16 %v3240, %v3237
      %v3315 = vpack.c.bf16 %v3248, %v3245
      %v3316 = vpack.c.bf16 %v3256, %v3253
      %v3317 = vpack.c.bf16 %v3264, %v3261
      %v3318 = vpack.c.bf16 %v3272, %v3269
      %v3319 = vpack.c.bf16 %v3280, %v3277
      %v3320 = vpack.c.bf16 %v3288, %v3285
      %v3321 = vpack.c.bf16 %v3296, %v3293
      %v3322 = vpack.c.bf16 %v3304, %v3301
      %v3324 = vunpack.c.l.b16 %v3307
      %v3325 = vunpack.c.h.b16 %v3307
      %v3326 = vpack.c.b16 %v3324, %v3324
      %v3327 = vpack.c.b16 %v3325, %v3325
      %3330 = vst [vmem:[#allocation4] sm:$0xf] %v3326
      %3331 = vst [vmem:[#allocation4 + $0x40] sm:$0xf] %v3327
      %v3333 = vunpack.c.l.b16 %v3308
      %v3334 = vunpack.c.h.b16 %v3308
      %v3335 = vpack.c.b16 %v3333, %v3333
      %v3336 = vpack.c.b16 %v3334, %v3334
      %3339 = vst [vmem:[#allocation4 + $0x4] sm:$0xf] %v3335
      %3340 = vst [vmem:[#allocation4 + $0x44] sm:$0xf] %v3336
      %v3342 = vunpack.c.l.b16 %v3309
      %v3343 = vunpack.c.h.b16 %v3309
      %v3344 = vpack.c.b16 %v3342, %v3342
      %v3345 = vpack.c.b16 %v3343, %v3343
      %3348 = vst [vmem:[#allocation4 + $0x8] sm:$0xf] %v3344
      %3349 = vst [vmem:[#allocation4 + $0x48] sm:$0xf] %v3345
      %v3351 = vunpack.c.l.b16 %v3310
      %v3352 = vunpack.c.h.b16 %v3310
      %v3353 = vpack.c.b16 %v3351, %v3351
      %v3354 = vpack.c.b16 %v3352, %v3352
      %3357 = vst [vmem:[#allocation4 + $0xc] sm:$0xf] %v3353
      %3358 = vst [vmem:[#allocation4 + $0x4c] sm:$0xf] %v3354
      %v3360 = vunpack.c.l.b16 %v3311
      %v3361 = vunpack.c.h.b16 %v3311
      %v3362 = vpack.c.b16 %v3360, %v3360
      %v3363 = vpack.c.b16 %v3361, %v3361
      %3366 = vst [vmem:[#allocation4 + $0x10] sm:$0xf] %v3362
      %3367 = vst [vmem:[#allocation4 + $0x50] sm:$0xf] %v3363
      %v3369 = vunpack.c.l.b16 %v3312
      %v3370 = vunpack.c.h.b16 %v3312
      %v3371 = vpack.c.b16 %v3369, %v3369
      %v3372 = vpack.c.b16 %v3370, %v3370
      %3375 = vst [vmem:[#allocation4 + $0x14] sm:$0xf] %v3371
      %3376 = vst [vmem:[#allocation4 + $0x54] sm:$0xf] %v3372
      %v3378 = vunpack.c.l.b16 %v3313
      %v3379 = vunpack.c.h.b16 %v3313
      %v3380 = vpack.c.b16 %v3378, %v3378
      %v3381 = vpack.c.b16 %v3379, %v3379
      %3384 = vst [vmem:[#allocation4 + $0x18] sm:$0xf] %v3380
      %3385 = vst [vmem:[#allocation4 + $0x58] sm:$0xf] %v3381
      %v3387 = vunpack.c.l.b16 %v3314
      %v3388 = vunpack.c.h.b16 %v3314
      %v3389 = vpack.c.b16 %v3387, %v3387
      %v3390 = vpack.c.b16 %v3388, %v3388
      %3393 = vst [vmem:[#allocation4 + $0x1c] sm:$0xf] %v3389
      %3394 = vst [vmem:[#allocation4 + $0x5c] sm:$0xf] %v3390
      %v3396 = vunpack.c.l.b16 %v3315
      %v3397 = vunpack.c.h.b16 %v3315
      %v3398 = vpack.c.b16 %v3396, %v3396
      %v3399 = vpack.c.b16 %v3397, %v3397
      %3402 = vst [vmem:[#allocation4 + $0x20] sm:$0xf] %v3398
      %3403 = vst [vmem:[#allocation4 + $0x60] sm:$0xf] %v3399
      %v3405 = vunpack.c.l.b16 %v3316
      %v3406 = vunpack.c.h.b16 %v3316
      %v3407 = vpack.c.b16 %v3405, %v3405
      %v3408 = vpack.c.b16 %v3406, %v3406
      %3411 = vst [vmem:[#allocation4 + $0x24] sm:$0xf] %v3407
      %3412 = vst [vmem:[#allocation4 + $0x64] sm:$0xf] %v3408
      %v3414 = vunpack.c.l.b16 %v3317
      %v3415 = vunpack.c.h.b16 %v3317
      %v3416 = vpack.c.b16 %v3414, %v3414
      %v3417 = vpack.c.b16 %v3415, %v3415
      %3420 = vst [vmem:[#allocation4 + $0x28] sm:$0xf] %v3416
      %3421 = vst [vmem:[#allocation4 + $0x68] sm:$0xf] %v3417
      %v3423 = vunpack.c.l.b16 %v3318
      %v3424 = vunpack.c.h.b16 %v3318
      %v3425 = vpack.c.b16 %v3423, %v3423
      %v3426 = vpack.c.b16 %v3424, %v3424
      %3429 = vst [vmem:[#allocation4 + $0x2c] sm:$0xf] %v3425
      %3430 = vst [vmem:[#allocation4 + $0x6c] sm:$0xf] %v3426
      %v3432 = vunpack.c.l.b16 %v3319
      %v3433 = vunpack.c.h.b16 %v3319
      %v3434 = vpack.c.b16 %v3432, %v3432
      %v3435 = vpack.c.b16 %v3433, %v3433
      %3438 = vst [vmem:[#allocation4 + $0x30] sm:$0xf] %v3434
      %3439 = vst [vmem:[#allocation4 + $0x70] sm:$0xf] %v3435
      %v3441 = vunpack.c.l.b16 %v3320
      %v3442 = vunpack.c.h.b16 %v3320
      %v3443 = vpack.c.b16 %v3441, %v3441
      %v3444 = vpack.c.b16 %v3442, %v3442
      %3447 = vst [vmem:[#allocation4 + $0x34] sm:$0xf] %v3443
      %3448 = vst [vmem:[#allocation4 + $0x74] sm:$0xf] %v3444
      %v3450 = vunpack.c.l.b16 %v3321
      %v3451 = vunpack.c.h.b16 %v3321
      %v3452 = vpack.c.b16 %v3450, %v3450
      %v3453 = vpack.c.b16 %v3451, %v3451
      %3456 = vst [vmem:[#allocation4 + $0x38] sm:$0xf] %v3452
      %3457 = vst [vmem:[#allocation4 + $0x78] sm:$0xf] %v3453
      %v3459 = vunpack.c.l.b16 %v3322
      %v3460 = vunpack.c.h.b16 %v3322
      %v3461 = vpack.c.b16 %v3459, %v3459
      %v3462 = vpack.c.b16 %v3460, %v3460
      %3465 = vst [vmem:[#allocation4 + $0x3c] sm:$0xf] %v3461
      %3466 = vst [vmem:[#allocation4 + $0x7c] sm:$0xf] %v3462
      %v3467 = vld [vmem:[#allocation4] sm:$0xff]
      %v3468 = vld [vmem:[#allocation4 + $0x8] sm:$0xff]
      %v3469 = vld [vmem:[#allocation4 + $0x10] sm:$0xff]
      %v3470 = vld [vmem:[#allocation4 + $0x18] sm:$0xff]
      %v3471 = vld [vmem:[#allocation4 + $0x20] sm:$0xff]
      %v3472 = vld [vmem:[#allocation4 + $0x28] sm:$0xff]
      %v3473 = vld [vmem:[#allocation4 + $0x30] sm:$0xff]
      %v3474 = vld [vmem:[#allocation4 + $0x38] sm:$0xff]
      %v3475 = vld [vmem:[#allocation4 + $0x40] sm:$0xff]
      %v3476 = vld [vmem:[#allocation4 + $0x48] sm:$0xff]
      %v3477 = vld [vmem:[#allocation4 + $0x50] sm:$0xff]
      %v3478 = vld [vmem:[#allocation4 + $0x58] sm:$0xff]
      %v3479 = vld [vmem:[#allocation4 + $0x60] sm:$0xff]
      %v3480 = vld [vmem:[#allocation4 + $0x68] sm:$0xff]
      %v3481 = vld [vmem:[#allocation4 + $0x70] sm:$0xff]
      %v3482 = vld [vmem:[#allocation4 + $0x78] sm:$0xff]
      %v3483 = vld [vmem:[%s4] sm:$0xff]
      %v3484 = vld [vmem:[%s4 + $0x8] sm:$0xff]
      %v3485 = vld [vmem:[%s4 + $0x10] sm:$0xff]
      %v3486 = vld [vmem:[%s4 + $0x18] sm:$0xff]
      %v3487 = vld [vmem:[%s4 + $0x20] sm:$0xff]
      %v3488 = vld [vmem:[%s4 + $0x28] sm:$0xff]
      %v3489 = vld [vmem:[%s4 + $0x30] sm:$0xff]
      %v3490 = vld [vmem:[%s4 + $0x38] sm:$0xff]
      %v3491 = vld [vmem:[%s4 + $0x40] sm:$0xff]
      %v3492 = vld [vmem:[%s4 + $0x48] sm:$0xff]
      %v3493 = vld [vmem:[%s4 + $0x50] sm:$0xff]
      %v3494 = vld [vmem:[%s4 + $0x58] sm:$0xff]
      %v3495 = vld [vmem:[%s4 + $0x60] sm:$0xff]
      %v3496 = vld [vmem:[%s4 + $0x68] sm:$0xff]
      %v3497 = vld [vmem:[%s4 + $0x70] sm:$0xff]
      %v3498 = vld [vmem:[%s4 + $0x78] sm:$0xff]
      %v3499 = vld [vmem:[%s4 + $0x80] sm:$0xff]
      %v3500 = vld [vmem:[%s4 + $0x88] sm:$0xff]
      %v3501 = vld [vmem:[%s4 + $0x90] sm:$0xff]
      %v3502 = vld [vmem:[%s4 + $0x98] sm:$0xff]
      %v3503 = vld [vmem:[%s4 + $0xa0] sm:$0xff]
      %v3504 = vld [vmem:[%s4 + $0xa8] sm:$0xff]
      %v3505 = vld [vmem:[%s4 + $0xb0] sm:$0xff]
      %v3506 = vld [vmem:[%s4 + $0xb8] sm:$0xff]
      %v3507 = vld [vmem:[%s4 + $0xc0] sm:$0xff]
      %v3508 = vld [vmem:[%s4 + $0xc8] sm:$0xff]
      %v3509 = vld [vmem:[%s4 + $0xd0] sm:$0xff]
      %v3510 = vld [vmem:[%s4 + $0xd8] sm:$0xff]
      %v3511 = vld [vmem:[%s4 + $0xe0] sm:$0xff]
      %v3512 = vld [vmem:[%s4 + $0xe8] sm:$0xff]
      %v3513 = vld [vmem:[%s4 + $0xf0] sm:$0xff]
      %v3514 = vld [vmem:[%s4 + $0xf8] sm:$0xff]
      %v3515 = vld [vmem:[%s4 + $0x100] sm:$0xff]
      %v3516 = vld [vmem:[%s4 + $0x108] sm:$0xff]
      %v3517 = vld [vmem:[%s4 + $0x110] sm:$0xff]
      %v3518 = vld [vmem:[%s4 + $0x118] sm:$0xff]
      %v3519 = vld [vmem:[%s4 + $0x120] sm:$0xff]
      %v3520 = vld [vmem:[%s4 + $0x128] sm:$0xff]
      %v3521 = vld [vmem:[%s4 + $0x130] sm:$0xff]
      %v3522 = vld [vmem:[%s4 + $0x138] sm:$0xff]
      %v3523 = vld [vmem:[%s4 + $0x140] sm:$0xff]
      %v3524 = vld [vmem:[%s4 + $0x148] sm:$0xff]
      %v3525 = vld [vmem:[%s4 + $0x150] sm:$0xff]
      %v3526 = vld [vmem:[%s4 + $0x158] sm:$0xff]
      %v3527 = vld [vmem:[%s4 + $0x160] sm:$0xff]
      %v3528 = vld [vmem:[%s4 + $0x168] sm:$0xff]
      %v3529 = vld [vmem:[%s4 + $0x170] sm:$0xff]
      %v3530 = vld [vmem:[%s4 + $0x178] sm:$0xff]
      %v3531 = vld [vmem:[%s4 + $0x180] sm:$0xff]
      %v3532 = vld [vmem:[%s4 + $0x188] sm:$0xff]
      %v3533 = vld [vmem:[%s4 + $0x190] sm:$0xff]
      %v3534 = vld [vmem:[%s4 + $0x198] sm:$0xff]
      %v3535 = vld [vmem:[%s4 + $0x1a0] sm:$0xff]
      %v3536 = vld [vmem:[%s4 + $0x1a8] sm:$0xff]
      %v3537 = vld [vmem:[%s4 + $0x1b0] sm:$0xff]
      %v3538 = vld [vmem:[%s4 + $0x1b8] sm:$0xff]
      %v3539 = vld [vmem:[%s4 + $0x1c0] sm:$0xff]
      %v3540 = vld [vmem:[%s4 + $0x1c8] sm:$0xff]
      %v3541 = vld [vmem:[%s4 + $0x1d0] sm:$0xff]
      %v3542 = vld [vmem:[%s4 + $0x1d8] sm:$0xff]
      %v3543 = vld [vmem:[%s4 + $0x1e0] sm:$0xff]
      %v3544 = vld [vmem:[%s4 + $0x1e8] sm:$0xff]
      %v3545 = vld [vmem:[%s4 + $0x1f0] sm:$0xff]
      %v3546 = vld [vmem:[%s4 + $0x1f8] sm:$0xff]
      %v3547 = vld [vmem:[%s4 + $0x200] sm:$0xff]
      %v3548 = vld [vmem:[%s4 + $0x208] sm:$0xff]
      %v3549 = vld [vmem:[%s4 + $0x210] sm:$0xff]
      %v3550 = vld [vmem:[%s4 + $0x218] sm:$0xff]
      %v3551 = vld [vmem:[%s4 + $0x220] sm:$0xff]
      %v3552 = vld [vmem:[%s4 + $0x228] sm:$0xff]
      %v3553 = vld [vmem:[%s4 + $0x230] sm:$0xff]
      %v3554 = vld [vmem:[%s4 + $0x238] sm:$0xff]
      %v3555 = vld [vmem:[%s4 + $0x240] sm:$0xff]
      %v3556 = vld [vmem:[%s4 + $0x248] sm:$0xff]
      %v3557 = vld [vmem:[%s4 + $0x250] sm:$0xff]
      %v3558 = vld [vmem:[%s4 + $0x258] sm:$0xff]
      %v3559 = vld [vmem:[%s4 + $0x260] sm:$0xff]
      %v3560 = vld [vmem:[%s4 + $0x268] sm:$0xff]
      %v3561 = vld [vmem:[%s4 + $0x270] sm:$0xff]
      %v3562 = vld [vmem:[%s4 + $0x278] sm:$0xff]
      %v3563 = vld [vmem:[%s4 + $0x280] sm:$0xff]
      %v3564 = vld [vmem:[%s4 + $0x288] sm:$0xff]
      %v3565 = vld [vmem:[%s4 + $0x290] sm:$0xff]
      %v3566 = vld [vmem:[%s4 + $0x298] sm:$0xff]
      %v3567 = vld [vmem:[%s4 + $0x2a0] sm:$0xff]
      %v3568 = vld [vmem:[%s4 + $0x2a8] sm:$0xff]
      %v3569 = vld [vmem:[%s4 + $0x2b0] sm:$0xff]
      %v3570 = vld [vmem:[%s4 + $0x2b8] sm:$0xff]
      %v3571 = vld [vmem:[%s4 + $0x2c0] sm:$0xff]
      %v3572 = vld [vmem:[%s4 + $0x2c8] sm:$0xff]
      %v3573 = vld [vmem:[%s4 + $0x2d0] sm:$0xff]
      %v3574 = vld [vmem:[%s4 + $0x2d8] sm:$0xff]
      %v3575 = vld [vmem:[%s4 + $0x2e0] sm:$0xff]
      %v3576 = vld [vmem:[%s4 + $0x2e8] sm:$0xff]
      %v3577 = vld [vmem:[%s4 + $0x2f0] sm:$0xff]
      %v3578 = vld [vmem:[%s4 + $0x2f8] sm:$0xff]
      %v3579 = vld [vmem:[%s4 + $0x300] sm:$0xff]
      %v3580 = vld [vmem:[%s4 + $0x308] sm:$0xff]
      %v3581 = vld [vmem:[%s4 + $0x310] sm:$0xff]
      %v3582 = vld [vmem:[%s4 + $0x318] sm:$0xff]
      %v3583 = vld [vmem:[%s4 + $0x320] sm:$0xff]
      %v3584 = vld [vmem:[%s4 + $0x328] sm:$0xff]
      %v3585 = vld [vmem:[%s4 + $0x330] sm:$0xff]
      %v3586 = vld [vmem:[%s4 + $0x338] sm:$0xff]
      %v3587 = vld [vmem:[%s4 + $0x340] sm:$0xff]
      %v3588 = vld [vmem:[%s4 + $0x348] sm:$0xff]
      %v3589 = vld [vmem:[%s4 + $0x350] sm:$0xff]
      %v3590 = vld [vmem:[%s4 + $0x358] sm:$0xff]
      %v3591 = vld [vmem:[%s4 + $0x360] sm:$0xff]
      %v3592 = vld [vmem:[%s4 + $0x368] sm:$0xff]
      %v3593 = vld [vmem:[%s4 + $0x370] sm:$0xff]
      %v3594 = vld [vmem:[%s4 + $0x378] sm:$0xff]
      %v3595 = vld [vmem:[%s4 + $0x380] sm:$0xff]
      %v3596 = vld [vmem:[%s4 + $0x388] sm:$0xff]
      %v3597 = vld [vmem:[%s4 + $0x390] sm:$0xff]
      %v3598 = vld [vmem:[%s4 + $0x398] sm:$0xff]
      %v3599 = vld [vmem:[%s4 + $0x3a0] sm:$0xff]
      %v3600 = vld [vmem:[%s4 + $0x3a8] sm:$0xff]
      %v3601 = vld [vmem:[%s4 + $0x3b0] sm:$0xff]
      %v3602 = vld [vmem:[%s4 + $0x3b8] sm:$0xff]
      %v3603 = vld [vmem:[%s4 + $0x3c0] sm:$0xff]
      %v3604 = vld [vmem:[%s4 + $0x3c8] sm:$0xff]
      %v3605 = vld [vmem:[%s4 + $0x3d0] sm:$0xff]
      %v3606 = vld [vmem:[%s4 + $0x3d8] sm:$0xff]
      %v3607 = vld [vmem:[%s4 + $0x3e0] sm:$0xff]
      %v3608 = vld [vmem:[%s4 + $0x3e8] sm:$0xff]
      %v3609 = vld [vmem:[%s4 + $0x3f0] sm:$0xff]
      %v3610 = vld [vmem:[%s4 + $0x3f8] sm:$0xff]
      %v3611 = vld [vmem:[%s4 + $0x400] sm:$0xff]
      %v3612 = vld [vmem:[%s4 + $0x408] sm:$0xff]
      %v3613 = vld [vmem:[%s4 + $0x410] sm:$0xff]
      %v3614 = vld [vmem:[%s4 + $0x418] sm:$0xff]
      %v3615 = vld [vmem:[%s4 + $0x420] sm:$0xff]
      %v3616 = vld [vmem:[%s4 + $0x428] sm:$0xff]
      %v3617 = vld [vmem:[%s4 + $0x430] sm:$0xff]
      %v3618 = vld [vmem:[%s4 + $0x438] sm:$0xff]
      %v3619 = vld [vmem:[%s4 + $0x440] sm:$0xff]
      %v3620 = vld [vmem:[%s4 + $0x448] sm:$0xff]
      %v3621 = vld [vmem:[%s4 + $0x450] sm:$0xff]
      %v3622 = vld [vmem:[%s4 + $0x458] sm:$0xff]
      %v3623 = vld [vmem:[%s4 + $0x460] sm:$0xff]
      %v3624 = vld [vmem:[%s4 + $0x468] sm:$0xff]
      %v3625 = vld [vmem:[%s4 + $0x470] sm:$0xff]
      %v3626 = vld [vmem:[%s4 + $0x478] sm:$0xff]
      %v3627 = vld [vmem:[%s4 + $0x480] sm:$0xff]
      %v3628 = vld [vmem:[%s4 + $0x488] sm:$0xff]
      %v3629 = vld [vmem:[%s4 + $0x490] sm:$0xff]
      %v3630 = vld [vmem:[%s4 + $0x498] sm:$0xff]
      %v3631 = vld [vmem:[%s4 + $0x4a0] sm:$0xff]
      %v3632 = vld [vmem:[%s4 + $0x4a8] sm:$0xff]
      %v3633 = vld [vmem:[%s4 + $0x4b0] sm:$0xff]
      %v3634 = vld [vmem:[%s4 + $0x4b8] sm:$0xff]
      %v3635 = vld [vmem:[%s4 + $0x4c0] sm:$0xff]
      %v3636 = vld [vmem:[%s4 + $0x4c8] sm:$0xff]
      %v3637 = vld [vmem:[%s4 + $0x4d0] sm:$0xff]
      %v3638 = vld [vmem:[%s4 + $0x4d8] sm:$0xff]
      %v3639 = vld [vmem:[%s4 + $0x4e0] sm:$0xff]
      %v3640 = vld [vmem:[%s4 + $0x4e8] sm:$0xff]
      %v3641 = vld [vmem:[%s4 + $0x4f0] sm:$0xff]
      %v3642 = vld [vmem:[%s4 + $0x4f8] sm:$0xff]
      %v3643 = vld [vmem:[%s4 + $0x500] sm:$0xff]
      %v3644 = vld [vmem:[%s4 + $0x508] sm:$0xff]
      %v3645 = vld [vmem:[%s4 + $0x510] sm:$0xff]
      %v3646 = vld [vmem:[%s4 + $0x518] sm:$0xff]
      %v3647 = vld [vmem:[%s4 + $0x520] sm:$0xff]
      %v3648 = vld [vmem:[%s4 + $0x528] sm:$0xff]
      %v3649 = vld [vmem:[%s4 + $0x530] sm:$0xff]
      %v3650 = vld [vmem:[%s4 + $0x538] sm:$0xff]
      %v3651 = vld [vmem:[%s4 + $0x540] sm:$0xff]
      %v3652 = vld [vmem:[%s4 + $0x548] sm:$0xff]
      %v3653 = vld [vmem:[%s4 + $0x550] sm:$0xff]
      %v3654 = vld [vmem:[%s4 + $0x558] sm:$0xff]
      %v3655 = vld [vmem:[%s4 + $0x560] sm:$0xff]
      %v3656 = vld [vmem:[%s4 + $0x568] sm:$0xff]
      %v3657 = vld [vmem:[%s4 + $0x570] sm:$0xff]
      %v3658 = vld [vmem:[%s4 + $0x578] sm:$0xff]
      %v3659 = vld [vmem:[%s4 + $0x580] sm:$0xff]
      %v3660 = vld [vmem:[%s4 + $0x588] sm:$0xff]
      %v3661 = vld [vmem:[%s4 + $0x590] sm:$0xff]
      %v3662 = vld [vmem:[%s4 + $0x598] sm:$0xff]
      %v3663 = vld [vmem:[%s4 + $0x5a0] sm:$0xff]
      %v3664 = vld [vmem:[%s4 + $0x5a8] sm:$0xff]
      %v3665 = vld [vmem:[%s4 + $0x5b0] sm:$0xff]
      %v3666 = vld [vmem:[%s4 + $0x5b8] sm:$0xff]
      %v3667 = vld [vmem:[%s4 + $0x5c0] sm:$0xff]
      %v3668 = vld [vmem:[%s4 + $0x5c8] sm:$0xff]
      %v3669 = vld [vmem:[%s4 + $0x5d0] sm:$0xff]
      %v3670 = vld [vmem:[%s4 + $0x5d8] sm:$0xff]
      %v3671 = vld [vmem:[%s4 + $0x5e0] sm:$0xff]
      %v3672 = vld [vmem:[%s4 + $0x5e8] sm:$0xff]
      %v3673 = vld [vmem:[%s4 + $0x5f0] sm:$0xff]
      %v3674 = vld [vmem:[%s4 + $0x5f8] sm:$0xff]
      %v3675 = vld [vmem:[%s4 + $0x600] sm:$0xff]
      %v3676 = vld [vmem:[%s4 + $0x608] sm:$0xff]
      %v3677 = vld [vmem:[%s4 + $0x610] sm:$0xff]
      %v3678 = vld [vmem:[%s4 + $0x618] sm:$0xff]
      %v3679 = vld [vmem:[%s4 + $0x620] sm:$0xff]
      %v3680 = vld [vmem:[%s4 + $0x628] sm:$0xff]
      %v3681 = vld [vmem:[%s4 + $0x630] sm:$0xff]
      %v3682 = vld [vmem:[%s4 + $0x638] sm:$0xff]
      %v3683 = vld [vmem:[%s4 + $0x640] sm:$0xff]
      %v3684 = vld [vmem:[%s4 + $0x648] sm:$0xff]
      %v3685 = vld [vmem:[%s4 + $0x650] sm:$0xff]
      %v3686 = vld [vmem:[%s4 + $0x658] sm:$0xff]
      %v3687 = vld [vmem:[%s4 + $0x660] sm:$0xff]
      %v3688 = vld [vmem:[%s4 + $0x668] sm:$0xff]
      %v3689 = vld [vmem:[%s4 + $0x670] sm:$0xff]
      %v3690 = vld [vmem:[%s4 + $0x678] sm:$0xff]
      %v3691 = vld [vmem:[%s4 + $0x680] sm:$0xff]
      %v3692 = vld [vmem:[%s4 + $0x688] sm:$0xff]
      %v3693 = vld [vmem:[%s4 + $0x690] sm:$0xff]
      %v3694 = vld [vmem:[%s4 + $0x698] sm:$0xff]
      %v3695 = vld [vmem:[%s4 + $0x6a0] sm:$0xff]
      %v3696 = vld [vmem:[%s4 + $0x6a8] sm:$0xff]
      %v3697 = vld [vmem:[%s4 + $0x6b0] sm:$0xff]
      %v3698 = vld [vmem:[%s4 + $0x6b8] sm:$0xff]
      %v3699 = vld [vmem:[%s4 + $0x6c0] sm:$0xff]
      %v3700 = vld [vmem:[%s4 + $0x6c8] sm:$0xff]
      %v3701 = vld [vmem:[%s4 + $0x6d0] sm:$0xff]
      %v3702 = vld [vmem:[%s4 + $0x6d8] sm:$0xff]
      %v3703 = vld [vmem:[%s4 + $0x6e0] sm:$0xff]
      %v3704 = vld [vmem:[%s4 + $0x6e8] sm:$0xff]
      %v3705 = vld [vmem:[%s4 + $0x6f0] sm:$0xff]
      %v3706 = vld [vmem:[%s4 + $0x6f8] sm:$0xff]
      %v3707 = vld [vmem:[%s4 + $0x700] sm:$0xff]
      %v3708 = vld [vmem:[%s4 + $0x708] sm:$0xff]
      %v3709 = vld [vmem:[%s4 + $0x710] sm:$0xff]
      %v3710 = vld [vmem:[%s4 + $0x718] sm:$0xff]
      %v3711 = vld [vmem:[%s4 + $0x720] sm:$0xff]
      %v3712 = vld [vmem:[%s4 + $0x728] sm:$0xff]
      %v3713 = vld [vmem:[%s4 + $0x730] sm:$0xff]
      %v3714 = vld [vmem:[%s4 + $0x738] sm:$0xff]
      %v3715 = vld [vmem:[%s4 + $0x740] sm:$0xff]
      %v3716 = vld [vmem:[%s4 + $0x748] sm:$0xff]
      %v3717 = vld [vmem:[%s4 + $0x750] sm:$0xff]
      %v3718 = vld [vmem:[%s4 + $0x758] sm:$0xff]
      %v3719 = vld [vmem:[%s4 + $0x760] sm:$0xff]
      %v3720 = vld [vmem:[%s4 + $0x768] sm:$0xff]
      %v3721 = vld [vmem:[%s4 + $0x770] sm:$0xff]
      %v3722 = vld [vmem:[%s4 + $0x778] sm:$0xff]
      %v3723 = vld [vmem:[%s4 + $0x780] sm:$0xff]
      %v3724 = vld [vmem:[%s4 + $0x788] sm:$0xff]
      %v3725 = vld [vmem:[%s4 + $0x790] sm:$0xff]
      %v3726 = vld [vmem:[%s4 + $0x798] sm:$0xff]
      %v3727 = vld [vmem:[%s4 + $0x7a0] sm:$0xff]
      %v3728 = vld [vmem:[%s4 + $0x7a8] sm:$0xff]
      %v3729 = vld [vmem:[%s4 + $0x7b0] sm:$0xff]
      %v3730 = vld [vmem:[%s4 + $0x7b8] sm:$0xff]
      %v3731 = vld [vmem:[%s4 + $0x7c0] sm:$0xff]
      %v3732 = vld [vmem:[%s4 + $0x7c8] sm:$0xff]
      %v3733 = vld [vmem:[%s4 + $0x7d0] sm:$0xff]
      %v3734 = vld [vmem:[%s4 + $0x7d8] sm:$0xff]
      %v3735 = vld [vmem:[%s4 + $0x7e0] sm:$0xff]
      %v3736 = vld [vmem:[%s4 + $0x7e8] sm:$0xff]
      %v3737 = vld [vmem:[%s4 + $0x7f0] sm:$0xff]
      %v3738 = vld [vmem:[%s4 + $0x7f8] sm:$0xff]
      %v3755 = vunpack.c.l.b16 %v3467
      %v3756 = vunpack.c.h.b16 %v3467
      %v3757 = vunpack.c.l.b16 %v3468
      %v3758 = vunpack.c.h.b16 %v3468
      %v3759 = vunpack.c.l.b16 %v3469
      %v3760 = vunpack.c.h.b16 %v3469
      %v3761 = vunpack.c.l.b16 %v3470
      %v3762 = vunpack.c.h.b16 %v3470
      %v3763 = vunpack.c.l.b16 %v3471
      %v3764 = vunpack.c.h.b16 %v3471
      %v3765 = vunpack.c.l.b16 %v3472
      %v3766 = vunpack.c.h.b16 %v3472
      %v3767 = vunpack.c.l.b16 %v3473
      %v3768 = vunpack.c.h.b16 %v3473
      %v3769 = vunpack.c.l.b16 %v3474
      %v3770 = vunpack.c.h.b16 %v3474
      %v3771 = vunpack.c.l.b16 %v3475
      %v3772 = vunpack.c.h.b16 %v3475
      %v3773 = vunpack.c.l.b16 %v3476
      %v3774 = vunpack.c.h.b16 %v3476
      %v3775 = vunpack.c.l.b16 %v3477
      %v3776 = vunpack.c.h.b16 %v3477
      %v3777 = vunpack.c.l.b16 %v3478
      %v3778 = vunpack.c.h.b16 %v3478
      %v3779 = vunpack.c.l.b16 %v3479
      %v3780 = vunpack.c.h.b16 %v3479
      %v3781 = vunpack.c.l.b16 %v3480
      %v3782 = vunpack.c.h.b16 %v3480
      %v3783 = vunpack.c.l.b16 %v3481
      %v3784 = vunpack.c.h.b16 %v3481
      %v3785 = vunpack.c.l.b16 %v3482
      %v3786 = vunpack.c.h.b16 %v3482
      %v3787 = vpack.c.b16 %v3771, %v3755
      %v3788 = vpack.c.b16 %v3772, %v3756
      %v3789 = vpack.c.b16 %v3773, %v3757
      %v3790 = vpack.c.b16 %v3774, %v3758
      %v3791 = vpack.c.b16 %v3775, %v3759
      %v3792 = vpack.c.b16 %v3776, %v3760
      %v3793 = vpack.c.b16 %v3777, %v3761
      %v3794 = vpack.c.b16 %v3778, %v3762
      %v3795 = vpack.c.b16 %v3779, %v3763
      %v3796 = vpack.c.b16 %v3780, %v3764
      %v3797 = vpack.c.b16 %v3781, %v3765
      %v3798 = vpack.c.b16 %v3782, %v3766
      %v3799 = vpack.c.b16 %v3783, %v3767
      %v3800 = vpack.c.b16 %v3784, %v3768
      %v3801 = vpack.c.b16 %v3785, %v3769
      %v3802 = vpack.c.b16 %v3786, %v3770
      %v4075 = vunpack.c.l.b16 %v3483
      %v4076 = vunpack.c.h.b16 %v3483
      %v4077 = vunpack.c.l.b16 %v3484
      %v4078 = vunpack.c.h.b16 %v3484
      %v4079 = vunpack.c.l.b16 %v3485
      %v4080 = vunpack.c.h.b16 %v3485
      %v4081 = vunpack.c.l.b16 %v3486
      %v4082 = vunpack.c.h.b16 %v3486
      %v4083 = vunpack.c.l.b16 %v3487
      %v4084 = vunpack.c.h.b16 %v3487
      %v4085 = vunpack.c.l.b16 %v3488
      %v4086 = vunpack.c.h.b16 %v3488
      %v4087 = vunpack.c.l.b16 %v3489
      %v4088 = vunpack.c.h.b16 %v3489
      %v4089 = vunpack.c.l.b16 %v3490
      %v4090 = vunpack.c.h.b16 %v3490
      %v4091 = vunpack.c.l.b16 %v3491
      %v4092 = vunpack.c.h.b16 %v3491
      %v4093 = vunpack.c.l.b16 %v3492
      %v4094 = vunpack.c.h.b16 %v3492
      %v4095 = vunpack.c.l.b16 %v3493
      %v4096 = vunpack.c.h.b16 %v3493
      %v4097 = vunpack.c.l.b16 %v3494
      %v4098 = vunpack.c.h.b16 %v3494
      %v4099 = vunpack.c.l.b16 %v3495
      %v4100 = vunpack.c.h.b16 %v3495
      %v4101 = vunpack.c.l.b16 %v3496
      %v4102 = vunpack.c.h.b16 %v3496
      %v4103 = vunpack.c.l.b16 %v3497
      %v4104 = vunpack.c.h.b16 %v3497
      %v4105 = vunpack.c.l.b16 %v3498
      %v4106 = vunpack.c.h.b16 %v3498
      %v4107 = vunpack.c.l.b16 %v3499
      %v4108 = vunpack.c.h.b16 %v3499
      %v4109 = vunpack.c.l.b16 %v3500
      %v4110 = vunpack.c.h.b16 %v3500
      %v4111 = vunpack.c.l.b16 %v3501
      %v4112 = vunpack.c.h.b16 %v3501
      %v4113 = vunpack.c.l.b16 %v3502
      %v4114 = vunpack.c.h.b16 %v3502
      %v4115 = vunpack.c.l.b16 %v3503
      %v4116 = vunpack.c.h.b16 %v3503
      %v4117 = vunpack.c.l.b16 %v3504
      %v4118 = vunpack.c.h.b16 %v3504
      %v4119 = vunpack.c.l.b16 %v3505
      %v4120 = vunpack.c.h.b16 %v3505
      %v4121 = vunpack.c.l.b16 %v3506
      %v4122 = vunpack.c.h.b16 %v3506
      %v4123 = vunpack.c.l.b16 %v3507
      %v4124 = vunpack.c.h.b16 %v3507
      %v4125 = vunpack.c.l.b16 %v3508
      %v4126 = vunpack.c.h.b16 %v3508
      %v4127 = vunpack.c.l.b16 %v3509
      %v4128 = vunpack.c.h.b16 %v3509
      %v4129 = vunpack.c.l.b16 %v3510
      %v4130 = vunpack.c.h.b16 %v3510
      %v4131 = vunpack.c.l.b16 %v3511
      %v4132 = vunpack.c.h.b16 %v3511
      %v4133 = vunpack.c.l.b16 %v3512
      %v4134 = vunpack.c.h.b16 %v3512
      %v4135 = vunpack.c.l.b16 %v3513
      %v4136 = vunpack.c.h.b16 %v3513
      %v4137 = vunpack.c.l.b16 %v3514
      %v4138 = vunpack.c.h.b16 %v3514
      %v4139 = vunpack.c.l.b16 %v3515
      %v4140 = vunpack.c.h.b16 %v3515
      %v4141 = vunpack.c.l.b16 %v3516
      %v4142 = vunpack.c.h.b16 %v3516
      %v4143 = vunpack.c.l.b16 %v3517
      %v4144 = vunpack.c.h.b16 %v3517
      %v4145 = vunpack.c.l.b16 %v3518
      %v4146 = vunpack.c.h.b16 %v3518
      %v4147 = vunpack.c.l.b16 %v3519
      %v4148 = vunpack.c.h.b16 %v3519
      %v4149 = vunpack.c.l.b16 %v3520
      %v4150 = vunpack.c.h.b16 %v3520
      %v4151 = vunpack.c.l.b16 %v3521
      %v4152 = vunpack.c.h.b16 %v3521
      %v4153 = vunpack.c.l.b16 %v3522
      %v4154 = vunpack.c.h.b16 %v3522
      %v4155 = vunpack.c.l.b16 %v3523
      %v4156 = vunpack.c.h.b16 %v3523
      %v4157 = vunpack.c.l.b16 %v3524
      %v4158 = vunpack.c.h.b16 %v3524
      %v4159 = vunpack.c.l.b16 %v3525
      %v4160 = vunpack.c.h.b16 %v3525
      %v4161 = vunpack.c.l.b16 %v3526
      %v4162 = vunpack.c.h.b16 %v3526
      %v4163 = vunpack.c.l.b16 %v3527
      %v4164 = vunpack.c.h.b16 %v3527
      %v4165 = vunpack.c.l.b16 %v3528
      %v4166 = vunpack.c.h.b16 %v3528
      %v4167 = vunpack.c.l.b16 %v3529
      %v4168 = vunpack.c.h.b16 %v3529
      %v4169 = vunpack.c.l.b16 %v3530
      %v4170 = vunpack.c.h.b16 %v3530
      %v4171 = vunpack.c.l.b16 %v3531
      %v4172 = vunpack.c.h.b16 %v3531
      %v4173 = vunpack.c.l.b16 %v3532
      %v4174 = vunpack.c.h.b16 %v3532
      %v4175 = vunpack.c.l.b16 %v3533
      %v4176 = vunpack.c.h.b16 %v3533
      %v4177 = vunpack.c.l.b16 %v3534
      %v4178 = vunpack.c.h.b16 %v3534
      %v4179 = vunpack.c.l.b16 %v3535
      %v4180 = vunpack.c.h.b16 %v3535
      %v4181 = vunpack.c.l.b16 %v3536
      %v4182 = vunpack.c.h.b16 %v3536
      %v4183 = vunpack.c.l.b16 %v3537
      %v4184 = vunpack.c.h.b16 %v3537
      %v4185 = vunpack.c.l.b16 %v3538
      %v4186 = vunpack.c.h.b16 %v3538
      %v4187 = vunpack.c.l.b16 %v3539
      %v4188 = vunpack.c.h.b16 %v3539
      %v4189 = vunpack.c.l.b16 %v3540
      %v4190 = vunpack.c.h.b16 %v3540
      %v4191 = vunpack.c.l.b16 %v3541
      %v4192 = vunpack.c.h.b16 %v3541
      %v4193 = vunpack.c.l.b16 %v3542
      %v4194 = vunpack.c.h.b16 %v3542
      %v4195 = vunpack.c.l.b16 %v3543
      %v4196 = vunpack.c.h.b16 %v3543
      %v4197 = vunpack.c.l.b16 %v3544
      %v4198 = vunpack.c.h.b16 %v3544
      %v4199 = vunpack.c.l.b16 %v3545
      %v4200 = vunpack.c.h.b16 %v3545
      %v4201 = vunpack.c.l.b16 %v3546
      %v4202 = vunpack.c.h.b16 %v3546
      %v4203 = vunpack.c.l.b16 %v3547
      %v4204 = vunpack.c.h.b16 %v3547
      %v4205 = vunpack.c.l.b16 %v3548
      %v4206 = vunpack.c.h.b16 %v3548
      %v4207 = vunpack.c.l.b16 %v3549
      %v4208 = vunpack.c.h.b16 %v3549
      %v4209 = vunpack.c.l.b16 %v3550
      %v4210 = vunpack.c.h.b16 %v3550
      %v4211 = vunpack.c.l.b16 %v3551
      %v4212 = vunpack.c.h.b16 %v3551
      %v4213 = vunpack.c.l.b16 %v3552
      %v4214 = vunpack.c.h.b16 %v3552
      %v4215 = vunpack.c.l.b16 %v3553
      %v4216 = vunpack.c.h.b16 %v3553
      %v4217 = vunpack.c.l.b16 %v3554
      %v4218 = vunpack.c.h.b16 %v3554
      %v4219 = vunpack.c.l.b16 %v3555
      %v4220 = vunpack.c.h.b16 %v3555
      %v4221 = vunpack.c.l.b16 %v3556
      %v4222 = vunpack.c.h.b16 %v3556
      %v4223 = vunpack.c.l.b16 %v3557
      %v4224 = vunpack.c.h.b16 %v3557
      %v4225 = vunpack.c.l.b16 %v3558
      %v4226 = vunpack.c.h.b16 %v3558
      %v4227 = vunpack.c.l.b16 %v3559
      %v4228 = vunpack.c.h.b16 %v3559
      %v4229 = vunpack.c.l.b16 %v3560
      %v4230 = vunpack.c.h.b16 %v3560
      %v4231 = vunpack.c.l.b16 %v3561
      %v4232 = vunpack.c.h.b16 %v3561
      %v4233 = vunpack.c.l.b16 %v3562
      %v4234 = vunpack.c.h.b16 %v3562
      %v4235 = vunpack.c.l.b16 %v3563
      %v4236 = vunpack.c.h.b16 %v3563
      %v4237 = vunpack.c.l.b16 %v3564
      %v4238 = vunpack.c.h.b16 %v3564
      %v4239 = vunpack.c.l.b16 %v3565
      %v4240 = vunpack.c.h.b16 %v3565
      %v4241 = vunpack.c.l.b16 %v3566
      %v4242 = vunpack.c.h.b16 %v3566
      %v4243 = vunpack.c.l.b16 %v3567
      %v4244 = vunpack.c.h.b16 %v3567
      %v4245 = vunpack.c.l.b16 %v3568
      %v4246 = vunpack.c.h.b16 %v3568
      %v4247 = vunpack.c.l.b16 %v3569
      %v4248 = vunpack.c.h.b16 %v3569
      %v4249 = vunpack.c.l.b16 %v3570
      %v4250 = vunpack.c.h.b16 %v3570
      %v4251 = vunpack.c.l.b16 %v3571
      %v4252 = vunpack.c.h.b16 %v3571
      %v4253 = vunpack.c.l.b16 %v3572
      %v4254 = vunpack.c.h.b16 %v3572
      %v4255 = vunpack.c.l.b16 %v3573
      %v4256 = vunpack.c.h.b16 %v3573
      %v4257 = vunpack.c.l.b16 %v3574
      %v4258 = vunpack.c.h.b16 %v3574
      %v4259 = vunpack.c.l.b16 %v3575
      %v4260 = vunpack.c.h.b16 %v3575
      %v4261 = vunpack.c.l.b16 %v3576
      %v4262 = vunpack.c.h.b16 %v3576
      %v4263 = vunpack.c.l.b16 %v3577
      %v4264 = vunpack.c.h.b16 %v3577
      %v4265 = vunpack.c.l.b16 %v3578
      %v4266 = vunpack.c.h.b16 %v3578
      %v4267 = vunpack.c.l.b16 %v3579
      %v4268 = vunpack.c.h.b16 %v3579
      %v4269 = vunpack.c.l.b16 %v3580
      %v4270 = vunpack.c.h.b16 %v3580
      %v4271 = vunpack.c.l.b16 %v3581
      %v4272 = vunpack.c.h.b16 %v3581
      %v4273 = vunpack.c.l.b16 %v3582
      %v4274 = vunpack.c.h.b16 %v3582
      %v4275 = vunpack.c.l.b16 %v3583
      %v4276 = vunpack.c.h.b16 %v3583
      %v4277 = vunpack.c.l.b16 %v3584
      %v4278 = vunpack.c.h.b16 %v3584
      %v4279 = vunpack.c.l.b16 %v3585
      %v4280 = vunpack.c.h.b16 %v3585
      %v4281 = vunpack.c.l.b16 %v3586
      %v4282 = vunpack.c.h.b16 %v3586
      %v4283 = vunpack.c.l.b16 %v3587
      %v4284 = vunpack.c.h.b16 %v3587
      %v4285 = vunpack.c.l.b16 %v3588
      %v4286 = vunpack.c.h.b16 %v3588
      %v4287 = vunpack.c.l.b16 %v3589
      %v4288 = vunpack.c.h.b16 %v3589
      %v4289 = vunpack.c.l.b16 %v3590
      %v4290 = vunpack.c.h.b16 %v3590
      %v4291 = vunpack.c.l.b16 %v3591
      %v4292 = vunpack.c.h.b16 %v3591
      %v4293 = vunpack.c.l.b16 %v3592
      %v4294 = vunpack.c.h.b16 %v3592
      %v4295 = vunpack.c.l.b16 %v3593
      %v4296 = vunpack.c.h.b16 %v3593
      %v4297 = vunpack.c.l.b16 %v3594
      %v4298 = vunpack.c.h.b16 %v3594
      %v4299 = vunpack.c.l.b16 %v3595
      %v4300 = vunpack.c.h.b16 %v3595
      %v4301 = vunpack.c.l.b16 %v3596
      %v4302 = vunpack.c.h.b16 %v3596
      %v4303 = vunpack.c.l.b16 %v3597
      %v4304 = vunpack.c.h.b16 %v3597
      %v4305 = vunpack.c.l.b16 %v3598
      %v4306 = vunpack.c.h.b16 %v3598
      %v4307 = vunpack.c.l.b16 %v3599
      %v4308 = vunpack.c.h.b16 %v3599
      %v4309 = vunpack.c.l.b16 %v3600
      %v4310 = vunpack.c.h.b16 %v3600
      %v4311 = vunpack.c.l.b16 %v3601
      %v4312 = vunpack.c.h.b16 %v3601
      %v4313 = vunpack.c.l.b16 %v3602
      %v4314 = vunpack.c.h.b16 %v3602
      %v4315 = vunpack.c.l.b16 %v3603
      %v4316 = vunpack.c.h.b16 %v3603
      %v4317 = vunpack.c.l.b16 %v3604
      %v4318 = vunpack.c.h.b16 %v3604
      %v4319 = vunpack.c.l.b16 %v3605
      %v4320 = vunpack.c.h.b16 %v3605
      %v4321 = vunpack.c.l.b16 %v3606
      %v4322 = vunpack.c.h.b16 %v3606
      %v4323 = vunpack.c.l.b16 %v3607
      %v4324 = vunpack.c.h.b16 %v3607
      %v4325 = vunpack.c.l.b16 %v3608
      %v4326 = vunpack.c.h.b16 %v3608
      %v4327 = vunpack.c.l.b16 %v3609
      %v4328 = vunpack.c.h.b16 %v3609
      %v4329 = vunpack.c.l.b16 %v3610
      %v4330 = vunpack.c.h.b16 %v3610
      %v4331 = vunpack.c.l.b16 %v3611
      %v4332 = vunpack.c.h.b16 %v3611
      %v4333 = vunpack.c.l.b16 %v3612
      %v4334 = vunpack.c.h.b16 %v3612
      %v4335 = vunpack.c.l.b16 %v3613
      %v4336 = vunpack.c.h.b16 %v3613
      %v4337 = vunpack.c.l.b16 %v3614
      %v4338 = vunpack.c.h.b16 %v3614
      %v4339 = vunpack.c.l.b16 %v3615
      %v4340 = vunpack.c.h.b16 %v3615
      %v4341 = vunpack.c.l.b16 %v3616
      %v4342 = vunpack.c.h.b16 %v3616
      %v4343 = vunpack.c.l.b16 %v3617
      %v4344 = vunpack.c.h.b16 %v3617
      %v4345 = vunpack.c.l.b16 %v3618
      %v4346 = vunpack.c.h.b16 %v3618
      %v4347 = vunpack.c.l.b16 %v3619
      %v4348 = vunpack.c.h.b16 %v3619
      %v4349 = vunpack.c.l.b16 %v3620
      %v4350 = vunpack.c.h.b16 %v3620
      %v4351 = vunpack.c.l.b16 %v3621
      %v4352 = vunpack.c.h.b16 %v3621
      %v4353 = vunpack.c.l.b16 %v3622
      %v4354 = vunpack.c.h.b16 %v3622
      %v4355 = vunpack.c.l.b16 %v3623
      %v4356 = vunpack.c.h.b16 %v3623
      %v4357 = vunpack.c.l.b16 %v3624
      %v4358 = vunpack.c.h.b16 %v3624
      %v4359 = vunpack.c.l.b16 %v3625
      %v4360 = vunpack.c.h.b16 %v3625
      %v4361 = vunpack.c.l.b16 %v3626
      %v4362 = vunpack.c.h.b16 %v3626
      %v4363 = vunpack.c.l.b16 %v3627
      %v4364 = vunpack.c.h.b16 %v3627
      %v4365 = vunpack.c.l.b16 %v3628
      %v4366 = vunpack.c.h.b16 %v3628
      %v4367 = vunpack.c.l.b16 %v3629
      %v4368 = vunpack.c.h.b16 %v3629
      %v4369 = vunpack.c.l.b16 %v3630
      %v4370 = vunpack.c.h.b16 %v3630
      %v4371 = vunpack.c.l.b16 %v3631
      %v4372 = vunpack.c.h.b16 %v3631
      %v4373 = vunpack.c.l.b16 %v3632
      %v4374 = vunpack.c.h.b16 %v3632
      %v4375 = vunpack.c.l.b16 %v3633
      %v4376 = vunpack.c.h.b16 %v3633
      %v4377 = vunpack.c.l.b16 %v3634
      %v4378 = vunpack.c.h.b16 %v3634
      %v4379 = vunpack.c.l.b16 %v3635
      %v4380 = vunpack.c.h.b16 %v3635
      %v4381 = vunpack.c.l.b16 %v3636
      %v4382 = vunpack.c.h.b16 %v3636
      %v4383 = vunpack.c.l.b16 %v3637
      %v4384 = vunpack.c.h.b16 %v3637
      %v4385 = vunpack.c.l.b16 %v3638
      %v4386 = vunpack.c.h.b16 %v3638
      %v4387 = vunpack.c.l.b16 %v3639
      %v4388 = vunpack.c.h.b16 %v3639
      %v4389 = vunpack.c.l.b16 %v3640
      %v4390 = vunpack.c.h.b16 %v3640
      %v4391 = vunpack.c.l.b16 %v3641
      %v4392 = vunpack.c.h.b16 %v3641
      %v4393 = vunpack.c.l.b16 %v3642
      %v4394 = vunpack.c.h.b16 %v3642
      %v4395 = vunpack.c.l.b16 %v3643
      %v4396 = vunpack.c.h.b16 %v3643
      %v4397 = vunpack.c.l.b16 %v3644
      %v4398 = vunpack.c.h.b16 %v3644
      %v4399 = vunpack.c.l.b16 %v3645
      %v4400 = vunpack.c.h.b16 %v3645
      %v4401 = vunpack.c.l.b16 %v3646
      %v4402 = vunpack.c.h.b16 %v3646
      %v4403 = vunpack.c.l.b16 %v3647
      %v4404 = vunpack.c.h.b16 %v3647
      %v4405 = vunpack.c.l.b16 %v3648
      %v4406 = vunpack.c.h.b16 %v3648
      %v4407 = vunpack.c.l.b16 %v3649
      %v4408 = vunpack.c.h.b16 %v3649
      %v4409 = vunpack.c.l.b16 %v3650
      %v4410 = vunpack.c.h.b16 %v3650
      %v4411 = vunpack.c.l.b16 %v3651
      %v4412 = vunpack.c.h.b16 %v3651
      %v4413 = vunpack.c.l.b16 %v3652
      %v4414 = vunpack.c.h.b16 %v3652
      %v4415 = vunpack.c.l.b16 %v3653
      %v4416 = vunpack.c.h.b16 %v3653
      %v4417 = vunpack.c.l.b16 %v3654
      %v4418 = vunpack.c.h.b16 %v3654
      %v4419 = vunpack.c.l.b16 %v3655
      %v4420 = vunpack.c.h.b16 %v3655
      %v4421 = vunpack.c.l.b16 %v3656
      %v4422 = vunpack.c.h.b16 %v3656
      %v4423 = vunpack.c.l.b16 %v3657
      %v4424 = vunpack.c.h.b16 %v3657
      %v4425 = vunpack.c.l.b16 %v3658
      %v4426 = vunpack.c.h.b16 %v3658
      %v4427 = vunpack.c.l.b16 %v3659
      %v4428 = vunpack.c.h.b16 %v3659
      %v4429 = vunpack.c.l.b16 %v3660
      %v4430 = vunpack.c.h.b16 %v3660
      %v4431 = vunpack.c.l.b16 %v3661
      %v4432 = vunpack.c.h.b16 %v3661
      %v4433 = vunpack.c.l.b16 %v3662
      %v4434 = vunpack.c.h.b16 %v3662
      %v4435 = vunpack.c.l.b16 %v3663
      %v4436 = vunpack.c.h.b16 %v3663
      %v4437 = vunpack.c.l.b16 %v3664
      %v4438 = vunpack.c.h.b16 %v3664
      %v4439 = vunpack.c.l.b16 %v3665
      %v4440 = vunpack.c.h.b16 %v3665
      %v4441 = vunpack.c.l.b16 %v3666
      %v4442 = vunpack.c.h.b16 %v3666
      %v4443 = vunpack.c.l.b16 %v3667
      %v4444 = vunpack.c.h.b16 %v3667
      %v4445 = vunpack.c.l.b16 %v3668
      %v4446 = vunpack.c.h.b16 %v3668
      %v4447 = vunpack.c.l.b16 %v3669
      %v4448 = vunpack.c.h.b16 %v3669
      %v4449 = vunpack.c.l.b16 %v3670
      %v4450 = vunpack.c.h.b16 %v3670
      %v4451 = vunpack.c.l.b16 %v3671
      %v4452 = vunpack.c.h.b16 %v3671
      %v4453 = vunpack.c.l.b16 %v3672
      %v4454 = vunpack.c.h.b16 %v3672
      %v4455 = vunpack.c.l.b16 %v3673
      %v4456 = vunpack.c.h.b16 %v3673
      %v4457 = vunpack.c.l.b16 %v3674
      %v4458 = vunpack.c.h.b16 %v3674
      %v4459 = vunpack.c.l.b16 %v3675
      %v4460 = vunpack.c.h.b16 %v3675
      %v4461 = vunpack.c.l.b16 %v3676
      %v4462 = vunpack.c.h.b16 %v3676
      %v4463 = vunpack.c.l.b16 %v3677
      %v4464 = vunpack.c.h.b16 %v3677
      %v4465 = vunpack.c.l.b16 %v3678
      %v4466 = vunpack.c.h.b16 %v3678
      %v4467 = vunpack.c.l.b16 %v3679
      %v4468 = vunpack.c.h.b16 %v3679
      %v4469 = vunpack.c.l.b16 %v3680
      %v4470 = vunpack.c.h.b16 %v3680
      %v4471 = vunpack.c.l.b16 %v3681
      %v4472 = vunpack.c.h.b16 %v3681
      %v4473 = vunpack.c.l.b16 %v3682
      %v4474 = vunpack.c.h.b16 %v3682
      %v4475 = vunpack.c.l.b16 %v3683
      %v4476 = vunpack.c.h.b16 %v3683
      %v4477 = vunpack.c.l.b16 %v3684
      %v4478 = vunpack.c.h.b16 %v3684
      %v4479 = vunpack.c.l.b16 %v3685
      %v4480 = vunpack.c.h.b16 %v3685
      %v4481 = vunpack.c.l.b16 %v3686
      %v4482 = vunpack.c.h.b16 %v3686
      %v4483 = vunpack.c.l.b16 %v3687
      %v4484 = vunpack.c.h.b16 %v3687
      %v4485 = vunpack.c.l.b16 %v3688
      %v4486 = vunpack.c.h.b16 %v3688
      %v4487 = vunpack.c.l.b16 %v3689
      %v4488 = vunpack.c.h.b16 %v3689
      %v4489 = vunpack.c.l.b16 %v3690
      %v4490 = vunpack.c.h.b16 %v3690
      %v4491 = vunpack.c.l.b16 %v3691
      %v4492 = vunpack.c.h.b16 %v3691
      %v4493 = vunpack.c.l.b16 %v3692
      %v4494 = vunpack.c.h.b16 %v3692
      %v4495 = vunpack.c.l.b16 %v3693
      %v4496 = vunpack.c.h.b16 %v3693
      %v4497 = vunpack.c.l.b16 %v3694
      %v4498 = vunpack.c.h.b16 %v3694
      %v4499 = vunpack.c.l.b16 %v3695
      %v4500 = vunpack.c.h.b16 %v3695
      %v4501 = vunpack.c.l.b16 %v3696
      %v4502 = vunpack.c.h.b16 %v3696
      %v4503 = vunpack.c.l.b16 %v3697
      %v4504 = vunpack.c.h.b16 %v3697
      %v4505 = vunpack.c.l.b16 %v3698
      %v4506 = vunpack.c.h.b16 %v3698
      %v4507 = vunpack.c.l.b16 %v3699
      %v4508 = vunpack.c.h.b16 %v3699
      %v4509 = vunpack.c.l.b16 %v3700
      %v4510 = vunpack.c.h.b16 %v3700
      %v4511 = vunpack.c.l.b16 %v3701
      %v4512 = vunpack.c.h.b16 %v3701
      %v4513 = vunpack.c.l.b16 %v3702
      %v4514 = vunpack.c.h.b16 %v3702
      %v4515 = vunpack.c.l.b16 %v3703
      %v4516 = vunpack.c.h.b16 %v3703
      %v4517 = vunpack.c.l.b16 %v3704
      %v4518 = vunpack.c.h.b16 %v3704
      %v4519 = vunpack.c.l.b16 %v3705
      %v4520 = vunpack.c.h.b16 %v3705
      %v4521 = vunpack.c.l.b16 %v3706
      %v4522 = vunpack.c.h.b16 %v3706
      %v4523 = vunpack.c.l.b16 %v3707
      %v4524 = vunpack.c.h.b16 %v3707
      %v4525 = vunpack.c.l.b16 %v3708
      %v4526 = vunpack.c.h.b16 %v3708
      %v4527 = vunpack.c.l.b16 %v3709
      %v4528 = vunpack.c.h.b16 %v3709
      %v4529 = vunpack.c.l.b16 %v3710
      %v4530 = vunpack.c.h.b16 %v3710
      %v4531 = vunpack.c.l.b16 %v3711
      %v4532 = vunpack.c.h.b16 %v3711
      %v4533 = vunpack.c.l.b16 %v3712
      %v4534 = vunpack.c.h.b16 %v3712
      %v4535 = vunpack.c.l.b16 %v3713
      %v4536 = vunpack.c.h.b16 %v3713
      %v4537 = vunpack.c.l.b16 %v3714
      %v4538 = vunpack.c.h.b16 %v3714
      %v4539 = vunpack.c.l.b16 %v3715
      %v4540 = vunpack.c.h.b16 %v3715
      %v4541 = vunpack.c.l.b16 %v3716
      %v4542 = vunpack.c.h.b16 %v3716
      %v4543 = vunpack.c.l.b16 %v3717
      %v4544 = vunpack.c.h.b16 %v3717
      %v4545 = vunpack.c.l.b16 %v3718
      %v4546 = vunpack.c.h.b16 %v3718
      %v4547 = vunpack.c.l.b16 %v3719
      %v4548 = vunpack.c.h.b16 %v3719
      %v4549 = vunpack.c.l.b16 %v3720
      %v4550 = vunpack.c.h.b16 %v3720
      %v4551 = vunpack.c.l.b16 %v3721
      %v4552 = vunpack.c.h.b16 %v3721
      %v4553 = vunpack.c.l.b16 %v3722
      %v4554 = vunpack.c.h.b16 %v3722
      %v4555 = vunpack.c.l.b16 %v3723
      %v4556 = vunpack.c.h.b16 %v3723
      %v4557 = vunpack.c.l.b16 %v3724
      %v4558 = vunpack.c.h.b16 %v3724
      %v4559 = vunpack.c.l.b16 %v3725
      %v4560 = vunpack.c.h.b16 %v3725
      %v4561 = vunpack.c.l.b16 %v3726
      %v4562 = vunpack.c.h.b16 %v3726
      %v4563 = vunpack.c.l.b16 %v3727
      %v4564 = vunpack.c.h.b16 %v3727
      %v4565 = vunpack.c.l.b16 %v3728
      %v4566 = vunpack.c.h.b16 %v3728
      %v4567 = vunpack.c.l.b16 %v3729
      %v4568 = vunpack.c.h.b16 %v3729
      %v4569 = vunpack.c.l.b16 %v3730
      %v4570 = vunpack.c.h.b16 %v3730
      %v4571 = vunpack.c.l.b16 %v3731
      %v4572 = vunpack.c.h.b16 %v3731
      %v4573 = vunpack.c.l.b16 %v3732
      %v4574 = vunpack.c.h.b16 %v3732
      %v4575 = vunpack.c.l.b16 %v3733
      %v4576 = vunpack.c.h.b16 %v3733
      %v4577 = vunpack.c.l.b16 %v3734
      %v4578 = vunpack.c.h.b16 %v3734
      %v4579 = vunpack.c.l.b16 %v3735
      %v4580 = vunpack.c.h.b16 %v3735
      %v4581 = vunpack.c.l.b16 %v3736
      %v4582 = vunpack.c.h.b16 %v3736
      %v4583 = vunpack.c.l.b16 %v3737
      %v4584 = vunpack.c.h.b16 %v3737
      %v4585 = vunpack.c.l.b16 %v3738
      %v4586 = vunpack.c.h.b16 %v3738
      %v4587 = vpack.c.b16 %v4077, %v4075
      %v4588 = vpack.c.b16 %v4078, %v4076
      %v4589 = vpack.c.b16 %v4081, %v4079
      %v4590 = vpack.c.b16 %v4082, %v4080
      %v4591 = vpack.c.b16 %v4085, %v4083
      %v4592 = vpack.c.b16 %v4086, %v4084
      %v4593 = vpack.c.b16 %v4089, %v4087
      %v4594 = vpack.c.b16 %v4090, %v4088
      %v4595 = vpack.c.b16 %v4093, %v4091
      %v4596 = vpack.c.b16 %v4094, %v4092
      %v4597 = vpack.c.b16 %v4097, %v4095
      %v4598 = vpack.c.b16 %v4098, %v4096
      %v4599 = vpack.c.b16 %v4101, %v4099
      %v4600 = vpack.c.b16 %v4102, %v4100
      %v4601 = vpack.c.b16 %v4105, %v4103
      %v4602 = vpack.c.b16 %v4106, %v4104
      %v4603 = vpack.c.b16 %v4109, %v4107
      %v4604 = vpack.c.b16 %v4110, %v4108
      %v4605 = vpack.c.b16 %v4113, %v4111
      %v4606 = vpack.c.b16 %v4114, %v4112
      %v4607 = vpack.c.b16 %v4117, %v4115
      %v4608 = vpack.c.b16 %v4118, %v4116
      %v4609 = vpack.c.b16 %v4121, %v4119
      %v4610 = vpack.c.b16 %v4122, %v4120
      %v4611 = vpack.c.b16 %v4125, %v4123
      %v4612 = vpack.c.b16 %v4126, %v4124
      %v4613 = vpack.c.b16 %v4129, %v4127
      %v4614 = vpack.c.b16 %v4130, %v4128
      %v4615 = vpack.c.b16 %v4133, %v4131
      %v4616 = vpack.c.b16 %v4134, %v4132
      %v4617 = vpack.c.b16 %v4137, %v4135
      %v4618 = vpack.c.b16 %v4138, %v4136
      %v4619 = vpack.c.b16 %v4141, %v4139
      %v4620 = vpack.c.b16 %v4142, %v4140
      %v4621 = vpack.c.b16 %v4145, %v4143
      %v4622 = vpack.c.b16 %v4146, %v4144
      %v4623 = vpack.c.b16 %v4149, %v4147
      %v4624 = vpack.c.b16 %v4150, %v4148
      %v4625 = vpack.c.b16 %v4153, %v4151
      %v4626 = vpack.c.b16 %v4154, %v4152
      %v4627 = vpack.c.b16 %v4157, %v4155
      %v4628 = vpack.c.b16 %v4158, %v4156
      %v4629 = vpack.c.b16 %v4161, %v4159
      %v4630 = vpack.c.b16 %v4162, %v4160
      %v4631 = vpack.c.b16 %v4165, %v4163
      %v4632 = vpack.c.b16 %v4166, %v4164
      %v4633 = vpack.c.b16 %v4169, %v4167
      %v4634 = vpack.c.b16 %v4170, %v4168
      %v4635 = vpack.c.b16 %v4173, %v4171
      %v4636 = vpack.c.b16 %v4174, %v4172
      %v4637 = vpack.c.b16 %v4177, %v4175
      %v4638 = vpack.c.b16 %v4178, %v4176
      %v4639 = vpack.c.b16 %v4181, %v4179
      %v4640 = vpack.c.b16 %v4182, %v4180
      %v4641 = vpack.c.b16 %v4185, %v4183
      %v4642 = vpack.c.b16 %v4186, %v4184
      %v4643 = vpack.c.b16 %v4189, %v4187
      %v4644 = vpack.c.b16 %v4190, %v4188
      %v4645 = vpack.c.b16 %v4193, %v4191
      %v4646 = vpack.c.b16 %v4194, %v4192
      %v4647 = vpack.c.b16 %v4197, %v4195
      %v4648 = vpack.c.b16 %v4198, %v4196
      %v4649 = vpack.c.b16 %v4201, %v4199
      %v4650 = vpack.c.b16 %v4202, %v4200
      %v4651 = vpack.c.b16 %v4205, %v4203
      %v4652 = vpack.c.b16 %v4206, %v4204
      %v4653 = vpack.c.b16 %v4209, %v4207
      %v4654 = vpack.c.b16 %v4210, %v4208
      %v4655 = vpack.c.b16 %v4213, %v4211
      %v4656 = vpack.c.b16 %v4214, %v4212
      %v4657 = vpack.c.b16 %v4217, %v4215
      %v4658 = vpack.c.b16 %v4218, %v4216
      %v4659 = vpack.c.b16 %v4221, %v4219
      %v4660 = vpack.c.b16 %v4222, %v4220
      %v4661 = vpack.c.b16 %v4225, %v4223
      %v4662 = vpack.c.b16 %v4226, %v4224
      %v4663 = vpack.c.b16 %v4229, %v4227
      %v4664 = vpack.c.b16 %v4230, %v4228
      %v4665 = vpack.c.b16 %v4233, %v4231
      %v4666 = vpack.c.b16 %v4234, %v4232
      %v4667 = vpack.c.b16 %v4237, %v4235
      %v4668 = vpack.c.b16 %v4238, %v4236
      %v4669 = vpack.c.b16 %v4241, %v4239
      %v4670 = vpack.c.b16 %v4242, %v4240
      %v4671 = vpack.c.b16 %v4245, %v4243
      %v4672 = vpack.c.b16 %v4246, %v4244
      %v4673 = vpack.c.b16 %v4249, %v4247
      %v4674 = vpack.c.b16 %v4250, %v4248
      %v4675 = vpack.c.b16 %v4253, %v4251
      %v4676 = vpack.c.b16 %v4254, %v4252
      %v4677 = vpack.c.b16 %v4257, %v4255
      %v4678 = vpack.c.b16 %v4258, %v4256
      %v4679 = vpack.c.b16 %v4261, %v4259
      %v4680 = vpack.c.b16 %v4262, %v4260
      %v4681 = vpack.c.b16 %v4265, %v4263
      %v4682 = vpack.c.b16 %v4266, %v4264
      %v4683 = vpack.c.b16 %v4269, %v4267
      %v4684 = vpack.c.b16 %v4270, %v4268
      %v4685 = vpack.c.b16 %v4273, %v4271
      %v4686 = vpack.c.b16 %v4274, %v4272
      %v4687 = vpack.c.b16 %v4277, %v4275
      %v4688 = vpack.c.b16 %v4278, %v4276
      %v4689 = vpack.c.b16 %v4281, %v4279
      %v4690 = vpack.c.b16 %v4282, %v4280
      %v4691 = vpack.c.b16 %v4285, %v4283
      %v4692 = vpack.c.b16 %v4286, %v4284
      %v4693 = vpack.c.b16 %v4289, %v4287
      %v4694 = vpack.c.b16 %v4290, %v4288
      %v4695 = vpack.c.b16 %v4293, %v4291
      %v4696 = vpack.c.b16 %v4294, %v4292
      %v4697 = vpack.c.b16 %v4297, %v4295
      %v4698 = vpack.c.b16 %v4298, %v4296
      %v4699 = vpack.c.b16 %v4301, %v4299
      %v4700 = vpack.c.b16 %v4302, %v4300
      %v4701 = vpack.c.b16 %v4305, %v4303
      %v4702 = vpack.c.b16 %v4306, %v4304
      %v4703 = vpack.c.b16 %v4309, %v4307
      %v4704 = vpack.c.b16 %v4310, %v4308
      %v4705 = vpack.c.b16 %v4313, %v4311
      %v4706 = vpack.c.b16 %v4314, %v4312
      %v4707 = vpack.c.b16 %v4317, %v4315
      %v4708 = vpack.c.b16 %v4318, %v4316
      %v4709 = vpack.c.b16 %v4321, %v4319
      %v4710 = vpack.c.b16 %v4322, %v4320
      %v4711 = vpack.c.b16 %v4325, %v4323
      %v4712 = vpack.c.b16 %v4326, %v4324
      %v4713 = vpack.c.b16 %v4329, %v4327
      %v4714 = vpack.c.b16 %v4330, %v4328
      %v4715 = vpack.c.b16 %v4333, %v4331
      %v4716 = vpack.c.b16 %v4334, %v4332
      %v4717 = vpack.c.b16 %v4337, %v4335
      %v4718 = vpack.c.b16 %v4338, %v4336
      %v4719 = vpack.c.b16 %v4341, %v4339
      %v4720 = vpack.c.b16 %v4342, %v4340
      %v4721 = vpack.c.b16 %v4345, %v4343
      %v4722 = vpack.c.b16 %v4346, %v4344
      %v4723 = vpack.c.b16 %v4349, %v4347
      %v4724 = vpack.c.b16 %v4350, %v4348
      %v4725 = vpack.c.b16 %v4353, %v4351
      %v4726 = vpack.c.b16 %v4354, %v4352
      %v4727 = vpack.c.b16 %v4357, %v4355
      %v4728 = vpack.c.b16 %v4358, %v4356
      %v4729 = vpack.c.b16 %v4361, %v4359
      %v4730 = vpack.c.b16 %v4362, %v4360
      %v4731 = vpack.c.b16 %v4365, %v4363
      %v4732 = vpack.c.b16 %v4366, %v4364
      %v4733 = vpack.c.b16 %v4369, %v4367
      %v4734 = vpack.c.b16 %v4370, %v4368
      %v4735 = vpack.c.b16 %v4373, %v4371
      %v4736 = vpack.c.b16 %v4374, %v4372
      %v4737 = vpack.c.b16 %v4377, %v4375
      %v4738 = vpack.c.b16 %v4378, %v4376
      %v4739 = vpack.c.b16 %v4381, %v4379
      %v4740 = vpack.c.b16 %v4382, %v4380
      %v4741 = vpack.c.b16 %v4385, %v4383
      %v4742 = vpack.c.b16 %v4386, %v4384
      %v4743 = vpack.c.b16 %v4389, %v4387
      %v4744 = vpack.c.b16 %v4390, %v4388
      %v4745 = vpack.c.b16 %v4393, %v4391
      %v4746 = vpack.c.b16 %v4394, %v4392
      %v4747 = vpack.c.b16 %v4397, %v4395
      %v4748 = vpack.c.b16 %v4398, %v4396
      %v4749 = vpack.c.b16 %v4401, %v4399
      %v4750 = vpack.c.b16 %v4402, %v4400
      %v4751 = vpack.c.b16 %v4405, %v4403
      %v4752 = vpack.c.b16 %v4406, %v4404
      %v4753 = vpack.c.b16 %v4409, %v4407
      %v4754 = vpack.c.b16 %v4410, %v4408
      %v4755 = vpack.c.b16 %v4413, %v4411
      %v4756 = vpack.c.b16 %v4414, %v4412
      %v4757 = vpack.c.b16 %v4417, %v4415
      %v4758 = vpack.c.b16 %v4418, %v4416
      %v4759 = vpack.c.b16 %v4421, %v4419
      %v4760 = vpack.c.b16 %v4422, %v4420
      %v4761 = vpack.c.b16 %v4425, %v4423
      %v4762 = vpack.c.b16 %v4426, %v4424
      %v4763 = vpack.c.b16 %v4429, %v4427
      %v4764 = vpack.c.b16 %v4430, %v4428
      %v4765 = vpack.c.b16 %v4433, %v4431
      %v4766 = vpack.c.b16 %v4434, %v4432
      %v4767 = vpack.c.b16 %v4437, %v4435
      %v4768 = vpack.c.b16 %v4438, %v4436
      %v4769 = vpack.c.b16 %v4441, %v4439
      %v4770 = vpack.c.b16 %v4442, %v4440
      %v4771 = vpack.c.b16 %v4445, %v4443
      %v4772 = vpack.c.b16 %v4446, %v4444
      %v4773 = vpack.c.b16 %v4449, %v4447
      %v4774 = vpack.c.b16 %v4450, %v4448
      %v4775 = vpack.c.b16 %v4453, %v4451
      %v4776 = vpack.c.b16 %v4454, %v4452
      %v4777 = vpack.c.b16 %v4457, %v4455
      %v4778 = vpack.c.b16 %v4458, %v4456
      %v4779 = vpack.c.b16 %v4461, %v4459
      %v4780 = vpack.c.b16 %v4462, %v4460
      %v4781 = vpack.c.b16 %v4465, %v4463
      %v4782 = vpack.c.b16 %v4466, %v4464
      %v4783 = vpack.c.b16 %v4469, %v4467
      %v4784 = vpack.c.b16 %v4470, %v4468
      %v4785 = vpack.c.b16 %v4473, %v4471
      %v4786 = vpack.c.b16 %v4474, %v4472
      %v4787 = vpack.c.b16 %v4477, %v4475
      %v4788 = vpack.c.b16 %v4478, %v4476
      %v4789 = vpack.c.b16 %v4481, %v4479
      %v4790 = vpack.c.b16 %v4482, %v4480
      %v4791 = vpack.c.b16 %v4485, %v4483
      %v4792 = vpack.c.b16 %v4486, %v4484
      %v4793 = vpack.c.b16 %v4489, %v4487
      %v4794 = vpack.c.b16 %v4490, %v4488
      %v4795 = vpack.c.b16 %v4493, %v4491
      %v4796 = vpack.c.b16 %v4494, %v4492
      %v4797 = vpack.c.b16 %v4497, %v4495
      %v4798 = vpack.c.b16 %v4498, %v4496
      %v4799 = vpack.c.b16 %v4501, %v4499
      %v4800 = vpack.c.b16 %v4502, %v4500
      %v4801 = vpack.c.b16 %v4505, %v4503
      %v4802 = vpack.c.b16 %v4506, %v4504
      %v4803 = vpack.c.b16 %v4509, %v4507
      %v4804 = vpack.c.b16 %v4510, %v4508
      %v4805 = vpack.c.b16 %v4513, %v4511
      %v4806 = vpack.c.b16 %v4514, %v4512
      %v4807 = vpack.c.b16 %v4517, %v4515
      %v4808 = vpack.c.b16 %v4518, %v4516
      %v4809 = vpack.c.b16 %v4521, %v4519
      %v4810 = vpack.c.b16 %v4522, %v4520
      %v4811 = vpack.c.b16 %v4525, %v4523
      %v4812 = vpack.c.b16 %v4526, %v4524
      %v4813 = vpack.c.b16 %v4529, %v4527
      %v4814 = vpack.c.b16 %v4530, %v4528
      %v4815 = vpack.c.b16 %v4533, %v4531
      %v4816 = vpack.c.b16 %v4534, %v4532
      %v4817 = vpack.c.b16 %v4537, %v4535
      %v4818 = vpack.c.b16 %v4538, %v4536
      %v4819 = vpack.c.b16 %v4541, %v4539
      %v4820 = vpack.c.b16 %v4542, %v4540
      %v4821 = vpack.c.b16 %v4545, %v4543
      %v4822 = vpack.c.b16 %v4546, %v4544
      %v4823 = vpack.c.b16 %v4549, %v4547
      %v4824 = vpack.c.b16 %v4550, %v4548
      %v4825 = vpack.c.b16 %v4553, %v4551
      %v4826 = vpack.c.b16 %v4554, %v4552
      %v4827 = vpack.c.b16 %v4557, %v4555
      %v4828 = vpack.c.b16 %v4558, %v4556
      %v4829 = vpack.c.b16 %v4561, %v4559
      %v4830 = vpack.c.b16 %v4562, %v4560
      %v4831 = vpack.c.b16 %v4565, %v4563
      %v4832 = vpack.c.b16 %v4566, %v4564
      %v4833 = vpack.c.b16 %v4569, %v4567
      %v4834 = vpack.c.b16 %v4570, %v4568
      %v4835 = vpack.c.b16 %v4573, %v4571
      %v4836 = vpack.c.b16 %v4574, %v4572
      %v4837 = vpack.c.b16 %v4577, %v4575
      %v4838 = vpack.c.b16 %v4578, %v4576
      %v4839 = vpack.c.b16 %v4581, %v4579
      %v4840 = vpack.c.b16 %v4582, %v4580
      %v4841 = vpack.c.b16 %v4585, %v4583
      %v4842 = vpack.c.b16 %v4586, %v4584
      %5099 = vmatprep.subr.bf16.mxu0 %v4602
      %5100 = vmatpush1.bf16.msra.mxu0 %v4601
      %5101 = vmatprep.subr.bf16.mxu0 %v4600
      %5102 = vmatpush1.bf16.msra.mxu0 %v4599
      %5103 = vmatprep.subr.bf16.mxu0 %v4598
      %5104 = vmatpush1.bf16.msra.mxu0 %v4597
      %5105 = vmatprep.subr.bf16.mxu0 %v4596
      %5106 = vmatpush1.bf16.msra.mxu0 %v4595
      %5107 = vmatprep.subr.bf16.mxu0 %v4594
      %5108 = vmatpush1.bf16.msra.mxu0 %v4593
      %5109 = vmatprep.subr.bf16.mxu0 %v4592
      %5110 = vmatpush1.bf16.msra.mxu0 %v4591
      %5111 = vmatprep.subr.bf16.mxu0 %v4590
      %5112 = vmatpush1.bf16.msra.mxu0 %v4589
      %5113 = vmatprep.subr.bf16.mxu0 %v4588
      %5114 = vmatpush1.bf16.msra.mxu0 %v4587
      %5115 = vmatprep.subr.bf16.mxu0 %v4618
      %5116 = vmatpush2.bf16.msra.mxu0 %v4617
      %5117 = vmatprep.subr.bf16.mxu0 %v4616
      %5118 = vmatpush2.bf16.msra.mxu0 %v4615
      %5119 = vmatprep.subr.bf16.mxu0 %v4614
      %5120 = vmatpush2.bf16.msra.mxu0 %v4613
      %5121 = vmatprep.subr.bf16.mxu0 %v4612
      %5122 = vmatpush2.bf16.msra.mxu0 %v4611
      %5123 = vmatprep.subr.bf16.mxu0 %v4610
      %5124 = vmatpush2.bf16.msra.mxu0 %v4609
      %5125 = vmatprep.subr.bf16.mxu0 %v4608
      %5126 = vmatpush2.bf16.msra.mxu0 %v4607
      %5127 = vmatprep.subr.bf16.mxu0 %v4606
      %5128 = vmatpush2.bf16.msra.mxu0 %v4605
      %5129 = vmatprep.subr.bf16.mxu0 %v4604
      %5130 = vmatpush2.bf16.msra.mxu0 %v4603
      %5131 = vmatprep.mubr.bf16.mxu0 %v3788
      %5132 = vmatmul.mubr.bf16.gmra.mxu0 %v3787
      %v5133 = vpop.f32.mrf.mxu0
      %v5134 = vadd.f32 0.0, %v5133
      %v5135 = vpop.f32.mrf.mxu0
      %v5136 = vadd.f32 0.0, %v5135
      %v5137 = vpop.f32.mrf.mxu0
      %v5138 = vadd.f32 0.0, %v5137
      %v5139 = vpop.f32.mrf.mxu0
      %v5140 = vadd.f32 0.0, %v5139
      %5141 = vdwg.mxu0
      %5142 = vmatprep.subr.bf16.mxu0 %v4634
      %5143 = vmatpush1.bf16.msra.mxu0 %v4633
      %5144 = vmatprep.subr.bf16.mxu0 %v4632
      %5145 = vmatpush1.bf16.msra.mxu0 %v4631
      %5146 = vmatprep.subr.bf16.mxu0 %v4630
      %5147 = vmatpush1.bf16.msra.mxu0 %v4629
      %5148 = vmatprep.subr.bf16.mxu0 %v4628
      %5149 = vmatpush1.bf16.msra.mxu0 %v4627
      %5150 = vmatprep.subr.bf16.mxu0 %v4626
      %5151 = vmatpush1.bf16.msra.mxu0 %v4625
      %5152 = vmatprep.subr.bf16.mxu0 %v4624
      %5153 = vmatpush1.bf16.msra.mxu0 %v4623
      %5154 = vmatprep.subr.bf16.mxu0 %v4622
      %5155 = vmatpush1.bf16.msra.mxu0 %v4621
      %5156 = vmatprep.subr.bf16.mxu0 %v4620
      %5157 = vmatpush1.bf16.msra.mxu0 %v4619
      %5158 = vmatprep.subr.bf16.mxu0 %v4650
      %5159 = vmatpush2.bf16.msra.mxu0 %v4649
      %5160 = vmatprep.subr.bf16.mxu0 %v4648
      %5161 = vmatpush2.bf16.msra.mxu0 %v4647
      %5162 = vmatprep.subr.bf16.mxu0 %v4646
      %5163 = vmatpush2.bf16.msra.mxu0 %v4645
      %5164 = vmatprep.subr.bf16.mxu0 %v4644
      %5165 = vmatpush2.bf16.msra.mxu0 %v4643
      %5166 = vmatprep.subr.bf16.mxu0 %v4642
      %5167 = vmatpush2.bf16.msra.mxu0 %v4641
      %5168 = vmatprep.subr.bf16.mxu0 %v4640
      %5169 = vmatpush2.bf16.msra.mxu0 %v4639
      %5170 = vmatprep.subr.bf16.mxu0 %v4638
      %5171 = vmatpush2.bf16.msra.mxu0 %v4637
      %5172 = vmatprep.subr.bf16.mxu0 %v4636
      %5173 = vmatpush2.bf16.msra.mxu0 %v4635
      %5174 = vmatprep.mubr.bf16.mxu0 %v3790
      %5175 = vmatmul.mubr.bf16.gmra.mxu0 %v3789
      %v5176 = vpop.f32.mrf.mxu0
      %v5177 = vadd.f32 %v5134, %v5176
      %v5178 = vpop.f32.mrf.mxu0
      %v5179 = vadd.f32 %v5136, %v5178
      %v5180 = vpop.f32.mrf.mxu0
      %v5181 = vadd.f32 %v5138, %v5180
      %v5182 = vpop.f32.mrf.mxu0
      %v5183 = vadd.f32 %v5140, %v5182
      %5184 = vdwg.mxu0
      %5185 = vmatprep.subr.bf16.mxu0 %v4666
      %5186 = vmatpush1.bf16.msra.mxu0 %v4665
      %5187 = vmatprep.subr.bf16.mxu0 %v4664
      %5188 = vmatpush1.bf16.msra.mxu0 %v4663
      %5189 = vmatprep.subr.bf16.mxu0 %v4662
      %5190 = vmatpush1.bf16.msra.mxu0 %v4661
      %5191 = vmatprep.subr.bf16.mxu0 %v4660
      %5192 = vmatpush1.bf16.msra.mxu0 %v4659
      %5193 = vmatprep.subr.bf16.mxu0 %v4658
      %5194 = vmatpush1.bf16.msra.mxu0 %v4657
      %5195 = vmatprep.subr.bf16.mxu0 %v4656
      %5196 = vmatpush1.bf16.msra.mxu0 %v4655
      %5197 = vmatprep.subr.bf16.mxu0 %v4654
      %5198 = vmatpush1.bf16.msra.mxu0 %v4653
      %5199 = vmatprep.subr.bf16.mxu0 %v4652
      %5200 = vmatpush1.bf16.msra.mxu0 %v4651
      %5201 = vmatprep.subr.bf16.mxu0 %v4682
      %5202 = vmatpush2.bf16.msra.mxu0 %v4681
      %5203 = vmatprep.subr.bf16.mxu0 %v4680
      %5204 = vmatpush2.bf16.msra.mxu0 %v4679
      %5205 = vmatprep.subr.bf16.mxu0 %v4678
      %5206 = vmatpush2.bf16.msra.mxu0 %v4677
      %5207 = vmatprep.subr.bf16.mxu0 %v4676
      %5208 = vmatpush2.bf16.msra.mxu0 %v4675
      %5209 = vmatprep.subr.bf16.mxu0 %v4674
      %5210 = vmatpush2.bf16.msra.mxu0 %v4673
      %5211 = vmatprep.subr.bf16.mxu0 %v4672
      %5212 = vmatpush2.bf16.msra.mxu0 %v4671
      %5213 = vmatprep.subr.bf16.mxu0 %v4670
      %5214 = vmatpush2.bf16.msra.mxu0 %v4669
      %5215 = vmatprep.subr.bf16.mxu0 %v4668
      %5216 = vmatpush2.bf16.msra.mxu0 %v4667
      %5217 = vmatprep.mubr.bf16.mxu0 %v3792
      %5218 = vmatmul.mubr.bf16.gmra.mxu0 %v3791
      %v5219 = vpop.f32.mrf.mxu0
      %v5220 = vadd.f32 %v5177, %v5219
      %v5221 = vpop.f32.mrf.mxu0
      %v5222 = vadd.f32 %v5179, %v5221
      %v5223 = vpop.f32.mrf.mxu0
      %v5224 = vadd.f32 %v5181, %v5223
      %v5225 = vpop.f32.mrf.mxu0
      %v5226 = vadd.f32 %v5183, %v5225
      %5227 = vdwg.mxu0
      %5228 = vmatprep.subr.bf16.mxu0 %v4698
      %5229 = vmatpush1.bf16.msra.mxu0 %v4697
      %5230 = vmatprep.subr.bf16.mxu0 %v4696
      %5231 = vmatpush1.bf16.msra.mxu0 %v4695
      %5232 = vmatprep.subr.bf16.mxu0 %v4694
      %5233 = vmatpush1.bf16.msra.mxu0 %v4693
      %5234 = vmatprep.subr.bf16.mxu0 %v4692
      %5235 = vmatpush1.bf16.msra.mxu0 %v4691
      %5236 = vmatprep.subr.bf16.mxu0 %v4690
      %5237 = vmatpush1.bf16.msra.mxu0 %v4689
      %5238 = vmatprep.subr.bf16.mxu0 %v4688
      %5239 = vmatpush1.bf16.msra.mxu0 %v4687
      %5240 = vmatprep.subr.bf16.mxu0 %v4686
      %5241 = vmatpush1.bf16.msra.mxu0 %v4685
      %5242 = vmatprep.subr.bf16.mxu0 %v4684
      %5243 = vmatpush1.bf16.msra.mxu0 %v4683
      %5244 = vmatprep.subr.bf16.mxu0 %v4714
      %5245 = vmatpush2.bf16.msra.mxu0 %v4713
      %5246 = vmatprep.subr.bf16.mxu0 %v4712
      %5247 = vmatpush2.bf16.msra.mxu0 %v4711
      %5248 = vmatprep.subr.bf16.mxu0 %v4710
      %5249 = vmatpush2.bf16.msra.mxu0 %v4709
      %5250 = vmatprep.subr.bf16.mxu0 %v4708
      %5251 = vmatpush2.bf16.msra.mxu0 %v4707
      %5252 = vmatprep.subr.bf16.mxu0 %v4706
      %5253 = vmatpush2.bf16.msra.mxu0 %v4705
      %5254 = vmatprep.subr.bf16.mxu0 %v4704
      %5255 = vmatpush2.bf16.msra.mxu0 %v4703
      %5256 = vmatprep.subr.bf16.mxu0 %v4702
      %5257 = vmatpush2.bf16.msra.mxu0 %v4701
      %5258 = vmatprep.subr.bf16.mxu0 %v4700
      %5259 = vmatpush2.bf16.msra.mxu0 %v4699
      %5260 = vmatprep.mubr.bf16.mxu0 %v3794
      %5261 = vmatmul.mubr.bf16.gmra.mxu0 %v3793
      %v5262 = vpop.f32.mrf.mxu0
      %v5263 = vadd.f32 %v5220, %v5262
      %v5264 = vpop.f32.mrf.mxu0
      %v5265 = vadd.f32 %v5222, %v5264
      %v5266 = vpop.f32.mrf.mxu0
      %v5267 = vadd.f32 %v5224, %v5266
      %v5268 = vpop.f32.mrf.mxu0
      %v5269 = vadd.f32 %v5226, %v5268
      %5270 = vdwg.mxu0
      %5271 = vmatprep.subr.bf16.mxu0 %v4730
      %5272 = vmatpush1.bf16.msra.mxu0 %v4729
      %5273 = vmatprep.subr.bf16.mxu0 %v4728
      %5274 = vmatpush1.bf16.msra.mxu0 %v4727
      %5275 = vmatprep.subr.bf16.mxu0 %v4726
      %5276 = vmatpush1.bf16.msra.mxu0 %v4725
      %5277 = vmatprep.subr.bf16.mxu0 %v4724
      %5278 = vmatpush1.bf16.msra.mxu0 %v4723
      %5279 = vmatprep.subr.bf16.mxu0 %v4722
      %5280 = vmatpush1.bf16.msra.mxu0 %v4721
      %5281 = vmatprep.subr.bf16.mxu0 %v4720
      %5282 = vmatpush1.bf16.msra.mxu0 %v4719
      %5283 = vmatprep.subr.bf16.mxu0 %v4718
      %5284 = vmatpush1.bf16.msra.mxu0 %v4717
      %5285 = vmatprep.subr.bf16.mxu0 %v4716
      %5286 = vmatpush1.bf16.msra.mxu0 %v4715
      %5287 = vmatprep.subr.bf16.mxu0 %v4746
      %5288 = vmatpush2.bf16.msra.mxu0 %v4745
      %5289 = vmatprep.subr.bf16.mxu0 %v4744
      %5290 = vmatpush2.bf16.msra.mxu0 %v4743
      %5291 = vmatprep.subr.bf16.mxu0 %v4742
      %5292 = vmatpush2.bf16.msra.mxu0 %v4741
      %5293 = vmatprep.subr.bf16.mxu0 %v4740
      %5294 = vmatpush2.bf16.msra.mxu0 %v4739
      %5295 = vmatprep.subr.bf16.mxu0 %v4738
      %5296 = vmatpush2.bf16.msra.mxu0 %v4737
      %5297 = vmatprep.subr.bf16.mxu0 %v4736
      %5298 = vmatpush2.bf16.msra.mxu0 %v4735
      %5299 = vmatprep.subr.bf16.mxu0 %v4734
      %5300 = vmatpush2.bf16.msra.mxu0 %v4733
      %5301 = vmatprep.subr.bf16.mxu0 %v4732
      %5302 = vmatpush2.bf16.msra.mxu0 %v4731
      %5303 = vmatprep.mubr.bf16.mxu0 %v3796
      %5304 = vmatmul.mubr.bf16.gmra.mxu0 %v3795
      %v5305 = vpop.f32.mrf.mxu0
      %v5306 = vadd.f32 %v5263, %v5305
      %v5307 = vpop.f32.mrf.mxu0
      %v5308 = vadd.f32 %v5265, %v5307
      %v5309 = vpop.f32.mrf.mxu0
      %v5310 = vadd.f32 %v5267, %v5309
      %v5311 = vpop.f32.mrf.mxu0
      %v5312 = vadd.f32 %v5269, %v5311
      %5313 = vdwg.mxu0
      %5314 = vmatprep.subr.bf16.mxu0 %v4762
      %5315 = vmatpush1.bf16.msra.mxu0 %v4761
      %5316 = vmatprep.subr.bf16.mxu0 %v4760
      %5317 = vmatpush1.bf16.msra.mxu0 %v4759
      %5318 = vmatprep.subr.bf16.mxu0 %v4758
      %5319 = vmatpush1.bf16.msra.mxu0 %v4757
      %5320 = vmatprep.subr.bf16.mxu0 %v4756
      %5321 = vmatpush1.bf16.msra.mxu0 %v4755
      %5322 = vmatprep.subr.bf16.mxu0 %v4754
      %5323 = vmatpush1.bf16.msra.mxu0 %v4753
      %5324 = vmatprep.subr.bf16.mxu0 %v4752
      %5325 = vmatpush1.bf16.msra.mxu0 %v4751
      %5326 = vmatprep.subr.bf16.mxu0 %v4750
      %5327 = vmatpush1.bf16.msra.mxu0 %v4749
      %5328 = vmatprep.subr.bf16.mxu0 %v4748
      %5329 = vmatpush1.bf16.msra.mxu0 %v4747
      %5330 = vmatprep.subr.bf16.mxu0 %v4778
      %5331 = vmatpush2.bf16.msra.mxu0 %v4777
      %5332 = vmatprep.subr.bf16.mxu0 %v4776
      %5333 = vmatpush2.bf16.msra.mxu0 %v4775
      %5334 = vmatprep.subr.bf16.mxu0 %v4774
      %5335 = vmatpush2.bf16.msra.mxu0 %v4773
      %5336 = vmatprep.subr.bf16.mxu0 %v4772
      %5337 = vmatpush2.bf16.msra.mxu0 %v4771
      %5338 = vmatprep.subr.bf16.mxu0 %v4770
      %5339 = vmatpush2.bf16.msra.mxu0 %v4769
      %5340 = vmatprep.subr.bf16.mxu0 %v4768
      %5341 = vmatpush2.bf16.msra.mxu0 %v4767
      %5342 = vmatprep.subr.bf16.mxu0 %v4766
      %5343 = vmatpush2.bf16.msra.mxu0 %v4765
      %5344 = vmatprep.subr.bf16.mxu0 %v4764
      %5345 = vmatpush2.bf16.msra.mxu0 %v4763
      %5346 = vmatprep.mubr.bf16.mxu0 %v3798
      %5347 = vmatmul.mubr.bf16.gmra.mxu0 %v3797
      %v5348 = vpop.f32.mrf.mxu0
      %v5349 = vadd.f32 %v5306, %v5348
      %v5350 = vpop.f32.mrf.mxu0
      %v5351 = vadd.f32 %v5308, %v5350
      %v5352 = vpop.f32.mrf.mxu0
      %v5353 = vadd.f32 %v5310, %v5352
      %v5354 = vpop.f32.mrf.mxu0
      %v5355 = vadd.f32 %v5312, %v5354
      %5356 = vdwg.mxu0
      %5357 = vmatprep.subr.bf16.mxu0 %v4794
      %5358 = vmatpush1.bf16.msra.mxu0 %v4793
      %5359 = vmatprep.subr.bf16.mxu0 %v4792
      %5360 = vmatpush1.bf16.msra.mxu0 %v4791
      %5361 = vmatprep.subr.bf16.mxu0 %v4790
      %5362 = vmatpush1.bf16.msra.mxu0 %v4789
      %5363 = vmatprep.subr.bf16.mxu0 %v4788
      %5364 = vmatpush1.bf16.msra.mxu0 %v4787
      %5365 = vmatprep.subr.bf16.mxu0 %v4786
      %5366 = vmatpush1.bf16.msra.mxu0 %v4785
      %5367 = vmatprep.subr.bf16.mxu0 %v4784
      %5368 = vmatpush1.bf16.msra.mxu0 %v4783
      %5369 = vmatprep.subr.bf16.mxu0 %v4782
      %5370 = vmatpush1.bf16.msra.mxu0 %v4781
      %5371 = vmatprep.subr.bf16.mxu0 %v4780
      %5372 = vmatpush1.bf16.msra.mxu0 %v4779
      %5373 = vmatprep.subr.bf16.mxu0 %v4810
      %5374 = vmatpush2.bf16.msra.mxu0 %v4809
      %5375 = vmatprep.subr.bf16.mxu0 %v4808
      %5376 = vmatpush2.bf16.msra.mxu0 %v4807
      %5377 = vmatprep.subr.bf16.mxu0 %v4806
      %5378 = vmatpush2.bf16.msra.mxu0 %v4805
      %5379 = vmatprep.subr.bf16.mxu0 %v4804
      %5380 = vmatpush2.bf16.msra.mxu0 %v4803
      %5381 = vmatprep.subr.bf16.mxu0 %v4802
      %5382 = vmatpush2.bf16.msra.mxu0 %v4801
      %5383 = vmatprep.subr.bf16.mxu0 %v4800
      %5384 = vmatpush2.bf16.msra.mxu0 %v4799
      %5385 = vmatprep.subr.bf16.mxu0 %v4798
      %5386 = vmatpush2.bf16.msra.mxu0 %v4797
      %5387 = vmatprep.subr.bf16.mxu0 %v4796
      %5388 = vmatpush2.bf16.msra.mxu0 %v4795
      %5389 = vmatprep.mubr.bf16.mxu0 %v3800
      %5390 = vmatmul.mubr.bf16.gmra.mxu0 %v3799
      %v5391 = vpop.f32.mrf.mxu0
      %v5392 = vadd.f32 %v5349, %v5391
      %v5393 = vpop.f32.mrf.mxu0
      %v5394 = vadd.f32 %v5351, %v5393
      %v5395 = vpop.f32.mrf.mxu0
      %v5396 = vadd.f32 %v5353, %v5395
      %v5397 = vpop.f32.mrf.mxu0
      %v5398 = vadd.f32 %v5355, %v5397
      %5399 = vdwg.mxu0
      %5400 = vmatprep.subr.bf16.mxu0 %v4826
      %5401 = vmatpush1.bf16.msra.mxu0 %v4825
      %5402 = vmatprep.subr.bf16.mxu0 %v4824
      %5403 = vmatpush1.bf16.msra.mxu0 %v4823
      %5404 = vmatprep.subr.bf16.mxu0 %v4822
      %5405 = vmatpush1.bf16.msra.mxu0 %v4821
      %5406 = vmatprep.subr.bf16.mxu0 %v4820
      %5407 = vmatpush1.bf16.msra.mxu0 %v4819
      %5408 = vmatprep.subr.bf16.mxu0 %v4818
      %5409 = vmatpush1.bf16.msra.mxu0 %v4817
      %5410 = vmatprep.subr.bf16.mxu0 %v4816
      %5411 = vmatpush1.bf16.msra.mxu0 %v4815
      %5412 = vmatprep.subr.bf16.mxu0 %v4814
      %5413 = vmatpush1.bf16.msra.mxu0 %v4813
      %5414 = vmatprep.subr.bf16.mxu0 %v4812
      %5415 = vmatpush1.bf16.msra.mxu0 %v4811
      %5416 = vmatprep.subr.bf16.mxu0 %v4842
      %5417 = vmatpush2.bf16.msra.mxu0 %v4841
      %5418 = vmatprep.subr.bf16.mxu0 %v4840
      %5419 = vmatpush2.bf16.msra.mxu0 %v4839
      %5420 = vmatprep.subr.bf16.mxu0 %v4838
      %5421 = vmatpush2.bf16.msra.mxu0 %v4837
      %5422 = vmatprep.subr.bf16.mxu0 %v4836
      %5423 = vmatpush2.bf16.msra.mxu0 %v4835
      %5424 = vmatprep.subr.bf16.mxu0 %v4834
      %5425 = vmatpush2.bf16.msra.mxu0 %v4833
      %5426 = vmatprep.subr.bf16.mxu0 %v4832
      %5427 = vmatpush2.bf16.msra.mxu0 %v4831
      %5428 = vmatprep.subr.bf16.mxu0 %v4830
      %5429 = vmatpush2.bf16.msra.mxu0 %v4829
      %5430 = vmatprep.subr.bf16.mxu0 %v4828
      %5431 = vmatpush2.bf16.msra.mxu0 %v4827
      %5432 = vmatprep.mubr.bf16.mxu0 %v3802
      %5433 = vmatmul.mubr.bf16.gmra.mxu0 %v3801
      %v5434 = vpop.f32.mrf.mxu0
      %v5435 = vadd.f32 %v5392, %v5434
      %v5436 = vpop.f32.mrf.mxu0
      %v5437 = vadd.f32 %v5394, %v5436
      %v5438 = vpop.f32.mrf.mxu0
      %v5439 = vadd.f32 %v5396, %v5438
      %v5440 = vpop.f32.mrf.mxu0
      %v5441 = vadd.f32 %v5398, %v5440
      %5442 = vdwg.mxu0
      %v5443 = vtanh.pop %v5435
      %v5444 = vtanh.pop %v5437
      %v5445 = vtanh.pop %v5439
      %v5446 = vtanh.pop %v5441
      %5447 = vst [vmem:[%s413] sm:$0xff] %v5443
      %5448 = vst [vmem:[%s413 + $0x8] sm:$0xff] %v5444
      %5449 = vst [vmem:[%s413 + $0x10] sm:$0xff] %v5445
      %5450 = vst [vmem:[%s413 + $0x18] sm:$0xff] %v5446
      %p5451 = scmp.lt.s32.totalorder %s23, 1
      %s5452 = scalar_select %p5451, %s23, 1
      %s5453 = smul.addr %s5452, 4
      %s5454 = smul.addr %s5453, 8
      %s5455 = scalar_lea.vmem %s12, %s5454
      // Predicated region
      $region69: #{E_forward.1} parent=67 // pred_check
        %p5456 = pneg %p298
      $region70: #{E_forward.1} parent=67 // pred_check_branch
        %5458 = sbr.rel (%p5456) target = $region72
      $region71: #{E_forward.1} parent=67 // pred_region
        _
      $region72: #{E_forward.1} parent=67 // pred_fallthru
        _
    $region68: #{E_forward.1} parent=5 // pred_fallthru
      _
    %p5459 = scmp.le.s32.totalorder 2, %s18
    // Predicated region
    $region73: #{E_forward.1} parent=5 // pred_check
      %p5460 = pneg %p5459
    $region74: #{E_forward.1} parent=5 // pred_check_branch
      %5462 = sbr.rel (%p5460) target = $region76
    $region75: #{E_forward.1} parent=5 // pred_region
      %s5463 = ssub.s32 %s18, 2
      // Predicated region
      $region77: #{E_forward.1} parent=75 // pred_check
        %p5464 = pneg %p304
      $region78: #{E_forward.1} parent=75 // pred_check_branch
        %5466 = sbr.rel (%p5464) target = $region80
      $region79: #{E_forward.1} parent=75 // pred_region
        %p5467 = scmp.lt.s32.totalorder %s24, 1
        %s5468 = scalar_select %p5467, %s24, 1
        %s5469 = smul.addr %s5468, 4
        %s5470 = smul.addr %s5469, 8
        %s5471 = scalar_lea.vmem %s12, %s5470
      $region80: #{E_forward.1} parent=75 // pred_fallthru
        _
    $region76: #{E_forward.1} parent=5 // pred_fallthru
      _
  $region6: #{E_forward.1} parent=0 // loop_footer
    %s22 = sadd.s32 1, %s18
  $region7: #{E_forward.1} parent=0 // loop_footer_branch
    %17 = sbr.rel target = $region3
  $region8: #{E_forward.1} parent=0 // loop_exit
    _

</llo_original>
